<compile_context>
chip_gen: v7x
topology: tpu7x:2x2x1
jax: 0.10.0
libtpu: 0.0.40
codegen_flags: <defaults>
</compile_context>

<pallas_src>
import math

import numpy as np
import jax
import jax.numpy as jnp
from jax import lax
from jax.experimental import pallas as pl
from jax.experimental.pallas import tpu as pltpu

WINDOW_SIZE = 11
SIGMA = 1.5
C1 = 0.01 ** 2
C2 = 0.03 ** 2


def _gaussian_1d(window_size, sigma=SIGMA):
    g = np.array(
        [math.exp(-((x - window_size // 2) ** 2) / (2.0 * sigma ** 2))
         for x in range(window_size)],
        dtype=np.float64,
    )
    return (g / g.sum()).astype(np.float32)


def _banded_gauss_matrix(n, window_size):
    """(n, n) banded Toeplitz matrix M with M[i, j] = g[j - i + pad].

    M @ x applies the zero-padded 1D Gaussian down the rows; x @ M applies it
    across the columns — exactly F.conv2d's padding=window_size//2 behaviour
    for one separable pass (taps falling outside the image contribute zero).
    """
    g = _gaussian_1d(window_size)
    pad = window_size // 2
    m = np.zeros((n, n), dtype=np.float32)
    for i in range(n):
        for j in range(max(0, i - pad), min(n, i + pad + 1)):
            m[i, j] = g[j - i + pad]
    return m


def _ssim_plane_kernel(img1_ref, img2_ref, mrow_ref, mcol_ref, out_ref):
    # One unpadded (H, W) spatial plane (one (n, c) pair) per grid step.
    x1 = img1_ref[...]
    x2 = img2_ref[...]
    mrow = mrow_ref[...]          # (H, H) banded Gaussian (row pass)
    mcol = mcol_ref[...]          # (W, W) banded Gaussian (column pass)

    def gauss(x):
        # Separable zero-padded 11x11 Gaussian as two MXU matmuls.
        t = jnp.dot(mrow, x, precision=lax.Precision.HIGHEST,
                    preferred_element_type=jnp.float32)
        return jnp.dot(t, mcol, precision=lax.Precision.HIGHEST,
                       preferred_element_type=jnp.float32)

    mu1 = gauss(x1)
    mu2 = gauss(x2)
    e11 = gauss(x1 * x1)
    e22 = gauss(x2 * x2)
    e12 = gauss(x1 * x2)

    mu1_sq = mu1 * mu1
    mu2_sq = mu2 * mu2
    mu1_mu2 = mu1 * mu2
    sigma1_sq = e11 - mu1_sq
    sigma2_sq = e22 - mu2_sq
    sigma12 = e12 - mu1_mu2

    num = (2.0 * mu1_mu2 + C1) * (2.0 * sigma12 + C2)
    den = (mu1_sq + mu2_sq + C1) * (sigma1_sq + sigma2_sq + C2)

    # Divide via EUP approximate reciprocal + two Newton steps (stays within
    # f32 accuracy while keeping the heavy part off the VPU).
    r = pl.reciprocal(den, approx=True)
    r = r * (2.0 - den * r)
    r = r * (2.0 - den * r)
    ssim_map = num * r

    # Per-plane partial sum; final (tiny) mean happens in the wrapper so the
    # grid axis can stay "parallel" and fp accumulation stays hierarchical.
    out_ref[...] = jnp.sum(ssim_map, keepdims=True).reshape(out_ref.shape)


def ssim(img1, img2, window_size=WINDOW_SIZE, size_average=True):
    B, C, H, W = img1.shape
    BC = B * C

    # Free reshape (collapse leading dims) — no host-side padding / HBM copy.
    x1 = img1.astype(jnp.float32).reshape(BC, H, W)
    x2 = img2.astype(jnp.float32).reshape(BC, H, W)
    mrow = jnp.asarray(_banded_gauss_matrix(H, window_size))
    mcol = jnp.asarray(_banded_gauss_matrix(W, window_size))

    # ~20 live f32 (H, W) temporaries + double-buffered inputs per step.
    plane_bytes = H * W * 4
    est_bytes = 24 * plane_bytes + 8 * (H * H + W * W) * 4 + (2 << 20)
    vmem_limit = int(min(max(est_bytes, 32 * 1024 * 1024), 48 * 1024 * 1024))
    # TODO(synk): for very large planes (est_bytes > ~48 MiB) add row-strip
    # tiling with a (window_size - 1)-row halo instead of whole-plane blocks.

    partial_sums = pl.pallas_call(
        _ssim_plane_kernel,
        out_shape=jax.ShapeDtypeStruct((BC, 1, 1), jnp.float32),
        grid_spec=pltpu.PrefetchScalarGridSpec(
            num_scalar_prefetch=0,
            grid=(BC,),
            in_specs=[
                pl.BlockSpec((None, H, W), lambda g: (g, 0, 0)),
                pl.BlockSpec((None, H, W), lambda g: (g, 0, 0)),
                pl.BlockSpec((H, H), lambda g: (0, 0)),
                pl.BlockSpec((W, W), lambda g: (0, 0)),
            ],
            out_specs=pl.BlockSpec((1, 1, 1), lambda g: (g, 0, 0)),
        ),
        compiler_params=pltpu.CompilerParams(
            dimension_semantics=("parallel",),
            vmem_limit_bytes=vmem_limit),
    )(x1, x2, mrow, mcol)

    sums = partial_sums.reshape(B, C)
    if size_average:
        return jnp.sum(sums) / (B * C * H * W)
    return jnp.sum(sums, axis=1) / (C * H * W)   # per-batch-element means


def ssim_reference(img1, img2, window_size=WINDOW_SIZE):
    # Pure-JAX reference mirroring the PyTorch _ssim (grouped conv).
    B, C, H, W = img1.shape
    g = jnp.asarray(_gaussian_1d(window_size))
    w2d = jnp.outer(g, g)
    win = jnp.broadcast_to(w2d, (C, 1, window_size, window_size))
    pad = window_size // 2

    def conv(x):
        return lax.conv_general_dilated(
            x, win, window_strides=(1, 1), padding=[(pad, pad), (pad, pad)],
            dimension_numbers=("NCHW", "OIHW", "NCHW"),
            feature_group_count=C, precision=lax.Precision.HIGHEST)

    mu1, mu2 = conv(img1), conv(img2)
    mu1_sq, mu2_sq, mu1_mu2 = mu1 * mu1, mu2 * mu2, mu1 * mu2
    s1 = conv(img1 * img1) - mu1_sq
    s2 = conv(img2 * img2) - mu2_sq
    s12 = conv(img1 * img2) - mu1_mu2
    m = ((2 * mu1_mu2 + C1) * (2 * s12 + C2)) / (
        (mu1_sq + mu2_sq + C1) * (s1 + s2 + C2))
    return m.mean()


if __name__ == "__main__":
    key = jax.random.PRNGKey(0)
    k1, k2 = jax.random.split(key)
    B, C, H, W = 2, 4, 16, 16
    img1 = jax.random.uniform(k1, (B, C, H, W), dtype=jnp.float32)
    # make img2 a noisy version of img1 so SSIM is non-trivial
    img2 = jnp.clip(
        img1 + 0.1 * jax.random.normal(k2, (B, C, H, W), jnp.float32), 0.0, 1.0)

    result = jax.block_until_ready(ssim(img1, img2))
    ref = jax.block_until_ready(ssim_reference(img1, img2))

    np.testing.assert_allclose(np.asarray(result), np.asarray(ref),
                               rtol=1e-4, atol=1e-5)
    print("KERNEL_OK")
</pallas_src>

<mosaic_0001>
module attributes {stable_mosaic.version = 11 : i64} {
  func.func @_ssim_plane_kernel(%arg0: i32, %arg1: memref<1x16x16xf32, #tpu.memory_space<vmem>>, %arg2: memref<1x16x16xf32, #tpu.memory_space<vmem>>, %arg3: memref<16x16xf32, #tpu.memory_space<vmem>>, %arg4: memref<16x16xf32, #tpu.memory_space<vmem>>, %arg5: memref<1x1x1xf32, #tpu.memory_space<vmem>>) attributes {dimension_semantics = [#tpu.dimension_semantics<parallel>], iteration_bounds = array<i64: 8>, scalar_prefetch = 0 : i64, scratch_operands = 0 : i64, tpu.core_type = #tpu.core_type<tc>, window_params = [{transform_indices = @transform_0, window_bounds = array<i64: 1, 16, 16>}, {transform_indices = @transform_1, window_bounds = array<i64: 1, 16, 16>}, {pipeline_mode = #tpu.pipeline_mode<synchronous>, transform_indices = @transform_2, window_bounds = array<i64: 16, 16>}, {pipeline_mode = #tpu.pipeline_mode<synchronous>, transform_indices = @transform_3, window_bounds = array<i64: 16, 16>}, {transform_indices = @transform_4, window_bounds = array<i64: 1, 1, 1>}]} {
    %c0 = arith.constant 0 : index
    %c0_0 = arith.constant 0 : index
    %c0_1 = arith.constant 0 : index
    %0 = vector.load %arg1[%c0, %c0_0, %c0_1] : memref<1x16x16xf32, #tpu.memory_space<vmem>>, vector<1x16x16xf32>
    %1 = vector.shape_cast %0 : vector<1x16x16xf32> to vector<16x16xf32>
    %c0_2 = arith.constant 0 : index
    %c0_3 = arith.constant 0 : index
    %c0_4 = arith.constant 0 : index
    %2 = vector.load %arg2[%c0_2, %c0_3, %c0_4] : memref<1x16x16xf32, #tpu.memory_space<vmem>>, vector<1x16x16xf32>
    %3 = vector.shape_cast %2 : vector<1x16x16xf32> to vector<16x16xf32>
    %c0_5 = arith.constant 0 : index
    %c0_6 = arith.constant 0 : index
    %4 = vector.load %arg3[%c0_5, %c0_6] : memref<16x16xf32, #tpu.memory_space<vmem>>, vector<16x16xf32>
    %c0_7 = arith.constant 0 : index
    %c0_8 = arith.constant 0 : index
    %5 = vector.load %arg4[%c0_7, %c0_8] : memref<16x16xf32, #tpu.memory_space<vmem>>, vector<16x16xf32>
    %cst = arith.constant dense<0.000000e+00> : vector<16x16xf32>
    %6 = tpu.matmul %4, %1, %cst {dimension_numbers = #tpu.dot_dimension_numbers<[1], [0], [0], [1], [0, 0, 1, 1], [], []>, precision = #tpu.contract_precision<fp32>} : vector<16x16xf32>, vector<16x16xf32>, vector<16x16xf32> -> vector<16x16xf32>
    %cst_9 = arith.constant dense<0.000000e+00> : vector<16x16xf32>
    %7 = tpu.matmul %6, %5, %cst_9 {dimension_numbers = #tpu.dot_dimension_numbers<[1], [0], [0], [1], [0, 0, 1, 1], [], []>, precision = #tpu.contract_precision<fp32>} : vector<16x16xf32>, vector<16x16xf32>, vector<16x16xf32> -> vector<16x16xf32>
    %cst_10 = arith.constant dense<0.000000e+00> : vector<16x16xf32>
    %8 = tpu.matmul %4, %3, %cst_10 {dimension_numbers = #tpu.dot_dimension_numbers<[1], [0], [0], [1], [0, 0, 1, 1], [], []>, precision = #tpu.contract_precision<fp32>} : vector<16x16xf32>, vector<16x16xf32>, vector<16x16xf32> -> vector<16x16xf32>
    %cst_11 = arith.constant dense<0.000000e+00> : vector<16x16xf32>
    %9 = tpu.matmul %8, %5, %cst_11 {dimension_numbers = #tpu.dot_dimension_numbers<[1], [0], [0], [1], [0, 0, 1, 1], [], []>, precision = #tpu.contract_precision<fp32>} : vector<16x16xf32>, vector<16x16xf32>, vector<16x16xf32> -> vector<16x16xf32>
    %10 = arith.mulf %1, %1 : vector<16x16xf32>
    %cst_12 = arith.constant dense<0.000000e+00> : vector<16x16xf32>
    %11 = tpu.matmul %4, %10, %cst_12 {dimension_numbers = #tpu.dot_dimension_numbers<[1], [0], [0], [1], [0, 0, 1, 1], [], []>, precision = #tpu.contract_precision<fp32>} : vector<16x16xf32>, vector<16x16xf32>, vector<16x16xf32> -> vector<16x16xf32>
    %cst_13 = arith.constant dense<0.000000e+00> : vector<16x16xf32>
    %12 = tpu.matmul %11, %5, %cst_13 {dimension_numbers = #tpu.dot_dimension_numbers<[1], [0], [0], [1], [0, 0, 1, 1], [], []>, precision = #tpu.contract_precision<fp32>} : vector<16x16xf32>, vector<16x16xf32>, vector<16x16xf32> -> vector<16x16xf32>
    %13 = arith.mulf %3, %3 : vector<16x16xf32>
    %cst_14 = arith.constant dense<0.000000e+00> : vector<16x16xf32>
    %14 = tpu.matmul %4, %13, %cst_14 {dimension_numbers = #tpu.dot_dimension_numbers<[1], [0], [0], [1], [0, 0, 1, 1], [], []>, precision = #tpu.contract_precision<fp32>} : vector<16x16xf32>, vector<16x16xf32>, vector<16x16xf32> -> vector<16x16xf32>
    %cst_15 = arith.constant dense<0.000000e+00> : vector<16x16xf32>
    %15 = tpu.matmul %14, %5, %cst_15 {dimension_numbers = #tpu.dot_dimension_numbers<[1], [0], [0], [1], [0, 0, 1, 1], [], []>, precision = #tpu.contract_precision<fp32>} : vector<16x16xf32>, vector<16x16xf32>, vector<16x16xf32> -> vector<16x16xf32>
    %16 = arith.mulf %1, %3 : vector<16x16xf32>
    %cst_16 = arith.constant dense<0.000000e+00> : vector<16x16xf32>
    %17 = tpu.matmul %4, %16, %cst_16 {dimension_numbers = #tpu.dot_dimension_numbers<[1], [0], [0], [1], [0, 0, 1, 1], [], []>, precision = #tpu.contract_precision<fp32>} : vector<16x16xf32>, vector<16x16xf32>, vector<16x16xf32> -> vector<16x16xf32>
    %cst_17 = arith.constant dense<0.000000e+00> : vector<16x16xf32>
    %18 = tpu.matmul %17, %5, %cst_17 {dimension_numbers = #tpu.dot_dimension_numbers<[1], [0], [0], [1], [0, 0, 1, 1], [], []>, precision = #tpu.contract_precision<fp32>} : vector<16x16xf32>, vector<16x16xf32>, vector<16x16xf32> -> vector<16x16xf32>
    %19 = arith.mulf %7, %7 : vector<16x16xf32>
    %20 = arith.mulf %9, %9 : vector<16x16xf32>
    %21 = arith.mulf %7, %9 : vector<16x16xf32>
    %22 = arith.subf %12, %19 : vector<16x16xf32>
    %23 = arith.subf %15, %20 : vector<16x16xf32>
    %24 = arith.subf %18, %21 : vector<16x16xf32>
    %cst_18 = arith.constant 2.000000e+00 : f32
    %25 = vector.broadcast %cst_18 : f32 to vector<16x16xf32>
    %26 = arith.mulf %25, %21 : vector<16x16xf32>
    %cst_19 = arith.constant 9.99999974E-5 : f32
    %27 = vector.broadcast %cst_19 : f32 to vector<16x16xf32>
    %28 = arith.addf %26, %27 : vector<16x16xf32>
    %cst_20 = arith.constant 2.000000e+00 : f32
    %29 = vector.broadcast %cst_20 : f32 to vector<16x16xf32>
    %30 = arith.mulf %29, %24 : vector<16x16xf32>
    %cst_21 = arith.constant 8.99999984E-4 : f32
    %31 = vector.broadcast %cst_21 : f32 to vector<16x16xf32>
    %32 = arith.addf %30, %31 : vector<16x16xf32>
    %33 = arith.mulf %28, %32 : vector<16x16xf32>
    %34 = arith.addf %19, %20 : vector<16x16xf32>
    %cst_22 = arith.constant 9.99999974E-5 : f32
    %35 = vector.broadcast %cst_22 : f32 to vector<16x16xf32>
    %36 = arith.addf %34, %35 : vector<16x16xf32>
    %37 = arith.addf %22, %23 : vector<16x16xf32>
    %cst_23 = arith.constant 8.99999984E-4 : f32
    %38 = vector.broadcast %cst_23 : f32 to vector<16x16xf32>
    %39 = arith.addf %37, %38 : vector<16x16xf32>
    %40 = arith.mulf %36, %39 : vector<16x16xf32>
    %41 = tpu.reciprocal %40 {approx = true} : vector<16x16xf32> -> vector<16x16xf32>
    %42 = arith.mulf %40, %41 : vector<16x16xf32>
    %cst_24 = arith.constant 2.000000e+00 : f32
    %43 = vector.broadcast %cst_24 : f32 to vector<16x16xf32>
    %44 = arith.subf %43, %42 : vector<16x16xf32>
    %45 = arith.mulf %41, %44 : vector<16x16xf32>
    %46 = arith.mulf %40, %45 : vector<16x16xf32>
    %cst_25 = arith.constant 2.000000e+00 : f32
    %47 = vector.broadcast %cst_25 : f32 to vector<16x16xf32>
    %48 = arith.subf %47, %46 : vector<16x16xf32>
    %49 = arith.mulf %45, %48 : vector<16x16xf32>
    %50 = arith.mulf %33, %49 : vector<16x16xf32>
    %51 = vector.shape_cast %50 : vector<16x16xf32> to vector<1x16x16xf32>
    %cst_26 = arith.constant dense<0.000000e+00> : vector<1xf32>
    %52 = vector.multi_reduction <add>, %51, %cst_26 [1, 2] : vector<1x16x16xf32> to vector<1xf32>
    %53 = vector.shape_cast %52 : vector<1xf32> to vector<1x1x1xf32>
    %54 = vector.extract %53[0, 0, 0] : f32 from vector<1x1x1xf32>
    %55 = vector.broadcast %54 : f32 to vector<1x1xf32>
    %56 = vector.shape_cast %55 : vector<1x1xf32> to vector<1x1x1xf32>
    %c0_27 = arith.constant 0 : index
    %c0_28 = arith.constant 0 : index
    %c0_29 = arith.constant 0 : index
    %57 = vector.load %arg5[%c0_27, %c0_28, %c0_29] : memref<1x1x1xf32, #tpu.memory_space<vmem>>, vector<1x1x1xf32>
    tpu.vector_store %arg5[%c0_27, %c0_28, %c0_29], %56 {strides = array<i32>} : memref<1x1x1xf32, #tpu.memory_space<vmem>>, vector<1x1x1xf32>,
    return
  }
  func.func @transform_0(%arg0: i32) -> (i32, i32, i32) {
    %c0_i32 = arith.constant 0 : i32
    %c0_i32_0 = arith.constant 0 : i32
    %c0_i32_1 = arith.constant 0 : i32
    return %arg0, %c0_i32, %c0_i32_0 : i32, i32, i32
  }
  func.func @transform_1(%arg0: i32) -> (i32, i32, i32) {
    %c0_i32 = arith.constant 0 : i32
    %c0_i32_0 = arith.constant 0 : i32
    %c0_i32_1 = arith.constant 0 : i32
    return %arg0, %c0_i32, %c0_i32_0 : i32, i32, i32
  }
  func.func @transform_2(%arg0: i32) -> (i32, i32) {
    %c0_i32 = arith.constant 0 : i32
    %c0_i32_0 = arith.constant 0 : i32
    %c0_i32_1 = arith.constant 0 : i32
    return %c0_i32, %c0_i32_0 : i32, i32
  }
  func.func @transform_3(%arg0: i32) -> (i32, i32) {
    %c0_i32 = arith.constant 0 : i32
    %c0_i32_0 = arith.constant 0 : i32
    %c0_i32_1 = arith.constant 0 : i32
    return %c0_i32, %c0_i32_0 : i32, i32
  }
  func.func @transform_4(%arg0: i32) -> (i32, i32, i32) {
    %c0_i32 = arith.constant 0 : i32
    %c0_i32_0 = arith.constant 0 : i32
    %c0_i32_1 = arith.constant 0 : i32
    return %arg0, %c0_i32, %c0_i32_0 : i32, i32, i32
  }
}

</mosaic_0001>

<llo_original>
// kernel: tpu_custom_call.1
$region0: #{tpu_custom_call.1}
  #allocation0 [shape = 'u32[]', space=smem, size = 0x4, offset = 0x4, fixed_abs, tag = 'smem constant byte address 0x4 - core index']
  #allocation1 [shape = 'u32[144,128]{1,0:T(1,128)}', space=vmem, size = 0x12000, scoped, tag = 'internal scratch']
  %s0 = inlined_call_operand.hbm [shape: f32[8,16,16], index: 0, kind: input, shape index: {}]
  %s1 = inlined_call_operand.hbm [shape: f32[8,16,16], index: 1, kind: input, shape index: {}]
  %s2 = inlined_call_operand.hbm [shape: f32[16,16], index: 2, kind: input, shape index: {}]
  %s3 = inlined_call_operand.hbm [shape: f32[16,16], index: 3, kind: input, shape index: {}]
  %s4 = inlined_call_operand.vmem [shape: f32[8,1,1], index: 4, kind: output, shape index: {}]
  %s5 = sld [smem:[#allocation0]]
  $region65: #{tpu_custom_call.1} parent=0
    _
  %s7 = ssub.s32 1, %s5
  %s8 = scalar_select 0, %s7, %s5
  $region1: #{tpu_custom_call.1} parent=0
    #allocation2 [shape = 'u8[16384]{0}', space=vmem, size = 0x4000, scoped, tag = 'input window, operand 0']
    #allocation3 [shape = 's32[2]{0}', space=sflag, size = 0x8, scoped, tag = 'scoped memory for tpu_custom_call.1']
    #allocation4 [shape = 'u8[16384]{0}', space=vmem, size = 0x4000, scoped, tag = 'input window, operand 1']
    #allocation5 [shape = 's32[2]{0}', space=sflag, size = 0x8, scoped, tag = 'scoped memory for tpu_custom_call.1']
    #allocation6 [shape = 'u8[8192]{0}', space=vmem, size = 0x2000, scoped, tag = 'input window, operand 2, single buffered']
    #allocation7 [shape = 'u8[8192]{0}', space=vmem, size = 0x2000, scoped, tag = 'input window, operand 3, single buffered']
    #allocation8 [shape = 's32[1]{0}', space=sflag, size = 0x4, scoped, tag = 'scoped memory for tpu_custom_call.1']
    %9 = vsyncpa [#allocation3], 0
    %s10 = scalar_lea.sflag [#allocation3], 1
    %11 = vsyncpa %s10, 0
    %12 = vsyncpa [#allocation5], 0
    %s13 = scalar_lea.sflag [#allocation5], 1
    %14 = vsyncpa %s13, 0
    %15 = vsyncpa [#allocation8], 0
    loop: start=0, step=1, limit=10
    $region2: #{tpu_custom_call.1} parent=1 // loop_pre_header
      _
    $region3: #{tpu_custom_call.1} parent=1 // loop_header
      %s17 = sphi 0, %s21
      %p18 = scmp.ge.s32.totalorder %s17, 10
      %s27 = sphi 0, %s29
      %s30 = sphi 0, %s27
      %s31 = sphi 0, %s30
      %s47 = sphi 0, %s31
      %s53 = sphi 0, %s55
      %s56 = sphi 0, %s53
      %s57 = sphi 0, %s56
      %s73 = sphi 0, %s57
      %s77 = sphi 0, %s77
      %s79 = sphi 0, %s77
      %s80 = sphi 0, %s79
      %s94 = sphi 0, %s80
      %s98 = sphi 0, %s98
      %s100 = sphi 0, %s98
      %s101 = sphi 0, %s100
      %s115 = sphi 0, %s101
      %s121 = sphi 0, %s123
      %s124 = sphi 0, %s121
      %s125 = sphi 0, %s124
      %s141 = sphi 0, %s125
    $region4: #{tpu_custom_call.1} parent=1 // loop_header_branch
      %20 = sbr.rel (%p18) target = $region8
    $region5: #{tpu_custom_call.1} parent=1 // loop_body
      %s22 = ssub.s32 %s17, 1
      %s23 = ssub.s32 %s17, 2
      %s24 = sadd.s32 %s17, 1
      %s25 = ssub.s32 %s17, %s24
      %p26 = scmp.eq.s32.totalorder %s25, 0
      %s28 = sadd.s32 %s27, 1
      %s29 = scalar_select %p26, %s27, %s28
      %p32 = pneg %p26
      %p33 = scmp.eq.s32.totalorder %s17, 7
      %p34 = por %p32, %p33
      %p35 = scmp.ne.s32.totalorder %s27, %s30
      %p36 = scmp.eq.s32.totalorder %s17, 0
      %p37 = por %p35, %p36
      %p38 = scmp.ne.s32.totalorder %s27, %s30
      %p39 = scmp.eq.s32.totalorder %s22, 7
      %p40 = por %p38, %p39
      %p41 = scmp.ne.s32.totalorder %s30, %s31
      %p42 = scmp.eq.s32.totalorder %s22, 0
      %p43 = por %p41, %p42
      %p44 = scmp.ne.s32.totalorder %s30, %s31
      %p45 = scmp.eq.s32.totalorder %s23, 7
      %p46 = por %p44, %p45
      %p48 = scmp.ne.s32.totalorder %s31, %s47
      %p49 = scmp.eq.s32.totalorder %s23, 0
      %p50 = por %p48, %p49
      %s51 = ssub.s32 %s17, %s24
      %p52 = scmp.eq.s32.totalorder %s51, 0
      %s54 = sadd.s32 %s53, 1
      %s55 = scalar_select %p52, %s53, %s54
      %p58 = pneg %p52
      %p59 = scmp.eq.s32.totalorder %s17, 7
      %p60 = por %p58, %p59
      %p61 = scmp.ne.s32.totalorder %s53, %s56
      %p62 = scmp.eq.s32.totalorder %s17, 0
      %p63 = por %p61, %p62
      %p64 = scmp.ne.s32.totalorder %s53, %s56
      %p65 = scmp.eq.s32.totalorder %s22, 7
      %p66 = por %p64, %p65
      %p67 = scmp.ne.s32.totalorder %s56, %s57
      %p68 = scmp.eq.s32.totalorder %s22, 0
      %p69 = por %p67, %p68
      %p70 = scmp.ne.s32.totalorder %s56, %s57
      %p71 = scmp.eq.s32.totalorder %s23, 7
      %p72 = por %p70, %p71
      %p74 = scmp.ne.s32.totalorder %s57, %s73
      %p75 = scmp.eq.s32.totalorder %s23, 0
      %p76 = por %p74, %p75
      %s78 = sadd.s32 %s77, 1
      %p81 = scmp.eq.s32.totalorder %s17, 7
      %p82 = scmp.ne.s32.totalorder %s77, %s79
      %p83 = scmp.eq.s32.totalorder %s17, 0
      %p84 = por %p82, %p83
      %p85 = scmp.ne.s32.totalorder %s77, %s79
      %p86 = scmp.eq.s32.totalorder %s22, 7
      %p87 = por %p85, %p86
      %p88 = scmp.ne.s32.totalorder %s79, %s80
      %p89 = scmp.eq.s32.totalorder %s22, 0
      %p90 = por %p88, %p89
      %p91 = scmp.ne.s32.totalorder %s79, %s80
      %p92 = scmp.eq.s32.totalorder %s23, 7
      %p93 = por %p91, %p92
      %p95 = scmp.ne.s32.totalorder %s80, %s94
      %p96 = scmp.eq.s32.totalorder %s23, 0
      %p97 = por %p95, %p96
      %s99 = sadd.s32 %s98, 1
      %p102 = scmp.eq.s32.totalorder %s17, 7
      %p103 = scmp.ne.s32.totalorder %s98, %s100
      %p104 = scmp.eq.s32.totalorder %s17, 0
      %p105 = por %p103, %p104
      %p106 = scmp.ne.s32.totalorder %s98, %s100
      %p107 = scmp.eq.s32.totalorder %s22, 7
      %p108 = por %p106, %p107
      %p109 = scmp.ne.s32.totalorder %s100, %s101
      %p110 = scmp.eq.s32.totalorder %s22, 0
      %p111 = por %p109, %p110
      %p112 = scmp.ne.s32.totalorder %s100, %s101
      %p113 = scmp.eq.s32.totalorder %s23, 7
      %p114 = por %p112, %p113
      %p116 = scmp.ne.s32.totalorder %s101, %s115
      %p117 = scmp.eq.s32.totalorder %s23, 0
      %p118 = por %p116, %p117
      %s119 = ssub.s32 %s17, %s24
      %p120 = scmp.eq.s32.totalorder %s119, 0
      %s122 = sadd.s32 %s121, 1
      %s123 = scalar_select %p120, %s121, %s122
      %p126 = pneg %p120
      %p127 = scmp.eq.s32.totalorder %s17, 7
      %p128 = por %p126, %p127
      %p129 = scmp.ne.s32.totalorder %s121, %s124
      %p130 = scmp.eq.s32.totalorder %s17, 0
      %p131 = por %p129, %p130
      %p132 = scmp.ne.s32.totalorder %s121, %s124
      %p133 = scmp.eq.s32.totalorder %s22, 7
      %p134 = por %p132, %p133
      %p135 = scmp.ne.s32.totalorder %s124, %s125
      %p136 = scmp.eq.s32.totalorder %s22, 0
      %p137 = por %p135, %p136
      %p138 = scmp.ne.s32.totalorder %s124, %s125
      %p139 = scmp.eq.s32.totalorder %s23, 7
      %p140 = por %p138, %p139
      %p142 = scmp.ne.s32.totalorder %s125, %s141
      %p143 = scmp.eq.s32.totalorder %s23, 0
      %p144 = por %p142, %p143
      %p145 = scmp.le.s32.totalorder 1, %s17
      %p146 = scmp.lt.s32.totalorder %s17, 9
      %p147 = pnand %p145, %p146
      %p148 = pneg %p147
      // Predicated region
      $region9: #{tpu_custom_call.1} parent=5 // pred_check
        _
      $region10: #{tpu_custom_call.1} parent=5 // pred_check_branch
        %150 = sbr.rel (%p147) target = $region12
      $region11: #{tpu_custom_call.1} parent=5 // pred_region
        %s151 = ssub.s32 %s17, 1
        // Predicated region
        $region13: #{tpu_custom_call.1} parent=11 // pred_check
          %p152 = pneg %p90
        $region14: #{tpu_custom_call.1} parent=11 // pred_check_branch
          %154 = sbr.rel (%p152) target = $region16
        $region15: #{tpu_custom_call.1} parent=11 // pred_region
          %s156 = ssub.s32 256, 256
          %157 = vsyncadd [#allocation5], %s156
          %s158 = sshll.u32 [#allocation6], 4
          %s159 = int_to_ptr.vmem [resolvable:$true] %s158
          %164 = dma.hbm_to_vmem [thread:$0]  %s2, 256, %s159, [#allocation5], 128, 128, 8
        $region16: #{tpu_custom_call.1} parent=11 // pred_fallthru
          _
        // Predicated region
        $region17: #{tpu_custom_call.1} parent=11 // pred_check
          %p165 = pneg %p111
        $region18: #{tpu_custom_call.1} parent=11 // pred_check_branch
          %167 = sbr.rel (%p165) target = $region20
        $region19: #{tpu_custom_call.1} parent=11 // pred_region
          %s169 = ssub.s32 256, 256
          %170 = vsyncadd [#allocation8], %s169
          %s171 = sshll.u32 [#allocation7], 4
          %s172 = int_to_ptr.vmem [resolvable:$true] %s171
          %177 = dma.hbm_to_vmem [thread:$0]  %s3, 256, %s172, [#allocation8], 128, 128, 8
        $region20: #{tpu_custom_call.1} parent=11 // pred_fallthru
          _
      $region12: #{tpu_custom_call.1} parent=5 // pred_fallthru
        _
      %p178 = scmp.lt.s32.totalorder %s17, 8
      // Predicated region
      $region21: #{tpu_custom_call.1} parent=5 // pred_check
        %p179 = pneg %p178
      $region22: #{tpu_custom_call.1} parent=5 // pred_check_branch
        %181 = sbr.rel (%p179) target = $region24
      $region23: #{tpu_custom_call.1} parent=5 // pred_region
        // Predicated region
        $region25: #{tpu_custom_call.1} parent=23 // pred_check
          %p182 = pneg %p37
        $region26: #{tpu_custom_call.1} parent=23 // pred_check_branch
          %184 = sbr.rel (%p182) target = $region28
        $region27: #{tpu_custom_call.1} parent=23 // pred_region
          %s185 = sand.u32 %s27, 1
          %s186 = scalar_lea.sflag [#allocation3], %s185
          %s187 = sand.u32 %s27, 1
          %s188 = smul.addr %s187, 16
          %s189 = scalar_lea.vmem [#allocation2], %s188
          %s191 = ssub.s32 256, 256
          %192 = vsyncadd %s186, %s191
          %s193 = smul.addr %s17, 2
          %s194 = smul.addr %s193, 128
          %s195 = scalar_lea.hbm %s0, %s194
          %s196 = sshll.u32 %s189, 4
          %s197 = int_to_ptr.vmem [resolvable:$true] %s196
          %202 = dma.hbm_to_vmem [thread:$0]  %s195, 256, %s197, %s186, 128, 128, 8
        $region28: #{tpu_custom_call.1} parent=23 // pred_fallthru
          _
        // Predicated region
        $region29: #{tpu_custom_call.1} parent=23 // pred_check
          %p203 = pneg %p63
        $region30: #{tpu_custom_call.1} parent=23 // pred_check_branch
          %205 = sbr.rel (%p203) target = $region32
        $region31: #{tpu_custom_call.1} parent=23 // pred_region
          %s206 = sand.u32 %s17, 1
          %s207 = scalar_lea.sflag [#allocation5], %s206
          %s208 = sand.u32 %s53, 1
          %s209 = smul.addr %s208, 16
          %s210 = scalar_lea.vmem [#allocation4], %s209
          %s212 = ssub.s32 256, 256
          %213 = vsyncadd %s207, %s212
          %s214 = smul.addr %s17, 2
          %s215 = smul.addr %s214, 128
          %s216 = scalar_lea.hbm %s1, %s215
          %s217 = sshll.u32 %s210, 4
          %s218 = int_to_ptr.vmem [resolvable:$true] %s217
          %223 = dma.hbm_to_vmem [thread:$0]  %s216, 256, %s218, %s207, 128, 128, 8
        $region32: #{tpu_custom_call.1} parent=23 // pred_fallthru
          _
      $region24: #{tpu_custom_call.1} parent=5 // pred_fallthru
        _
      %p224 = scmp.le.s32.totalorder 1, %s17
      %p225 = scmp.lt.s32.totalorder %s17, 9
      %p226 = pnand %p224, %p225
      %p227 = pneg %p226
      // Predicated region
      $region33: #{tpu_custom_call.1} parent=5 // pred_check
        _
      $region34: #{tpu_custom_call.1} parent=5 // pred_check_branch
        %229 = sbr.rel (%p226) target = $region36
      $region35: #{tpu_custom_call.1} parent=5 // pred_region
        %s230 = ssub.s32 %s17, 1
        %s231 = sand.u32 %s30, 1
        %s232 = scalar_lea.sflag [#allocation3], %s231
        %s233 = sand.u32 %s30, 1
        %s234 = smul.addr %s233, 16
        %s235 = scalar_lea.vmem [#allocation2], %s234
        // Predicated region
        $region37: #{tpu_custom_call.1} parent=35 // pred_check
          %p236 = pneg %p43
        $region38: #{tpu_custom_call.1} parent=35 // pred_check_branch
          %238 = sbr.rel (%p236) target = $region40
        $region39: #{tpu_custom_call.1} parent=35 // pred_region
          %239 = dma.done %s232, 256
        $region40: #{tpu_custom_call.1} parent=35 // pred_fallthru
          _
        %s240 = sand.u32 %s22, 1
        %s241 = scalar_lea.sflag [#allocation5], %s240
        %s242 = sand.u32 %s56, 1
        %s243 = smul.addr %s242, 16
        %s244 = scalar_lea.vmem [#allocation4], %s243
        // Predicated region
        $region41: #{tpu_custom_call.1} parent=35 // pred_check
          %p245 = pneg %p69
        $region42: #{tpu_custom_call.1} parent=35 // pred_check_branch
          %247 = sbr.rel (%p245) target = $region44
        $region43: #{tpu_custom_call.1} parent=35 // pred_region
          %248 = dma.done %s241, 256
        $region44: #{tpu_custom_call.1} parent=35 // pred_fallthru
          _
        // Predicated region
        $region45: #{tpu_custom_call.1} parent=35 // pred_check
          %p249 = pneg %p90
        $region46: #{tpu_custom_call.1} parent=35 // pred_check_branch
          %251 = sbr.rel (%p249) target = $region48
        $region47: #{tpu_custom_call.1} parent=35 // pred_region
          %252 = dma.done [#allocation5], 256
        $region48: #{tpu_custom_call.1} parent=35 // pred_fallthru
          _
        // Predicated region
        $region49: #{tpu_custom_call.1} parent=35 // pred_check
          %p253 = pneg %p111
        $region50: #{tpu_custom_call.1} parent=35 // pred_check_branch
          %255 = sbr.rel (%p253) target = $region52
        $region51: #{tpu_custom_call.1} parent=35 // pred_region
          %256 = dma.done [#allocation8], 256
        $region52: #{tpu_custom_call.1} parent=35 // pred_fallthru
          _
        %s257 = sand.u32 %s30, 1
        %s258 = scalar_lea.sflag [#allocation3], %s257
        %s259 = sand.u32 %s30, 1
        %s260 = smul.addr %s259, 16
        %s261 = scalar_lea.vmem [#allocation2], %s260
        %p262 = pneg %p43
        %p263 = pneg %p40
        %s264 = sand.u32 %s22, 1
        %s265 = scalar_lea.sflag [#allocation5], %s264
        %s266 = sand.u32 %s56, 1
        %s267 = smul.addr %s266, 16
        %s268 = scalar_lea.vmem [#allocation4], %s267
        %p269 = pneg %p69
        %p270 = pneg %p66
        %p271 = pneg %p90
        %p272 = pneg %p87
        %p273 = pneg %p111
        %p274 = pneg %p108
        %p275 = pneg %p137
        %p276 = pneg %p134
        %p277 = scmp.lt.s32.totalorder %s22, 7
        %s278 = scalar_select %p277, %s22, 7
        %s279 = scalar_lea.vmem %s4, %s278
        %p280 = scmp.lt.s32.totalorder %s22, 7
        %s281 = scalar_select %p280, %s22, 7
        %s282 = scalar_lea.vmem %s4, %s281
        %v283 = vld [vmem:[%s235] sm:$0xff]
        %v284 = vld [vmem:[%s235 + $0x8] sm:$0xff]
        %v285 = vld [vmem:[%s244] sm:$0xff]
        %v286 = vld [vmem:[%s244 + $0x8] sm:$0xff]
        %v287 = vld [vmem:[#allocation6] sm:$0xff]
        %v288 = vld [vmem:[#allocation6 + $0x8] sm:$0xff]
        %v289 = vld [vmem:[#allocation7] sm:$0xff]
        %v290 = vld [vmem:[#allocation7 + $0x8] sm:$0xff]
        %vm291 = vcmask 130048
        %v293 = vsel %vm291, %v287, 0
        %v296 = vsel %vm291, %v288, 0
        %298 = vmatprep.subr.mxu0 0.0
        %v299 = vand.u32 %v283, 4294901760
        %300 = vmatpush1.msra.mxu0 %v299
        %301 = vmatprep.subr.mxu0 0.0
        %v302 = vand.u32 %v284, 4294901760
        %303 = vmatpush1.msra.mxu0 %v302
        %304 = vmatprep.subr.mxu0 0.0
        %305 = vmatpush1.msra.mxu0 0.0
        %306 = vmatprep.subr.mxu0 0.0
        %307 = vmatpush1.msra.mxu0 0.0
        %308 = vmatprep.subr.mxu0 0.0
        %309 = vmatpush1.msra.mxu0 0.0
        %310 = vmatprep.subr.mxu0 0.0
        %311 = vmatpush1.msra.mxu0 0.0
        %312 = vmatprep.subr.mxu0 0.0
        %313 = vmatpush1.msra.mxu0 0.0
        %314 = vmatprep.subr.mxu0 0.0
        %315 = vmatpush1.msra.mxu0 0.0
        %316 = vmatprep.subr.mxu0 0.0
        %317 = vmatpush1.msra.mxu0 0.0
        %318 = vmatprep.subr.mxu0 0.0
        %319 = vmatpush1.msra.mxu0 0.0
        %320 = vmatprep.subr.mxu0 0.0
        %321 = vmatpush1.msra.mxu0 0.0
        %322 = vmatprep.subr.mxu0 0.0
        %323 = vmatpush1.msra.mxu0 0.0
        %324 = vmatprep.subr.mxu0 0.0
        %325 = vmatpush1.msra.mxu0 0.0
        %326 = vmatprep.subr.mxu0 0.0
        %327 = vmatpush1.msra.mxu0 0.0
        %328 = vmatprep.subr.mxu0 0.0
        %329 = vmatpush1.msra.mxu0 0.0
        %330 = vmatprep.subr.mxu0 0.0
        %331 = vmatpush1.msra.mxu0 0.0
        %332 = vmatprep.subr.mxu0 0.0
        %333 = vmatpush1.msra.mxu0 0.0
        %334 = vmatprep.subr.mxu0 0.0
        %335 = vmatpush1.msra.mxu0 0.0
        %336 = vmatprep.subr.mxu0 0.0
        %337 = vmatpush1.msra.mxu0 0.0
        %338 = vmatprep.subr.mxu0 0.0
        %339 = vmatpush1.msra.mxu0 0.0
        %340 = vmatprep.subr.mxu0 0.0
        %341 = vmatpush1.msra.mxu0 0.0
        %342 = vmatprep.subr.mxu0 0.0
        %343 = vmatpush1.msra.mxu0 0.0
        %344 = vmatprep.subr.mxu0 0.0
        %345 = vmatpush1.msra.mxu0 0.0
        %346 = vmatprep.subr.mxu0 0.0
        %347 = vmatpush1.msra.mxu0 0.0
        %348 = vmatprep.subr.mxu0 0.0
        %349 = vmatpush1.msra.mxu0 0.0
        %350 = vmatprep.subr.mxu0 0.0
        %351 = vmatpush1.msra.mxu0 0.0
        %352 = vmatprep.subr.mxu0 0.0
        %353 = vmatpush1.msra.mxu0 0.0
        %354 = vmatprep.subr.mxu0 0.0
        %355 = vmatpush1.msra.mxu0 0.0
        %356 = vmatprep.subr.mxu0 0.0
        %357 = vmatpush1.msra.mxu0 0.0
        %358 = vmatprep.subr.mxu0 0.0
        %359 = vmatpush1.msra.mxu0 0.0
        %360 = vmatprep.subr.mxu0 0.0
        %361 = vmatpush1.msra.mxu0 0.0
        %362 = vmatprep.subr.mxu0 0.0
        %363 = vmatpush1.msra.mxu0 0.0
        %364 = vmatprep.mubr.f32.mxu0 0.0
        %v365 = vand.u32 %v293, 4294901760
        %v366 = vsub.f32 %v293, %v365
        %v367 = vand.u32 %v366, 4294901760
        %v368 = vsub.f32 %v366, %v367
        %v369 = vand.u32 %v368, 4294901760
        %370 = vmatmul.mubr.f32.gmra.mrb[0].mxu0 %v369
        %v371 = vpop.f32.mrb[0].mxu0
        %v372 = vadd.f32 0.0, %v371
        %v373 = vpop.f32.mrb[0].mxu0
        %374 = vmatprep.mubr.f32.mxu0 0.0
        %v375 = vand.u32 %v296, 4294901760
        %v376 = vsub.f32 %v296, %v375
        %v377 = vand.u32 %v376, 4294901760
        %v378 = vsub.f32 %v376, %v377
        %v379 = vand.u32 %v378, 4294901760
        %380 = vmatmul.mubr.f32.gmra.mrb[0].mxu0 %v379
        %v381 = vpop.f32.mrb[0].mxu0
        %v382 = vadd.f32 0.0, %v381
        %v383 = vpop.f32.mrb[0].mxu0
        %384 = vdwg.mxu0
        %385 = vmatprep.subr.mxu0 0.0
        %v386 = vand.u32 %v283, 4294901760
        %v387 = vsub.f32 %v283, %v386
        %v388 = vand.u32 %v387, 4294901760
        %v389 = vsub.f32 %v387, %v388
        %v390 = vand.u32 %v389, 4294901760
        %391 = vmatpush1.msra.mxu0 %v390
        %392 = vmatprep.subr.mxu0 0.0
        %v393 = vand.u32 %v284, 4294901760
        %v394 = vsub.f32 %v284, %v393
        %v395 = vand.u32 %v394, 4294901760
        %v396 = vsub.f32 %v394, %v395
        %v397 = vand.u32 %v396, 4294901760
        %398 = vmatpush1.msra.mxu0 %v397
        %399 = vmatprep.subr.mxu0 0.0
        %400 = vmatpush1.msra.mxu0 0.0
        %401 = vmatprep.subr.mxu0 0.0
        %402 = vmatpush1.msra.mxu0 0.0
        %403 = vmatprep.subr.mxu0 0.0
        %404 = vmatpush1.msra.mxu0 0.0
        %405 = vmatprep.subr.mxu0 0.0
        %406 = vmatpush1.msra.mxu0 0.0
        %407 = vmatprep.subr.mxu0 0.0
        %408 = vmatpush1.msra.mxu0 0.0
        %409 = vmatprep.subr.mxu0 0.0
        %410 = vmatpush1.msra.mxu0 0.0
        %411 = vmatprep.subr.mxu0 0.0
        %412 = vmatpush1.msra.mxu0 0.0
        %413 = vmatprep.subr.mxu0 0.0
        %414 = vmatpush1.msra.mxu0 0.0
        %415 = vmatprep.subr.mxu0 0.0
        %416 = vmatpush1.msra.mxu0 0.0
        %417 = vmatprep.subr.mxu0 0.0
        %418 = vmatpush1.msra.mxu0 0.0
        %419 = vmatprep.subr.mxu0 0.0
        %420 = vmatpush1.msra.mxu0 0.0
        %421 = vmatprep.subr.mxu0 0.0
        %422 = vmatpush1.msra.mxu0 0.0
        %423 = vmatprep.subr.mxu0 0.0
        %424 = vmatpush1.msra.mxu0 0.0
        %425 = vmatprep.subr.mxu0 0.0
        %426 = vmatpush1.msra.mxu0 0.0
        %427 = vmatprep.subr.mxu0 0.0
        %428 = vmatpush1.msra.mxu0 0.0
        %429 = vmatprep.subr.mxu0 0.0
        %430 = vmatpush1.msra.mxu0 0.0
        %431 = vmatprep.subr.mxu0 0.0
        %432 = vmatpush1.msra.mxu0 0.0
        %433 = vmatprep.subr.mxu0 0.0
        %434 = vmatpush1.msra.mxu0 0.0
        %435 = vmatprep.subr.mxu0 0.0
        %436 = vmatpush1.msra.mxu0 0.0
        %437 = vmatprep.subr.mxu0 0.0
        %438 = vmatpush1.msra.mxu0 0.0
        %439 = vmatprep.subr.mxu0 0.0
        %440 = vmatpush1.msra.mxu0 0.0
        %441 = vmatprep.subr.mxu0 0.0
        %442 = vmatpush1.msra.mxu0 0.0
        %443 = vmatprep.subr.mxu0 0.0
        %444 = vmatpush1.msra.mxu0 0.0
        %445 = vmatprep.subr.mxu0 0.0
        %446 = vmatpush1.msra.mxu0 0.0
        %447 = vmatprep.subr.mxu0 0.0
        %448 = vmatpush1.msra.mxu0 0.0
        %449 = vmatprep.subr.mxu0 0.0
        %450 = vmatpush1.msra.mxu0 0.0
        %451 = vmatprep.subr.mxu0 0.0
        %452 = vmatpush1.msra.mxu0 0.0
        %453 = vmatprep.subr.mxu0 0.0
        %454 = vmatpush1.msra.mxu0 0.0
        %455 = vmatprep.subr.mxu0 0.0
        %456 = vmatpush1.msra.mxu0 0.0
        %457 = vmatprep.subr.mxu0 0.0
        %458 = vmatpush1.msra.mxu0 0.0
        %459 = vmatprep.mubr.f32.mxu0 0.0
        %v460 = vand.u32 %v293, 4294901760
        %461 = vmatmul.mubr.f32.gmra.mrb[0].mxu0 %v460
        %v462 = vpop.f32.mrb[0].mxu0
        %v463 = vadd.f32 %v372, %v462
        %v464 = vpop.f32.mrb[0].mxu0
        %465 = vmatprep.mubr.f32.mxu0 0.0
        %v466 = vand.u32 %v296, 4294901760
        %467 = vmatmul.mubr.f32.gmra.mrb[0].mxu0 %v466
        %v468 = vpop.f32.mrb[0].mxu0
        %v469 = vadd.f32 %v382, %v468
        %v470 = vpop.f32.mrb[0].mxu0
        %471 = vdwg.mxu0
        %472 = vmatprep.subr.mxu0 0.0
        %v473 = vand.u32 %v283, 4294901760
        %v474 = vsub.f32 %v283, %v473
        %475 = vmatpush1.msra.mxu0 %v474
        %476 = vmatprep.subr.mxu0 0.0
        %v477 = vand.u32 %v284, 4294901760
        %v478 = vsub.f32 %v284, %v477
        %479 = vmatpush1.msra.mxu0 %v478
        %480 = vmatprep.subr.mxu0 0.0
        %481 = vmatpush1.msra.mxu0 0.0
        %482 = vmatprep.subr.mxu0 0.0
        %483 = vmatpush1.msra.mxu0 0.0
        %484 = vmatprep.subr.mxu0 0.0
        %485 = vmatpush1.msra.mxu0 0.0
        %486 = vmatprep.subr.mxu0 0.0
        %487 = vmatpush1.msra.mxu0 0.0
        %488 = vmatprep.subr.mxu0 0.0
        %489 = vmatpush1.msra.mxu0 0.0
        %490 = vmatprep.subr.mxu0 0.0
        %491 = vmatpush1.msra.mxu0 0.0
        %492 = vmatprep.subr.mxu0 0.0
        %493 = vmatpush1.msra.mxu0 0.0
        %494 = vmatprep.subr.mxu0 0.0
        %495 = vmatpush1.msra.mxu0 0.0
        %496 = vmatprep.subr.mxu0 0.0
        %497 = vmatpush1.msra.mxu0 0.0
        %498 = vmatprep.subr.mxu0 0.0
        %499 = vmatpush1.msra.mxu0 0.0
        %500 = vmatprep.subr.mxu0 0.0
        %501 = vmatpush1.msra.mxu0 0.0
        %502 = vmatprep.subr.mxu0 0.0
        %503 = vmatpush1.msra.mxu0 0.0
        %504 = vmatprep.subr.mxu0 0.0
        %505 = vmatpush1.msra.mxu0 0.0
        %506 = vmatprep.subr.mxu0 0.0
        %507 = vmatpush1.msra.mxu0 0.0
        %508 = vmatprep.subr.mxu0 0.0
        %509 = vmatpush1.msra.mxu0 0.0
        %510 = vmatprep.subr.mxu0 0.0
        %511 = vmatpush1.msra.mxu0 0.0
        %512 = vmatprep.subr.mxu0 0.0
        %513 = vmatpush1.msra.mxu0 0.0
        %514 = vmatprep.subr.mxu0 0.0
        %515 = vmatpush1.msra.mxu0 0.0
        %516 = vmatprep.subr.mxu0 0.0
        %517 = vmatpush1.msra.mxu0 0.0
        %518 = vmatprep.subr.mxu0 0.0
        %519 = vmatpush1.msra.mxu0 0.0
        %520 = vmatprep.subr.mxu0 0.0
        %521 = vmatpush1.msra.mxu0 0.0
        %522 = vmatprep.subr.mxu0 0.0
        %523 = vmatpush1.msra.mxu0 0.0
        %524 = vmatprep.subr.mxu0 0.0
        %525 = vmatpush1.msra.mxu0 0.0
        %526 = vmatprep.subr.mxu0 0.0
        %527 = vmatpush1.msra.mxu0 0.0
        %528 = vmatprep.subr.mxu0 0.0
        %529 = vmatpush1.msra.mxu0 0.0
        %530 = vmatprep.subr.mxu0 0.0
        %531 = vmatpush1.msra.mxu0 0.0
        %532 = vmatprep.subr.mxu0 0.0
        %533 = vmatpush1.msra.mxu0 0.0
        %534 = vmatprep.subr.mxu0 0.0
        %535 = vmatpush1.msra.mxu0 0.0
        %536 = vmatprep.subr.mxu0 0.0
        %537 = vmatpush1.msra.mxu0 0.0
        %538 = vmatprep.subr.mxu0 0.0
        %539 = vmatpush1.msra.mxu0 0.0
        %540 = vmatprep.mubr.f32.mxu0 0.0
        %v541 = vand.u32 %v293, 4294901760
        %v542 = vsub.f32 %v293, %v541
        %543 = vmatmul.mubr.f32.gmra.mrb[0].mxu0 %v542
        %v544 = vpop.f32.mrb[0].mxu0
        %v545 = vadd.f32 %v463, %v544
        %v546 = vpop.f32.mrb[0].mxu0
        %547 = vmatprep.mubr.f32.mxu0 0.0
        %v548 = vand.u32 %v296, 4294901760
        %v549 = vsub.f32 %v296, %v548
        %550 = vmatmul.mubr.f32.gmra.mrb[0].mxu0 %v549
        %v551 = vpop.f32.mrb[0].mxu0
        %v552 = vadd.f32 %v469, %v551
        %v553 = vpop.f32.mrb[0].mxu0
        %554 = vdwg.mxu0
        %555 = vmatprep.subr.mxu0 0.0
        %v556 = vand.u32 %v283, 4294901760
        %557 = vmatpush1.msra.mxu0 %v556
        %558 = vmatprep.subr.mxu0 0.0
        %v559 = vand.u32 %v284, 4294901760
        %560 = vmatpush1.msra.mxu0 %v559
        %561 = vmatprep.subr.mxu0 0.0
        %562 = vmatpush1.msra.mxu0 0.0
        %563 = vmatprep.subr.mxu0 0.0
        %564 = vmatpush1.msra.mxu0 0.0
        %565 = vmatprep.subr.mxu0 0.0
        %566 = vmatpush1.msra.mxu0 0.0
        %567 = vmatprep.subr.mxu0 0.0
        %568 = vmatpush1.msra.mxu0 0.0
        %569 = vmatprep.subr.mxu0 0.0
        %570 = vmatpush1.msra.mxu0 0.0
        %571 = vmatprep.subr.mxu0 0.0
        %572 = vmatpush1.msra.mxu0 0.0
        %573 = vmatprep.subr.mxu0 0.0
        %574 = vmatpush1.msra.mxu0 0.0
        %575 = vmatprep.subr.mxu0 0.0
        %576 = vmatpush1.msra.mxu0 0.0
        %577 = vmatprep.subr.mxu0 0.0
        %578 = vmatpush1.msra.mxu0 0.0
        %579 = vmatprep.subr.mxu0 0.0
        %580 = vmatpush1.msra.mxu0 0.0
        %581 = vmatprep.subr.mxu0 0.0
        %582 = vmatpush1.msra.mxu0 0.0
        %583 = vmatprep.subr.mxu0 0.0
        %584 = vmatpush1.msra.mxu0 0.0
        %585 = vmatprep.subr.mxu0 0.0
        %586 = vmatpush1.msra.mxu0 0.0
        %587 = vmatprep.subr.mxu0 0.0
        %588 = vmatpush1.msra.mxu0 0.0
        %589 = vmatprep.subr.mxu0 0.0
        %590 = vmatpush1.msra.mxu0 0.0
        %591 = vmatprep.subr.mxu0 0.0
        %592 = vmatpush1.msra.mxu0 0.0
        %593 = vmatprep.subr.mxu0 0.0
        %594 = vmatpush1.msra.mxu0 0.0
        %595 = vmatprep.subr.mxu0 0.0
        %596 = vmatpush1.msra.mxu0 0.0
        %597 = vmatprep.subr.mxu0 0.0
        %598 = vmatpush1.msra.mxu0 0.0
        %599 = vmatprep.subr.mxu0 0.0
        %600 = vmatpush1.msra.mxu0 0.0
        %601 = vmatprep.subr.mxu0 0.0
        %602 = vmatpush1.msra.mxu0 0.0
        %603 = vmatprep.subr.mxu0 0.0
        %604 = vmatpush1.msra.mxu0 0.0
        %605 = vmatprep.subr.mxu0 0.0
        %606 = vmatpush1.msra.mxu0 0.0
        %607 = vmatprep.subr.mxu0 0.0
        %608 = vmatpush1.msra.mxu0 0.0
        %609 = vmatprep.subr.mxu0 0.0
        %610 = vmatpush1.msra.mxu0 0.0
        %611 = vmatprep.subr.mxu0 0.0
        %612 = vmatpush1.msra.mxu0 0.0
        %613 = vmatprep.subr.mxu0 0.0
        %614 = vmatpush1.msra.mxu0 0.0
        %615 = vmatprep.subr.mxu0 0.0
        %616 = vmatpush1.msra.mxu0 0.0
        %617 = vmatprep.subr.mxu0 0.0
        %618 = vmatpush1.msra.mxu0 0.0
        %619 = vmatprep.subr.mxu0 0.0
        %620 = vmatpush1.msra.mxu0 0.0
        %621 = vmatprep.mubr.f32.mxu0 0.0
        %v622 = vand.u32 %v293, 4294901760
        %v623 = vsub.f32 %v293, %v622
        %v624 = vand.u32 %v623, 4294901760
        %625 = vmatmul.mubr.f32.gmra.mrb[0].mxu0 %v624
        %v626 = vpop.f32.mrb[0].mxu0
        %v627 = vadd.f32 %v545, %v626
        %v628 = vpop.f32.mrb[0].mxu0
        %629 = vmatprep.mubr.f32.mxu0 0.0
        %v630 = vand.u32 %v296, 4294901760
        %v631 = vsub.f32 %v296, %v630
        %v632 = vand.u32 %v631, 4294901760
        %633 = vmatmul.mubr.f32.gmra.mrb[0].mxu0 %v632
        %v634 = vpop.f32.mrb[0].mxu0
        %v635 = vadd.f32 %v552, %v634
        %v636 = vpop.f32.mrb[0].mxu0
        %637 = vdwg.mxu0
        %638 = vmatprep.subr.mxu0 0.0
        %v639 = vand.u32 %v283, 4294901760
        %v640 = vsub.f32 %v283, %v639
        %v641 = vand.u32 %v640, 4294901760
        %642 = vmatpush1.msra.mxu0 %v641
        %643 = vmatprep.subr.mxu0 0.0
        %v644 = vand.u32 %v284, 4294901760
        %v645 = vsub.f32 %v284, %v644
        %v646 = vand.u32 %v645, 4294901760
        %647 = vmatpush1.msra.mxu0 %v646
        %648 = vmatprep.subr.mxu0 0.0
        %649 = vmatpush1.msra.mxu0 0.0
        %650 = vmatprep.subr.mxu0 0.0
        %651 = vmatpush1.msra.mxu0 0.0
        %652 = vmatprep.subr.mxu0 0.0
        %653 = vmatpush1.msra.mxu0 0.0
        %654 = vmatprep.subr.mxu0 0.0
        %655 = vmatpush1.msra.mxu0 0.0
        %656 = vmatprep.subr.mxu0 0.0
        %657 = vmatpush1.msra.mxu0 0.0
        %658 = vmatprep.subr.mxu0 0.0
        %659 = vmatpush1.msra.mxu0 0.0
        %660 = vmatprep.subr.mxu0 0.0
        %661 = vmatpush1.msra.mxu0 0.0
        %662 = vmatprep.subr.mxu0 0.0
        %663 = vmatpush1.msra.mxu0 0.0
        %664 = vmatprep.subr.mxu0 0.0
        %665 = vmatpush1.msra.mxu0 0.0
        %666 = vmatprep.subr.mxu0 0.0
        %667 = vmatpush1.msra.mxu0 0.0
        %668 = vmatprep.subr.mxu0 0.0
        %669 = vmatpush1.msra.mxu0 0.0
        %670 = vmatprep.subr.mxu0 0.0
        %671 = vmatpush1.msra.mxu0 0.0
        %672 = vmatprep.subr.mxu0 0.0
        %673 = vmatpush1.msra.mxu0 0.0
        %674 = vmatprep.subr.mxu0 0.0
        %675 = vmatpush1.msra.mxu0 0.0
        %676 = vmatprep.subr.mxu0 0.0
        %677 = vmatpush1.msra.mxu0 0.0
        %678 = vmatprep.subr.mxu0 0.0
        %679 = vmatpush1.msra.mxu0 0.0
        %680 = vmatprep.subr.mxu0 0.0
        %681 = vmatpush1.msra.mxu0 0.0
        %682 = vmatprep.subr.mxu0 0.0
        %683 = vmatpush1.msra.mxu0 0.0
        %684 = vmatprep.subr.mxu0 0.0
        %685 = vmatpush1.msra.mxu0 0.0
        %686 = vmatprep.subr.mxu0 0.0
        %687 = vmatpush1.msra.mxu0 0.0
        %688 = vmatprep.subr.mxu0 0.0
        %689 = vmatpush1.msra.mxu0 0.0
        %690 = vmatprep.subr.mxu0 0.0
        %691 = vmatpush1.msra.mxu0 0.0
        %692 = vmatprep.subr.mxu0 0.0
        %693 = vmatpush1.msra.mxu0 0.0
        %694 = vmatprep.subr.mxu0 0.0
        %695 = vmatpush1.msra.mxu0 0.0
        %696 = vmatprep.subr.mxu0 0.0
        %697 = vmatpush1.msra.mxu0 0.0
        %698 = vmatprep.subr.mxu0 0.0
        %699 = vmatpush1.msra.mxu0 0.0
        %700 = vmatprep.subr.mxu0 0.0
        %701 = vmatpush1.msra.mxu0 0.0
        %702 = vmatprep.subr.mxu0 0.0
        %703 = vmatpush1.msra.mxu0 0.0
        %704 = vmatprep.subr.mxu0 0.0
        %705 = vmatpush1.msra.mxu0 0.0
        %706 = vmatprep.subr.mxu0 0.0
        %707 = vmatpush1.msra.mxu0 0.0
        %708 = vmatprep.mubr.f32.mxu0 0.0
        %v709 = vand.u32 %v293, 4294901760
        %710 = vmatmul.mubr.f32.gmra.mrb[0].mxu0 %v709
        %v711 = vpop.f32.mrb[0].mxu0
        %v712 = vadd.f32 %v627, %v711
        %v713 = vpop.f32.mrb[0].mxu0
        %714 = vmatprep.mubr.f32.mxu0 0.0
        %v715 = vand.u32 %v296, 4294901760
        %716 = vmatmul.mubr.f32.gmra.mrb[0].mxu0 %v715
        %v717 = vpop.f32.mrb[0].mxu0
        %v718 = vadd.f32 %v635, %v717
        %v719 = vpop.f32.mrb[0].mxu0
        %720 = vdwg.mxu0
        %721 = vmatprep.subr.mxu0 0.0
        %v722 = vand.u32 %v283, 4294901760
        %723 = vmatpush1.msra.mxu0 %v722
        %724 = vmatprep.subr.mxu0 0.0
        %v725 = vand.u32 %v284, 4294901760
        %726 = vmatpush1.msra.mxu0 %v725
        %727 = vmatprep.subr.mxu0 0.0
        %728 = vmatpush1.msra.mxu0 0.0
        %729 = vmatprep.subr.mxu0 0.0
        %730 = vmatpush1.msra.mxu0 0.0
        %731 = vmatprep.subr.mxu0 0.0
        %732 = vmatpush1.msra.mxu0 0.0
        %733 = vmatprep.subr.mxu0 0.0
        %734 = vmatpush1.msra.mxu0 0.0
        %735 = vmatprep.subr.mxu0 0.0
        %736 = vmatpush1.msra.mxu0 0.0
        %737 = vmatprep.subr.mxu0 0.0
        %738 = vmatpush1.msra.mxu0 0.0
        %739 = vmatprep.subr.mxu0 0.0
        %740 = vmatpush1.msra.mxu0 0.0
        %741 = vmatprep.subr.mxu0 0.0
        %742 = vmatpush1.msra.mxu0 0.0
        %743 = vmatprep.subr.mxu0 0.0
        %744 = vmatpush1.msra.mxu0 0.0
        %745 = vmatprep.subr.mxu0 0.0
        %746 = vmatpush1.msra.mxu0 0.0
        %747 = vmatprep.subr.mxu0 0.0
        %748 = vmatpush1.msra.mxu0 0.0
        %749 = vmatprep.subr.mxu0 0.0
        %750 = vmatpush1.msra.mxu0 0.0
        %751 = vmatprep.subr.mxu0 0.0
        %752 = vmatpush1.msra.mxu0 0.0
        %753 = vmatprep.subr.mxu0 0.0
        %754 = vmatpush1.msra.mxu0 0.0
        %755 = vmatprep.subr.mxu0 0.0
        %756 = vmatpush1.msra.mxu0 0.0
        %757 = vmatprep.subr.mxu0 0.0
        %758 = vmatpush1.msra.mxu0 0.0
        %759 = vmatprep.subr.mxu0 0.0
        %760 = vmatpush1.msra.mxu0 0.0
        %761 = vmatprep.subr.mxu0 0.0
        %762 = vmatpush1.msra.mxu0 0.0
        %763 = vmatprep.subr.mxu0 0.0
        %764 = vmatpush1.msra.mxu0 0.0
        %765 = vmatprep.subr.mxu0 0.0
        %766 = vmatpush1.msra.mxu0 0.0
        %767 = vmatprep.subr.mxu0 0.0
        %768 = vmatpush1.msra.mxu0 0.0
        %769 = vmatprep.subr.mxu0 0.0
        %770 = vmatpush1.msra.mxu0 0.0
        %771 = vmatprep.subr.mxu0 0.0
        %772 = vmatpush1.msra.mxu0 0.0
        %773 = vmatprep.subr.mxu0 0.0
        %774 = vmatpush1.msra.mxu0 0.0
        %775 = vmatprep.subr.mxu0 0.0
        %776 = vmatpush1.msra.mxu0 0.0
        %777 = vmatprep.subr.mxu0 0.0
        %778 = vmatpush1.msra.mxu0 0.0
        %779 = vmatprep.subr.mxu0 0.0
        %780 = vmatpush1.msra.mxu0 0.0
        %781 = vmatprep.subr.mxu0 0.0
        %782 = vmatpush1.msra.mxu0 0.0
        %783 = vmatprep.subr.mxu0 0.0
        %784 = vmatpush1.msra.mxu0 0.0
        %785 = vmatprep.subr.mxu0 0.0
        %786 = vmatpush1.msra.mxu0 0.0
        %787 = vmatprep.mubr.f32.mxu0 0.0
        %v788 = vand.u32 %v293, 4294901760
        %789 = vmatmul.mubr.f32.gmra.mrb[0].mxu0 %v788
        %v790 = vpop.f32.mrb[0].mxu0
        %v791 = vadd.f32 %v712, %v790
        %v792 = vpop.f32.mrb[0].mxu0
        %793 = vmatprep.mubr.f32.mxu0 0.0
        %v794 = vand.u32 %v296, 4294901760
        %795 = vmatmul.mubr.f32.gmra.mrb[0].mxu0 %v794
        %v796 = vpop.f32.mrb[0].mxu0
        %v797 = vadd.f32 %v718, %v796
        %v798 = vpop.f32.mrb[0].mxu0
        %799 = vdwg.mxu0
        %v801 = vsel %vm291, %v791, 0
        %v804 = vsel %vm291, %v797, 0
        %806 = vmatprep.subr.mxu0 0.0
        %v807 = vand.u32 %v289, 4294901760
        %808 = vmatpush1.msra.mxu0 %v807
        %809 = vmatprep.subr.mxu0 0.0
        %v810 = vand.u32 %v290, 4294901760
        %811 = vmatpush1.msra.mxu0 %v810
        %812 = vmatprep.subr.mxu0 0.0
        %813 = vmatpush1.msra.mxu0 0.0
        %814 = vmatprep.subr.mxu0 0.0
        %815 = vmatpush1.msra.mxu0 0.0
        %816 = vmatprep.subr.mxu0 0.0
        %817 = vmatpush1.msra.mxu0 0.0
        %818 = vmatprep.subr.mxu0 0.0
        %819 = vmatpush1.msra.mxu0 0.0
        %820 = vmatprep.subr.mxu0 0.0
        %821 = vmatpush1.msra.mxu0 0.0
        %822 = vmatprep.subr.mxu0 0.0
        %823 = vmatpush1.msra.mxu0 0.0
        %824 = vmatprep.subr.mxu0 0.0
        %825 = vmatpush1.msra.mxu0 0.0
        %826 = vmatprep.subr.mxu0 0.0
        %827 = vmatpush1.msra.mxu0 0.0
        %828 = vmatprep.subr.mxu0 0.0
        %829 = vmatpush1.msra.mxu0 0.0
        %830 = vmatprep.subr.mxu0 0.0
        %831 = vmatpush1.msra.mxu0 0.0
        %832 = vmatprep.subr.mxu0 0.0
        %833 = vmatpush1.msra.mxu0 0.0
        %834 = vmatprep.subr.mxu0 0.0
        %835 = vmatpush1.msra.mxu0 0.0
        %836 = vmatprep.subr.mxu0 0.0
        %837 = vmatpush1.msra.mxu0 0.0
        %838 = vmatprep.subr.mxu0 0.0
        %839 = vmatpush1.msra.mxu0 0.0
        %840 = vmatprep.subr.mxu0 0.0
        %841 = vmatpush1.msra.mxu0 0.0
        %842 = vmatprep.subr.mxu0 0.0
        %843 = vmatpush1.msra.mxu0 0.0
        %844 = vmatprep.subr.mxu0 0.0
        %845 = vmatpush1.msra.mxu0 0.0
        %846 = vmatprep.subr.mxu0 0.0
        %847 = vmatpush1.msra.mxu0 0.0
        %848 = vmatprep.subr.mxu0 0.0
        %849 = vmatpush1.msra.mxu0 0.0
        %850 = vmatprep.subr.mxu0 0.0
        %851 = vmatpush1.msra.mxu0 0.0
        %852 = vmatprep.subr.mxu0 0.0
        %853 = vmatpush1.msra.mxu0 0.0
        %854 = vmatprep.subr.mxu0 0.0
        %855 = vmatpush1.msra.mxu0 0.0
        %856 = vmatprep.subr.mxu0 0.0
        %857 = vmatpush1.msra.mxu0 0.0
        %858 = vmatprep.subr.mxu0 0.0
        %859 = vmatpush1.msra.mxu0 0.0
        %860 = vmatprep.subr.mxu0 0.0
        %861 = vmatpush1.msra.mxu0 0.0
        %862 = vmatprep.subr.mxu0 0.0
        %863 = vmatpush1.msra.mxu0 0.0
        %864 = vmatprep.subr.mxu0 0.0
        %865 = vmatpush1.msra.mxu0 0.0
        %866 = vmatprep.subr.mxu0 0.0
        %867 = vmatpush1.msra.mxu0 0.0
        %868 = vmatprep.subr.mxu0 0.0
        %869 = vmatpush1.msra.mxu0 0.0
        %870 = vmatprep.subr.mxu0 0.0
        %871 = vmatpush1.msra.mxu0 0.0
        %872 = vmatprep.mubr.f32.mxu0 0.0
        %v873 = vand.u32 %v801, 4294901760
        %v874 = vsub.f32 %v801, %v873
        %v875 = vand.u32 %v874, 4294901760
        %v876 = vsub.f32 %v874, %v875
        %v877 = vand.u32 %v876, 4294901760
        %878 = vmatmul.mubr.f32.gmra.mrb[0].mxu0 %v877
        %v879 = vpop.f32.mrb[0].mxu0
        %v880 = vadd.f32 0.0, %v879
        %v881 = vpop.f32.mrb[0].mxu0
        %882 = vmatprep.mubr.f32.mxu0 0.0
        %v883 = vand.u32 %v804, 4294901760
        %v884 = vsub.f32 %v804, %v883
        %v885 = vand.u32 %v884, 4294901760
        %v886 = vsub.f32 %v884, %v885
        %v887 = vand.u32 %v886, 4294901760
        %888 = vmatmul.mubr.f32.gmra.mrb[0].mxu0 %v887
        %v889 = vpop.f32.mrb[0].mxu0
        %v890 = vadd.f32 0.0, %v889
        %v891 = vpop.f32.mrb[0].mxu0
        %892 = vdwg.mxu0
        %893 = vmatprep.subr.mxu0 0.0
        %v894 = vand.u32 %v289, 4294901760
        %v895 = vsub.f32 %v289, %v894
        %v896 = vand.u32 %v895, 4294901760
        %v897 = vsub.f32 %v895, %v896
        %v898 = vand.u32 %v897, 4294901760
        %899 = vmatpush1.msra.mxu0 %v898
        %900 = vmatprep.subr.mxu0 0.0
        %v901 = vand.u32 %v290, 4294901760
        %v902 = vsub.f32 %v290, %v901
        %v903 = vand.u32 %v902, 4294901760
        %v904 = vsub.f32 %v902, %v903
        %v905 = vand.u32 %v904, 4294901760
        %906 = vmatpush1.msra.mxu0 %v905
        %907 = vmatprep.subr.mxu0 0.0
        %908 = vmatpush1.msra.mxu0 0.0
        %909 = vmatprep.subr.mxu0 0.0
        %910 = vmatpush1.msra.mxu0 0.0
        %911 = vmatprep.subr.mxu0 0.0
        %912 = vmatpush1.msra.mxu0 0.0
        %913 = vmatprep.subr.mxu0 0.0
        %914 = vmatpush1.msra.mxu0 0.0
        %915 = vmatprep.subr.mxu0 0.0
        %916 = vmatpush1.msra.mxu0 0.0
        %917 = vmatprep.subr.mxu0 0.0
        %918 = vmatpush1.msra.mxu0 0.0
        %919 = vmatprep.subr.mxu0 0.0
        %920 = vmatpush1.msra.mxu0 0.0
        %921 = vmatprep.subr.mxu0 0.0
        %922 = vmatpush1.msra.mxu0 0.0
        %923 = vmatprep.subr.mxu0 0.0
        %924 = vmatpush1.msra.mxu0 0.0
        %925 = vmatprep.subr.mxu0 0.0
        %926 = vmatpush1.msra.mxu0 0.0
        %927 = vmatprep.subr.mxu0 0.0
        %928 = vmatpush1.msra.mxu0 0.0
        %929 = vmatprep.subr.mxu0 0.0
        %930 = vmatpush1.msra.mxu0 0.0
        %931 = vmatprep.subr.mxu0 0.0
        %932 = vmatpush1.msra.mxu0 0.0
        %933 = vmatprep.subr.mxu0 0.0
        %934 = vmatpush1.msra.mxu0 0.0
        %935 = vmatprep.subr.mxu0 0.0
        %936 = vmatpush1.msra.mxu0 0.0
        %937 = vmatprep.subr.mxu0 0.0
        %938 = vmatpush1.msra.mxu0 0.0
        %939 = vmatprep.subr.mxu0 0.0
        %940 = vmatpush1.msra.mxu0 0.0
        %941 = vmatprep.subr.mxu0 0.0
        %942 = vmatpush1.msra.mxu0 0.0
        %943 = vmatprep.subr.mxu0 0.0
        %944 = vmatpush1.msra.mxu0 0.0
        %945 = vmatprep.subr.mxu0 0.0
        %946 = vmatpush1.msra.mxu0 0.0
        %947 = vmatprep.subr.mxu0 0.0
        %948 = vmatpush1.msra.mxu0 0.0
        %949 = vmatprep.subr.mxu0 0.0
        %950 = vmatpush1.msra.mxu0 0.0
        %951 = vmatprep.subr.mxu0 0.0
        %952 = vmatpush1.msra.mxu0 0.0
        %953 = vmatprep.subr.mxu0 0.0
        %954 = vmatpush1.msra.mxu0 0.0
        %955 = vmatprep.subr.mxu0 0.0
        %956 = vmatpush1.msra.mxu0 0.0
        %957 = vmatprep.subr.mxu0 0.0
        %958 = vmatpush1.msra.mxu0 0.0
        %959 = vmatprep.subr.mxu0 0.0
        %960 = vmatpush1.msra.mxu0 0.0
        %961 = vmatprep.subr.mxu0 0.0
        %962 = vmatpush1.msra.mxu0 0.0
        %963 = vmatprep.subr.mxu0 0.0
        %964 = vmatpush1.msra.mxu0 0.0
        %965 = vmatprep.subr.mxu0 0.0
        %966 = vmatpush1.msra.mxu0 0.0
        %967 = vmatprep.mubr.f32.mxu0 0.0
        %v968 = vand.u32 %v801, 4294901760
        %969 = vmatmul.mubr.f32.gmra.mrb[0].mxu0 %v968
        %v970 = vpop.f32.mrb[0].mxu0
        %v971 = vadd.f32 %v880, %v970
        %v972 = vpop.f32.mrb[0].mxu0
        %973 = vmatprep.mubr.f32.mxu0 0.0
        %v974 = vand.u32 %v804, 4294901760
        %975 = vmatmul.mubr.f32.gmra.mrb[0].mxu0 %v974
        %v976 = vpop.f32.mrb[0].mxu0
        %v977 = vadd.f32 %v890, %v976
        %v978 = vpop.f32.mrb[0].mxu0
        %979 = vdwg.mxu0
        %980 = vmatprep.subr.mxu0 0.0
        %v981 = vand.u32 %v289, 4294901760
        %v982 = vsub.f32 %v289, %v981
        %983 = vmatpush1.msra.mxu0 %v982
        %984 = vmatprep.subr.mxu0 0.0
        %v985 = vand.u32 %v290, 4294901760
        %v986 = vsub.f32 %v290, %v985
        %987 = vmatpush1.msra.mxu0 %v986
        %988 = vmatprep.subr.mxu0 0.0
        %989 = vmatpush1.msra.mxu0 0.0
        %990 = vmatprep.subr.mxu0 0.0
        %991 = vmatpush1.msra.mxu0 0.0
        %992 = vmatprep.subr.mxu0 0.0
        %993 = vmatpush1.msra.mxu0 0.0
        %994 = vmatprep.subr.mxu0 0.0
        %995 = vmatpush1.msra.mxu0 0.0
        %996 = vmatprep.subr.mxu0 0.0
        %997 = vmatpush1.msra.mxu0 0.0
        %998 = vmatprep.subr.mxu0 0.0
        %999 = vmatpush1.msra.mxu0 0.0
        %1000 = vmatprep.subr.mxu0 0.0
        %1001 = vmatpush1.msra.mxu0 0.0
        %1002 = vmatprep.subr.mxu0 0.0
        %1003 = vmatpush1.msra.mxu0 0.0
        %1004 = vmatprep.subr.mxu0 0.0
        %1005 = vmatpush1.msra.mxu0 0.0
        %1006 = vmatprep.subr.mxu0 0.0
        %1007 = vmatpush1.msra.mxu0 0.0
        %1008 = vmatprep.subr.mxu0 0.0
        %1009 = vmatpush1.msra.mxu0 0.0
        %1010 = vmatprep.subr.mxu0 0.0
        %1011 = vmatpush1.msra.mxu0 0.0
        %1012 = vmatprep.subr.mxu0 0.0
        %1013 = vmatpush1.msra.mxu0 0.0
        %1014 = vmatprep.subr.mxu0 0.0
        %1015 = vmatpush1.msra.mxu0 0.0
        %1016 = vmatprep.subr.mxu0 0.0
        %1017 = vmatpush1.msra.mxu0 0.0
        %1018 = vmatprep.subr.mxu0 0.0
        %1019 = vmatpush1.msra.mxu0 0.0
        %1020 = vmatprep.subr.mxu0 0.0
        %1021 = vmatpush1.msra.mxu0 0.0
        %1022 = vmatprep.subr.mxu0 0.0
        %1023 = vmatpush1.msra.mxu0 0.0
        %1024 = vmatprep.subr.mxu0 0.0
        %1025 = vmatpush1.msra.mxu0 0.0
        %1026 = vmatprep.subr.mxu0 0.0
        %1027 = vmatpush1.msra.mxu0 0.0
        %1028 = vmatprep.subr.mxu0 0.0
        %1029 = vmatpush1.msra.mxu0 0.0
        %1030 = vmatprep.subr.mxu0 0.0
        %1031 = vmatpush1.msra.mxu0 0.0
        %1032 = vmatprep.subr.mxu0 0.0
        %1033 = vmatpush1.msra.mxu0 0.0
        %1034 = vmatprep.subr.mxu0 0.0
        %1035 = vmatpush1.msra.mxu0 0.0
        %1036 = vmatprep.subr.mxu0 0.0
        %1037 = vmatpush1.msra.mxu0 0.0
        %1038 = vmatprep.subr.mxu0 0.0
        %1039 = vmatpush1.msra.mxu0 0.0
        %1040 = vmatprep.subr.mxu0 0.0
        %1041 = vmatpush1.msra.mxu0 0.0
        %1042 = vmatprep.subr.mxu0 0.0
        %1043 = vmatpush1.msra.mxu0 0.0
        %1044 = vmatprep.subr.mxu0 0.0
        %1045 = vmatpush1.msra.mxu0 0.0
        %1046 = vmatprep.subr.mxu0 0.0
        %1047 = vmatpush1.msra.mxu0 0.0
        %1048 = vmatprep.mubr.f32.mxu0 0.0
        %v1049 = vand.u32 %v801, 4294901760
        %v1050 = vsub.f32 %v801, %v1049
        %1051 = vmatmul.mubr.f32.gmra.mrb[0].mxu0 %v1050
        %v1052 = vpop.f32.mrb[0].mxu0
        %v1053 = vadd.f32 %v971, %v1052
        %v1054 = vpop.f32.mrb[0].mxu0
        %1055 = vmatprep.mubr.f32.mxu0 0.0
        %v1056 = vand.u32 %v804, 4294901760
        %v1057 = vsub.f32 %v804, %v1056
        %1058 = vmatmul.mubr.f32.gmra.mrb[0].mxu0 %v1057
        %v1059 = vpop.f32.mrb[0].mxu0
        %v1060 = vadd.f32 %v977, %v1059
        %v1061 = vpop.f32.mrb[0].mxu0
        %1062 = vdwg.mxu0
        %1063 = vmatprep.subr.mxu0 0.0
        %v1064 = vand.u32 %v289, 4294901760
        %1065 = vmatpush1.msra.mxu0 %v1064
        %1066 = vmatprep.subr.mxu0 0.0
        %v1067 = vand.u32 %v290, 4294901760
        %1068 = vmatpush1.msra.mxu0 %v1067
        %1069 = vmatprep.subr.mxu0 0.0
        %1070 = vmatpush1.msra.mxu0 0.0
        %1071 = vmatprep.subr.mxu0 0.0
        %1072 = vmatpush1.msra.mxu0 0.0
        %1073 = vmatprep.subr.mxu0 0.0
        %1074 = vmatpush1.msra.mxu0 0.0
        %1075 = vmatprep.subr.mxu0 0.0
        %1076 = vmatpush1.msra.mxu0 0.0
        %1077 = vmatprep.subr.mxu0 0.0
        %1078 = vmatpush1.msra.mxu0 0.0
        %1079 = vmatprep.subr.mxu0 0.0
        %1080 = vmatpush1.msra.mxu0 0.0
        %1081 = vmatprep.subr.mxu0 0.0
        %1082 = vmatpush1.msra.mxu0 0.0
        %1083 = vmatprep.subr.mxu0 0.0
        %1084 = vmatpush1.msra.mxu0 0.0
        %1085 = vmatprep.subr.mxu0 0.0
        %1086 = vmatpush1.msra.mxu0 0.0
        %1087 = vmatprep.subr.mxu0 0.0
        %1088 = vmatpush1.msra.mxu0 0.0
        %1089 = vmatprep.subr.mxu0 0.0
        %1090 = vmatpush1.msra.mxu0 0.0
        %1091 = vmatprep.subr.mxu0 0.0
        %1092 = vmatpush1.msra.mxu0 0.0
        %1093 = vmatprep.subr.mxu0 0.0
        %1094 = vmatpush1.msra.mxu0 0.0
        %1095 = vmatprep.subr.mxu0 0.0
        %1096 = vmatpush1.msra.mxu0 0.0
        %1097 = vmatprep.subr.mxu0 0.0
        %1098 = vmatpush1.msra.mxu0 0.0
        %1099 = vmatprep.subr.mxu0 0.0
        %1100 = vmatpush1.msra.mxu0 0.0
        %1101 = vmatprep.subr.mxu0 0.0
        %1102 = vmatpush1.msra.mxu0 0.0
        %1103 = vmatprep.subr.mxu0 0.0
        %1104 = vmatpush1.msra.mxu0 0.0
        %1105 = vmatprep.subr.mxu0 0.0
        %1106 = vmatpush1.msra.mxu0 0.0
        %1107 = vmatprep.subr.mxu0 0.0
        %1108 = vmatpush1.msra.mxu0 0.0
        %1109 = vmatprep.subr.mxu0 0.0
        %1110 = vmatpush1.msra.mxu0 0.0
        %1111 = vmatprep.subr.mxu0 0.0
        %1112 = vmatpush1.msra.mxu0 0.0
        %1113 = vmatprep.subr.mxu0 0.0
        %1114 = vmatpush1.msra.mxu0 0.0
        %1115 = vmatprep.subr.mxu0 0.0
        %1116 = vmatpush1.msra.mxu0 0.0
        %1117 = vmatprep.subr.mxu0 0.0
        %1118 = vmatpush1.msra.mxu0 0.0
        %1119 = vmatprep.subr.mxu0 0.0
        %1120 = vmatpush1.msra.mxu0 0.0
        %1121 = vmatprep.subr.mxu0 0.0
        %1122 = vmatpush1.msra.mxu0 0.0
        %1123 = vmatprep.subr.mxu0 0.0
        %1124 = vmatpush1.msra.mxu0 0.0
        %1125 = vmatprep.subr.mxu0 0.0
        %1126 = vmatpush1.msra.mxu0 0.0
        %1127 = vmatprep.subr.mxu0 0.0
        %1128 = vmatpush1.msra.mxu0 0.0
        %1129 = vmatprep.mubr.f32.mxu0 0.0
        %v1130 = vand.u32 %v801, 4294901760
        %v1131 = vsub.f32 %v801, %v1130
        %v1132 = vand.u32 %v1131, 4294901760
        %1133 = vmatmul.mubr.f32.gmra.mrb[0].mxu0 %v1132
        %v1134 = vpop.f32.mrb[0].mxu0
        %v1135 = vadd.f32 %v1053, %v1134
        %v1136 = vpop.f32.mrb[0].mxu0
        %1137 = vmatprep.mubr.f32.mxu0 0.0
        %v1138 = vand.u32 %v804, 4294901760
        %v1139 = vsub.f32 %v804, %v1138
        %v1140 = vand.u32 %v1139, 4294901760
        %1141 = vmatmul.mubr.f32.gmra.mrb[0].mxu0 %v1140
        %v1142 = vpop.f32.mrb[0].mxu0
        %v1143 = vadd.f32 %v1060, %v1142
        %v1144 = vpop.f32.mrb[0].mxu0
        %1145 = vdwg.mxu0
        %1146 = vmatprep.subr.mxu0 0.0
        %v1147 = vand.u32 %v289, 4294901760
        %v1148 = vsub.f32 %v289, %v1147
        %v1149 = vand.u32 %v1148, 4294901760
        %1150 = vmatpush1.msra.mxu0 %v1149
        %1151 = vmatprep.subr.mxu0 0.0
        %v1152 = vand.u32 %v290, 4294901760
        %v1153 = vsub.f32 %v290, %v1152
        %v1154 = vand.u32 %v1153, 4294901760
        %1155 = vmatpush1.msra.mxu0 %v1154
        %1156 = vmatprep.subr.mxu0 0.0
        %1157 = vmatpush1.msra.mxu0 0.0
        %1158 = vmatprep.subr.mxu0 0.0
        %1159 = vmatpush1.msra.mxu0 0.0
        %1160 = vmatprep.subr.mxu0 0.0
        %1161 = vmatpush1.msra.mxu0 0.0
        %1162 = vmatprep.subr.mxu0 0.0
        %1163 = vmatpush1.msra.mxu0 0.0
        %1164 = vmatprep.subr.mxu0 0.0
        %1165 = vmatpush1.msra.mxu0 0.0
        %1166 = vmatprep.subr.mxu0 0.0
        %1167 = vmatpush1.msra.mxu0 0.0
        %1168 = vmatprep.subr.mxu0 0.0
        %1169 = vmatpush1.msra.mxu0 0.0
        %1170 = vmatprep.subr.mxu0 0.0
        %1171 = vmatpush1.msra.mxu0 0.0
        %1172 = vmatprep.subr.mxu0 0.0
        %1173 = vmatpush1.msra.mxu0 0.0
        %1174 = vmatprep.subr.mxu0 0.0
        %1175 = vmatpush1.msra.mxu0 0.0
        %1176 = vmatprep.subr.mxu0 0.0
        %1177 = vmatpush1.msra.mxu0 0.0
        %1178 = vmatprep.subr.mxu0 0.0
        %1179 = vmatpush1.msra.mxu0 0.0
        %1180 = vmatprep.subr.mxu0 0.0
        %1181 = vmatpush1.msra.mxu0 0.0
        %1182 = vmatprep.subr.mxu0 0.0
        %1183 = vmatpush1.msra.mxu0 0.0
        %1184 = vmatprep.subr.mxu0 0.0
        %1185 = vmatpush1.msra.mxu0 0.0
        %1186 = vmatprep.subr.mxu0 0.0
        %1187 = vmatpush1.msra.mxu0 0.0
        %1188 = vmatprep.subr.mxu0 0.0
        %1189 = vmatpush1.msra.mxu0 0.0
        %1190 = vmatprep.subr.mxu0 0.0
        %1191 = vmatpush1.msra.mxu0 0.0
        %1192 = vmatprep.subr.mxu0 0.0
        %1193 = vmatpush1.msra.mxu0 0.0
        %1194 = vmatprep.subr.mxu0 0.0
        %1195 = vmatpush1.msra.mxu0 0.0
        %1196 = vmatprep.subr.mxu0 0.0
        %1197 = vmatpush1.msra.mxu0 0.0
        %1198 = vmatprep.subr.mxu0 0.0
        %1199 = vmatpush1.msra.mxu0 0.0
        %1200 = vmatprep.subr.mxu0 0.0
        %1201 = vmatpush1.msra.mxu0 0.0
        %1202 = vmatprep.subr.mxu0 0.0
        %1203 = vmatpush1.msra.mxu0 0.0
        %1204 = vmatprep.subr.mxu0 0.0
        %1205 = vmatpush1.msra.mxu0 0.0
        %1206 = vmatprep.subr.mxu0 0.0
        %1207 = vmatpush1.msra.mxu0 0.0
        %1208 = vmatprep.subr.mxu0 0.0
        %1209 = vmatpush1.msra.mxu0 0.0
        %1210 = vmatprep.subr.mxu0 0.0
        %1211 = vmatpush1.msra.mxu0 0.0
        %1212 = vmatprep.subr.mxu0 0.0
        %1213 = vmatpush1.msra.mxu0 0.0
        %1214 = vmatprep.subr.mxu0 0.0
        %1215 = vmatpush1.msra.mxu0 0.0
        %1216 = vmatprep.mubr.f32.mxu0 0.0
        %v1217 = vand.u32 %v801, 4294901760
        %1218 = vmatmul.mubr.f32.gmra.mrb[0].mxu0 %v1217
        %v1219 = vpop.f32.mrb[0].mxu0
        %v1220 = vadd.f32 %v1135, %v1219
        %v1221 = vpop.f32.mrb[0].mxu0
        %1222 = vmatprep.mubr.f32.mxu0 0.0
        %v1223 = vand.u32 %v804, 4294901760
        %1224 = vmatmul.mubr.f32.gmra.mrb[0].mxu0 %v1223
        %v1225 = vpop.f32.mrb[0].mxu0
        %v1226 = vadd.f32 %v1143, %v1225
        %v1227 = vpop.f32.mrb[0].mxu0
        %1228 = vdwg.mxu0
        %1229 = vmatprep.subr.mxu0 0.0
        %v1230 = vand.u32 %v289, 4294901760
        %1231 = vmatpush1.msra.mxu0 %v1230
        %1232 = vmatprep.subr.mxu0 0.0
        %v1233 = vand.u32 %v290, 4294901760
        %1234 = vmatpush1.msra.mxu0 %v1233
        %1235 = vmatprep.subr.mxu0 0.0
        %1236 = vmatpush1.msra.mxu0 0.0
        %1237 = vmatprep.subr.mxu0 0.0
        %1238 = vmatpush1.msra.mxu0 0.0
        %1239 = vmatprep.subr.mxu0 0.0
        %1240 = vmatpush1.msra.mxu0 0.0
        %1241 = vmatprep.subr.mxu0 0.0
        %1242 = vmatpush1.msra.mxu0 0.0
        %1243 = vmatprep.subr.mxu0 0.0
        %1244 = vmatpush1.msra.mxu0 0.0
        %1245 = vmatprep.subr.mxu0 0.0
        %1246 = vmatpush1.msra.mxu0 0.0
        %1247 = vmatprep.subr.mxu0 0.0
        %1248 = vmatpush1.msra.mxu0 0.0
        %1249 = vmatprep.subr.mxu0 0.0
        %1250 = vmatpush1.msra.mxu0 0.0
        %1251 = vmatprep.subr.mxu0 0.0
        %1252 = vmatpush1.msra.mxu0 0.0
        %1253 = vmatprep.subr.mxu0 0.0
        %1254 = vmatpush1.msra.mxu0 0.0
        %1255 = vmatprep.subr.mxu0 0.0
        %1256 = vmatpush1.msra.mxu0 0.0
        %1257 = vmatprep.subr.mxu0 0.0
        %1258 = vmatpush1.msra.mxu0 0.0
        %1259 = vmatprep.subr.mxu0 0.0
        %1260 = vmatpush1.msra.mxu0 0.0
        %1261 = vmatprep.subr.mxu0 0.0
        %1262 = vmatpush1.msra.mxu0 0.0
        %1263 = vmatprep.subr.mxu0 0.0
        %1264 = vmatpush1.msra.mxu0 0.0
        %1265 = vmatprep.subr.mxu0 0.0
        %1266 = vmatpush1.msra.mxu0 0.0
        %1267 = vmatprep.subr.mxu0 0.0
        %1268 = vmatpush1.msra.mxu0 0.0
        %1269 = vmatprep.subr.mxu0 0.0
        %1270 = vmatpush1.msra.mxu0 0.0
        %1271 = vmatprep.subr.mxu0 0.0
        %1272 = vmatpush1.msra.mxu0 0.0
        %1273 = vmatprep.subr.mxu0 0.0
        %1274 = vmatpush1.msra.mxu0 0.0
        %1275 = vmatprep.subr.mxu0 0.0
        %1276 = vmatpush1.msra.mxu0 0.0
        %1277 = vmatprep.subr.mxu0 0.0
        %1278 = vmatpush1.msra.mxu0 0.0
        %1279 = vmatprep.subr.mxu0 0.0
        %1280 = vmatpush1.msra.mxu0 0.0
        %1281 = vmatprep.subr.mxu0 0.0
        %1282 = vmatpush1.msra.mxu0 0.0
        %1283 = vmatprep.subr.mxu0 0.0
        %1284 = vmatpush1.msra.mxu0 0.0
        %1285 = vmatprep.subr.mxu0 0.0
        %1286 = vmatpush1.msra.mxu0 0.0
        %1287 = vmatprep.subr.mxu0 0.0
        %1288 = vmatpush1.msra.mxu0 0.0
        %1289 = vmatprep.subr.mxu0 0.0
        %1290 = vmatpush1.msra.mxu0 0.0
        %1291 = vmatprep.subr.mxu0 0.0
        %1292 = vmatpush1.msra.mxu0 0.0
        %1293 = vmatprep.subr.mxu0 0.0
        %1294 = vmatpush1.msra.mxu0 0.0
        %1295 = vmatprep.mubr.f32.mxu0 0.0
        %v1296 = vand.u32 %v801, 4294901760
        %1297 = vmatmul.mubr.f32.gmra.mrb[0].mxu0 %v1296
        %v1298 = vpop.f32.mrb[0].mxu0
        %v1299 = vadd.f32 %v1220, %v1298
        %v1300 = vpop.f32.mrb[0].mxu0
        %1301 = vmatprep.mubr.f32.mxu0 0.0
        %v1302 = vand.u32 %v804, 4294901760
        %1303 = vmatmul.mubr.f32.gmra.mrb[0].mxu0 %v1302
        %v1304 = vpop.f32.mrb[0].mxu0
        %v1305 = vadd.f32 %v1226, %v1304
        %v1306 = vpop.f32.mrb[0].mxu0
        %1307 = vdwg.mxu0
        %1308 = vmatprep.subr.mxu0 0.0
        %v1309 = vand.u32 %v285, 4294901760
        %1310 = vmatpush1.msra.mxu0 %v1309
        %1311 = vmatprep.subr.mxu0 0.0
        %v1312 = vand.u32 %v286, 4294901760
        %1313 = vmatpush1.msra.mxu0 %v1312
        %1314 = vmatprep.subr.mxu0 0.0
        %1315 = vmatpush1.msra.mxu0 0.0
        %1316 = vmatprep.subr.mxu0 0.0
        %1317 = vmatpush1.msra.mxu0 0.0
        %1318 = vmatprep.subr.mxu0 0.0
        %1319 = vmatpush1.msra.mxu0 0.0
        %1320 = vmatprep.subr.mxu0 0.0
        %1321 = vmatpush1.msra.mxu0 0.0
        %1322 = vmatprep.subr.mxu0 0.0
        %1323 = vmatpush1.msra.mxu0 0.0
        %1324 = vmatprep.subr.mxu0 0.0
        %1325 = vmatpush1.msra.mxu0 0.0
        %1326 = vmatprep.subr.mxu0 0.0
        %1327 = vmatpush1.msra.mxu0 0.0
        %1328 = vmatprep.subr.mxu0 0.0
        %1329 = vmatpush1.msra.mxu0 0.0
        %1330 = vmatprep.subr.mxu0 0.0
        %1331 = vmatpush1.msra.mxu0 0.0
        %1332 = vmatprep.subr.mxu0 0.0
        %1333 = vmatpush1.msra.mxu0 0.0
        %1334 = vmatprep.subr.mxu0 0.0
        %1335 = vmatpush1.msra.mxu0 0.0
        %1336 = vmatprep.subr.mxu0 0.0
        %1337 = vmatpush1.msra.mxu0 0.0
        %1338 = vmatprep.subr.mxu0 0.0
        %1339 = vmatpush1.msra.mxu0 0.0
        %1340 = vmatprep.subr.mxu0 0.0
        %1341 = vmatpush1.msra.mxu0 0.0
        %1342 = vmatprep.subr.mxu0 0.0
        %1343 = vmatpush1.msra.mxu0 0.0
        %1344 = vmatprep.subr.mxu0 0.0
        %1345 = vmatpush1.msra.mxu0 0.0
        %1346 = vmatprep.subr.mxu0 0.0
        %1347 = vmatpush1.msra.mxu0 0.0
        %1348 = vmatprep.subr.mxu0 0.0
        %1349 = vmatpush1.msra.mxu0 0.0
        %1350 = vmatprep.subr.mxu0 0.0
        %1351 = vmatpush1.msra.mxu0 0.0
        %1352 = vmatprep.subr.mxu0 0.0
        %1353 = vmatpush1.msra.mxu0 0.0
        %1354 = vmatprep.subr.mxu0 0.0
        %1355 = vmatpush1.msra.mxu0 0.0
        %1356 = vmatprep.subr.mxu0 0.0
        %1357 = vmatpush1.msra.mxu0 0.0
        %1358 = vmatprep.subr.mxu0 0.0
        %1359 = vmatpush1.msra.mxu0 0.0
        %1360 = vmatprep.subr.mxu0 0.0
        %1361 = vmatpush1.msra.mxu0 0.0
        %1362 = vmatprep.subr.mxu0 0.0
        %1363 = vmatpush1.msra.mxu0 0.0
        %1364 = vmatprep.subr.mxu0 0.0
        %1365 = vmatpush1.msra.mxu0 0.0
        %1366 = vmatprep.subr.mxu0 0.0
        %1367 = vmatpush1.msra.mxu0 0.0
        %1368 = vmatprep.subr.mxu0 0.0
        %1369 = vmatpush1.msra.mxu0 0.0
        %1370 = vmatprep.subr.mxu0 0.0
        %1371 = vmatpush1.msra.mxu0 0.0
        %1372 = vmatprep.subr.mxu0 0.0
        %1373 = vmatpush1.msra.mxu0 0.0
        %1374 = vmatprep.mubr.f32.mxu0 0.0
        %v1375 = vand.u32 %v293, 4294901760
        %v1376 = vsub.f32 %v293, %v1375
        %v1377 = vand.u32 %v1376, 4294901760
        %v1378 = vsub.f32 %v1376, %v1377
        %v1379 = vand.u32 %v1378, 4294901760
        %1380 = vmatmul.mubr.f32.gmra.mrb[0].mxu0 %v1379
        %v1381 = vpop.f32.mrb[0].mxu0
        %v1382 = vadd.f32 0.0, %v1381
        %v1383 = vpop.f32.mrb[0].mxu0
        %1384 = vmatprep.mubr.f32.mxu0 0.0
        %v1385 = vand.u32 %v296, 4294901760
        %v1386 = vsub.f32 %v296, %v1385
        %v1387 = vand.u32 %v1386, 4294901760
        %v1388 = vsub.f32 %v1386, %v1387
        %v1389 = vand.u32 %v1388, 4294901760
        %1390 = vmatmul.mubr.f32.gmra.mrb[0].mxu0 %v1389
        %v1391 = vpop.f32.mrb[0].mxu0
        %v1392 = vadd.f32 0.0, %v1391
        %v1393 = vpop.f32.mrb[0].mxu0
        %1394 = vdwg.mxu0
        %1395 = vmatprep.subr.mxu0 0.0
        %v1396 = vand.u32 %v285, 4294901760
        %v1397 = vsub.f32 %v285, %v1396
        %v1398 = vand.u32 %v1397, 4294901760
        %v1399 = vsub.f32 %v1397, %v1398
        %v1400 = vand.u32 %v1399, 4294901760
        %1401 = vmatpush1.msra.mxu0 %v1400
        %1402 = vmatprep.subr.mxu0 0.0
        %v1403 = vand.u32 %v286, 4294901760
        %v1404 = vsub.f32 %v286, %v1403
        %v1405 = vand.u32 %v1404, 4294901760
        %v1406 = vsub.f32 %v1404, %v1405
        %v1407 = vand.u32 %v1406, 4294901760
        %1408 = vmatpush1.msra.mxu0 %v1407
        %1409 = vmatprep.subr.mxu0 0.0
        %1410 = vmatpush1.msra.mxu0 0.0
        %1411 = vmatprep.subr.mxu0 0.0
        %1412 = vmatpush1.msra.mxu0 0.0
        %1413 = vmatprep.subr.mxu0 0.0
        %1414 = vmatpush1.msra.mxu0 0.0
        %1415 = vmatprep.subr.mxu0 0.0
        %1416 = vmatpush1.msra.mxu0 0.0
        %1417 = vmatprep.subr.mxu0 0.0
        %1418 = vmatpush1.msra.mxu0 0.0
        %1419 = vmatprep.subr.mxu0 0.0
        %1420 = vmatpush1.msra.mxu0 0.0
        %1421 = vmatprep.subr.mxu0 0.0
        %1422 = vmatpush1.msra.mxu0 0.0
        %1423 = vmatprep.subr.mxu0 0.0
        %1424 = vmatpush1.msra.mxu0 0.0
        %1425 = vmatprep.subr.mxu0 0.0
        %1426 = vmatpush1.msra.mxu0 0.0
        %1427 = vmatprep.subr.mxu0 0.0
        %1428 = vmatpush1.msra.mxu0 0.0
        %1429 = vmatprep.subr.mxu0 0.0
        %1430 = vmatpush1.msra.mxu0 0.0
        %1431 = vmatprep.subr.mxu0 0.0
        %1432 = vmatpush1.msra.mxu0 0.0
        %1433 = vmatprep.subr.mxu0 0.0
        %1434 = vmatpush1.msra.mxu0 0.0
        %1435 = vmatprep.subr.mxu0 0.0
        %1436 = vmatpush1.msra.mxu0 0.0
        %1437 = vmatprep.subr.mxu0 0.0
        %1438 = vmatpush1.msra.mxu0 0.0
        %1439 = vmatprep.subr.mxu0 0.0
        %1440 = vmatpush1.msra.mxu0 0.0
        %1441 = vmatprep.subr.mxu0 0.0
        %1442 = vmatpush1.msra.mxu0 0.0
        %1443 = vmatprep.subr.mxu0 0.0
        %1444 = vmatpush1.msra.mxu0 0.0
        %1445 = vmatprep.subr.mxu0 0.0
        %1446 = vmatpush1.msra.mxu0 0.0
        %1447 = vmatprep.subr.mxu0 0.0
        %1448 = vmatpush1.msra.mxu0 0.0
        %1449 = vmatprep.subr.mxu0 0.0
        %1450 = vmatpush1.msra.mxu0 0.0
        %1451 = vmatprep.subr.mxu0 0.0
        %1452 = vmatpush1.msra.mxu0 0.0
        %1453 = vmatprep.subr.mxu0 0.0
        %1454 = vmatpush1.msra.mxu0 0.0
        %1455 = vmatprep.subr.mxu0 0.0
        %1456 = vmatpush1.msra.mxu0 0.0
        %1457 = vmatprep.subr.mxu0 0.0
        %1458 = vmatpush1.msra.mxu0 0.0
        %1459 = vmatprep.subr.mxu0 0.0
        %1460 = vmatpush1.msra.mxu0 0.0
        %1461 = vmatprep.subr.mxu0 0.0
        %1462 = vmatpush1.msra.mxu0 0.0
        %1463 = vmatprep.subr.mxu0 0.0
        %1464 = vmatpush1.msra.mxu0 0.0
        %1465 = vmatprep.subr.mxu0 0.0
        %1466 = vmatpush1.msra.mxu0 0.0
        %1467 = vmatprep.subr.mxu0 0.0
        %1468 = vmatpush1.msra.mxu0 0.0
        %1469 = vmatprep.mubr.f32.mxu0 0.0
        %v1470 = vand.u32 %v293, 4294901760
        %1471 = vmatmul.mubr.f32.gmra.mrb[0].mxu0 %v1470
        %v1472 = vpop.f32.mrb[0].mxu0
        %v1473 = vadd.f32 %v1382, %v1472
        %v1474 = vpop.f32.mrb[0].mxu0
        %1475 = vmatprep.mubr.f32.mxu0 0.0
        %v1476 = vand.u32 %v296, 4294901760
        %1477 = vmatmul.mubr.f32.gmra.mrb[0].mxu0 %v1476
        %v1478 = vpop.f32.mrb[0].mxu0
        %v1479 = vadd.f32 %v1392, %v1478
        %v1480 = vpop.f32.mrb[0].mxu0
        %1481 = vdwg.mxu0
        %1482 = vmatprep.subr.mxu0 0.0
        %v1483 = vand.u32 %v285, 4294901760
        %v1484 = vsub.f32 %v285, %v1483
        %1485 = vmatpush1.msra.mxu0 %v1484
        %1486 = vmatprep.subr.mxu0 0.0
        %v1487 = vand.u32 %v286, 4294901760
        %v1488 = vsub.f32 %v286, %v1487
        %1489 = vmatpush1.msra.mxu0 %v1488
        %1490 = vmatprep.subr.mxu0 0.0
        %1491 = vmatpush1.msra.mxu0 0.0
        %1492 = vmatprep.subr.mxu0 0.0
        %1493 = vmatpush1.msra.mxu0 0.0
        %1494 = vmatprep.subr.mxu0 0.0
        %1495 = vmatpush1.msra.mxu0 0.0
        %1496 = vmatprep.subr.mxu0 0.0
        %1497 = vmatpush1.msra.mxu0 0.0
        %1498 = vmatprep.subr.mxu0 0.0
        %1499 = vmatpush1.msra.mxu0 0.0
        %1500 = vmatprep.subr.mxu0 0.0
        %1501 = vmatpush1.msra.mxu0 0.0
        %1502 = vmatprep.subr.mxu0 0.0
        %1503 = vmatpush1.msra.mxu0 0.0
        %1504 = vmatprep.subr.mxu0 0.0
        %1505 = vmatpush1.msra.mxu0 0.0
        %1506 = vmatprep.subr.mxu0 0.0
        %1507 = vmatpush1.msra.mxu0 0.0
        %1508 = vmatprep.subr.mxu0 0.0
        %1509 = vmatpush1.msra.mxu0 0.0
        %1510 = vmatprep.subr.mxu0 0.0
        %1511 = vmatpush1.msra.mxu0 0.0
        %1512 = vmatprep.subr.mxu0 0.0
        %1513 = vmatpush1.msra.mxu0 0.0
        %1514 = vmatprep.subr.mxu0 0.0
        %1515 = vmatpush1.msra.mxu0 0.0
        %1516 = vmatprep.subr.mxu0 0.0
        %1517 = vmatpush1.msra.mxu0 0.0
        %1518 = vmatprep.subr.mxu0 0.0
        %1519 = vmatpush1.msra.mxu0 0.0
        %1520 = vmatprep.subr.mxu0 0.0
        %1521 = vmatpush1.msra.mxu0 0.0
        %1522 = vmatprep.subr.mxu0 0.0
        %1523 = vmatpush1.msra.mxu0 0.0
        %1524 = vmatprep.subr.mxu0 0.0
        %1525 = vmatpush1.msra.mxu0 0.0
        %1526 = vmatprep.subr.mxu0 0.0
        %1527 = vmatpush1.msra.mxu0 0.0
        %1528 = vmatprep.subr.mxu0 0.0
        %1529 = vmatpush1.msra.mxu0 0.0
        %1530 = vmatprep.subr.mxu0 0.0
        %1531 = vmatpush1.msra.mxu0 0.0
        %1532 = vmatprep.subr.mxu0 0.0
        %1533 = vmatpush1.msra.mxu0 0.0
        %1534 = vmatprep.subr.mxu0 0.0
        %1535 = vmatpush1.msra.mxu0 0.0
        %1536 = vmatprep.subr.mxu0 0.0
        %1537 = vmatpush1.msra.mxu0 0.0
        %1538 = vmatprep.subr.mxu0 0.0
        %1539 = vmatpush1.msra.mxu0 0.0
        %1540 = vmatprep.subr.mxu0 0.0
        %1541 = vmatpush1.msra.mxu0 0.0
        %1542 = vmatprep.subr.mxu0 0.0
        %1543 = vmatpush1.msra.mxu0 0.0
        %1544 = vmatprep.subr.mxu0 0.0
        %1545 = vmatpush1.msra.mxu0 0.0
        %1546 = vmatprep.subr.mxu0 0.0
        %1547 = vmatpush1.msra.mxu0 0.0
        %1548 = vmatprep.subr.mxu0 0.0
        %1549 = vmatpush1.msra.mxu0 0.0
        %1550 = vmatprep.mubr.f32.mxu0 0.0
        %v1551 = vand.u32 %v293, 4294901760
        %v1552 = vsub.f32 %v293, %v1551
        %1553 = vmatmul.mubr.f32.gmra.mrb[0].mxu0 %v1552
        %v1554 = vpop.f32.mrb[0].mxu0
        %v1555 = vadd.f32 %v1473, %v1554
        %v1556 = vpop.f32.mrb[0].mxu0
        %1557 = vmatprep.mubr.f32.mxu0 0.0
        %v1558 = vand.u32 %v296, 4294901760
        %v1559 = vsub.f32 %v296, %v1558
        %1560 = vmatmul.mubr.f32.gmra.mrb[0].mxu0 %v1559
        %v1561 = vpop.f32.mrb[0].mxu0
        %v1562 = vadd.f32 %v1479, %v1561
        %v1563 = vpop.f32.mrb[0].mxu0
        %1564 = vdwg.mxu0
        %1565 = vmatprep.subr.mxu0 0.0
        %v1566 = vand.u32 %v285, 4294901760
        %1567 = vmatpush1.msra.mxu0 %v1566
        %1568 = vmatprep.subr.mxu0 0.0
        %v1569 = vand.u32 %v286, 4294901760
        %1570 = vmatpush1.msra.mxu0 %v1569
        %1571 = vmatprep.subr.mxu0 0.0
        %1572 = vmatpush1.msra.mxu0 0.0
        %1573 = vmatprep.subr.mxu0 0.0
        %1574 = vmatpush1.msra.mxu0 0.0
        %1575 = vmatprep.subr.mxu0 0.0
        %1576 = vmatpush1.msra.mxu0 0.0
        %1577 = vmatprep.subr.mxu0 0.0
        %1578 = vmatpush1.msra.mxu0 0.0
        %1579 = vmatprep.subr.mxu0 0.0
        %1580 = vmatpush1.msra.mxu0 0.0
        %1581 = vmatprep.subr.mxu0 0.0
        %1582 = vmatpush1.msra.mxu0 0.0
        %1583 = vmatprep.subr.mxu0 0.0
        %1584 = vmatpush1.msra.mxu0 0.0
        %1585 = vmatprep.subr.mxu0 0.0
        %1586 = vmatpush1.msra.mxu0 0.0
        %1587 = vmatprep.subr.mxu0 0.0
        %1588 = vmatpush1.msra.mxu0 0.0
        %1589 = vmatprep.subr.mxu0 0.0
        %1590 = vmatpush1.msra.mxu0 0.0
        %1591 = vmatprep.subr.mxu0 0.0
        %1592 = vmatpush1.msra.mxu0 0.0
        %1593 = vmatprep.subr.mxu0 0.0
        %1594 = vmatpush1.msra.mxu0 0.0
        %1595 = vmatprep.subr.mxu0 0.0
        %1596 = vmatpush1.msra.mxu0 0.0
        %1597 = vmatprep.subr.mxu0 0.0
        %1598 = vmatpush1.msra.mxu0 0.0
        %1599 = vmatprep.subr.mxu0 0.0
        %1600 = vmatpush1.msra.mxu0 0.0
        %1601 = vmatprep.subr.mxu0 0.0
        %1602 = vmatpush1.msra.mxu0 0.0
        %1603 = vmatprep.subr.mxu0 0.0
        %1604 = vmatpush1.msra.mxu0 0.0
        %1605 = vmatprep.subr.mxu0 0.0
        %1606 = vmatpush1.msra.mxu0 0.0
        %1607 = vmatprep.subr.mxu0 0.0
        %1608 = vmatpush1.msra.mxu0 0.0
        %1609 = vmatprep.subr.mxu0 0.0
        %1610 = vmatpush1.msra.mxu0 0.0
        %1611 = vmatprep.subr.mxu0 0.0
        %1612 = vmatpush1.msra.mxu0 0.0
        %1613 = vmatprep.subr.mxu0 0.0
        %1614 = vmatpush1.msra.mxu0 0.0
        %1615 = vmatprep.subr.mxu0 0.0
        %1616 = vmatpush1.msra.mxu0 0.0
        %1617 = vmatprep.subr.mxu0 0.0
        %1618 = vmatpush1.msra.mxu0 0.0
        %1619 = vmatprep.subr.mxu0 0.0
        %1620 = vmatpush1.msra.mxu0 0.0
        %1621 = vmatprep.subr.mxu0 0.0
        %1622 = vmatpush1.msra.mxu0 0.0
        %1623 = vmatprep.subr.mxu0 0.0
        %1624 = vmatpush1.msra.mxu0 0.0
        %1625 = vmatprep.subr.mxu0 0.0
        %1626 = vmatpush1.msra.mxu0 0.0
        %1627 = vmatprep.subr.mxu0 0.0
        %1628 = vmatpush1.msra.mxu0 0.0
        %1629 = vmatprep.subr.mxu0 0.0
        %1630 = vmatpush1.msra.mxu0 0.0
        %1631 = vmatprep.mubr.f32.mxu0 0.0
        %v1632 = vand.u32 %v293, 4294901760
        %v1633 = vsub.f32 %v293, %v1632
        %v1634 = vand.u32 %v1633, 4294901760
        %1635 = vmatmul.mubr.f32.gmra.mrb[0].mxu0 %v1634
        %v1636 = vpop.f32.mrb[0].mxu0
        %v1637 = vadd.f32 %v1555, %v1636
        %v1638 = vpop.f32.mrb[0].mxu0
        %1639 = vmatprep.mubr.f32.mxu0 0.0
        %v1640 = vand.u32 %v296, 4294901760
        %v1641 = vsub.f32 %v296, %v1640
        %v1642 = vand.u32 %v1641, 4294901760
        %1643 = vmatmul.mubr.f32.gmra.mrb[0].mxu0 %v1642
        %v1644 = vpop.f32.mrb[0].mxu0
        %v1645 = vadd.f32 %v1562, %v1644
        %v1646 = vpop.f32.mrb[0].mxu0
        %1647 = vdwg.mxu0
        %1648 = vmatprep.subr.mxu0 0.0
        %v1649 = vand.u32 %v285, 4294901760
        %v1650 = vsub.f32 %v285, %v1649
        %v1651 = vand.u32 %v1650, 4294901760
        %1652 = vmatpush1.msra.mxu0 %v1651
        %1653 = vmatprep.subr.mxu0 0.0
        %v1654 = vand.u32 %v286, 4294901760
        %v1655 = vsub.f32 %v286, %v1654
        %v1656 = vand.u32 %v1655, 4294901760
        %1657 = vmatpush1.msra.mxu0 %v1656
        %1658 = vmatprep.subr.mxu0 0.0
        %1659 = vmatpush1.msra.mxu0 0.0
        %1660 = vmatprep.subr.mxu0 0.0
        %1661 = vmatpush1.msra.mxu0 0.0
        %1662 = vmatprep.subr.mxu0 0.0
        %1663 = vmatpush1.msra.mxu0 0.0
        %1664 = vmatprep.subr.mxu0 0.0
        %1665 = vmatpush1.msra.mxu0 0.0
        %1666 = vmatprep.subr.mxu0 0.0
        %1667 = vmatpush1.msra.mxu0 0.0
        %1668 = vmatprep.subr.mxu0 0.0
        %1669 = vmatpush1.msra.mxu0 0.0
        %1670 = vmatprep.subr.mxu0 0.0
        %1671 = vmatpush1.msra.mxu0 0.0
        %1672 = vmatprep.subr.mxu0 0.0
        %1673 = vmatpush1.msra.mxu0 0.0
        %1674 = vmatprep.subr.mxu0 0.0
        %1675 = vmatpush1.msra.mxu0 0.0
        %1676 = vmatprep.subr.mxu0 0.0
        %1677 = vmatpush1.msra.mxu0 0.0
        %1678 = vmatprep.subr.mxu0 0.0
        %1679 = vmatpush1.msra.mxu0 0.0
        %1680 = vmatprep.subr.mxu0 0.0
        %1681 = vmatpush1.msra.mxu0 0.0
        %1682 = vmatprep.subr.mxu0 0.0
        %1683 = vmatpush1.msra.mxu0 0.0
        %1684 = vmatprep.subr.mxu0 0.0
        %1685 = vmatpush1.msra.mxu0 0.0
        %1686 = vmatprep.subr.mxu0 0.0
        %1687 = vmatpush1.msra.mxu0 0.0
        %1688 = vmatprep.subr.mxu0 0.0
        %1689 = vmatpush1.msra.mxu0 0.0
        %1690 = vmatprep.subr.mxu0 0.0
        %1691 = vmatpush1.msra.mxu0 0.0
        %1692 = vmatprep.subr.mxu0 0.0
        %1693 = vmatpush1.msra.mxu0 0.0
        %1694 = vmatprep.subr.mxu0 0.0
        %1695 = vmatpush1.msra.mxu0 0.0
        %1696 = vmatprep.subr.mxu0 0.0
        %1697 = vmatpush1.msra.mxu0 0.0
        %1698 = vmatprep.subr.mxu0 0.0
        %1699 = vmatpush1.msra.mxu0 0.0
        %1700 = vmatprep.subr.mxu0 0.0
        %1701 = vmatpush1.msra.mxu0 0.0
        %1702 = vmatprep.subr.mxu0 0.0
        %1703 = vmatpush1.msra.mxu0 0.0
        %1704 = vmatprep.subr.mxu0 0.0
        %1705 = vmatpush1.msra.mxu0 0.0
        %1706 = vmatprep.subr.mxu0 0.0
        %1707 = vmatpush1.msra.mxu0 0.0
        %1708 = vmatprep.subr.mxu0 0.0
        %1709 = vmatpush1.msra.mxu0 0.0
        %1710 = vmatprep.subr.mxu0 0.0
        %1711 = vmatpush1.msra.mxu0 0.0
        %1712 = vmatprep.subr.mxu0 0.0
        %1713 = vmatpush1.msra.mxu0 0.0
        %1714 = vmatprep.subr.mxu0 0.0
        %1715 = vmatpush1.msra.mxu0 0.0
        %1716 = vmatprep.subr.mxu0 0.0
        %1717 = vmatpush1.msra.mxu0 0.0
        %1718 = vmatprep.mubr.f32.mxu0 0.0
        %v1719 = vand.u32 %v293, 4294901760
        %1720 = vmatmul.mubr.f32.gmra.mrb[0].mxu0 %v1719
        %v1721 = vpop.f32.mrb[0].mxu0
        %v1722 = vadd.f32 %v1637, %v1721
        %v1723 = vpop.f32.mrb[0].mxu0
        %1724 = vmatprep.mubr.f32.mxu0 0.0
        %v1725 = vand.u32 %v296, 4294901760
        %1726 = vmatmul.mubr.f32.gmra.mrb[0].mxu0 %v1725
        %v1727 = vpop.f32.mrb[0].mxu0
        %v1728 = vadd.f32 %v1645, %v1727
        %v1729 = vpop.f32.mrb[0].mxu0
        %1730 = vdwg.mxu0
        %1731 = vmatprep.subr.mxu0 0.0
        %v1732 = vand.u32 %v285, 4294901760
        %1733 = vmatpush1.msra.mxu0 %v1732
        %1734 = vmatprep.subr.mxu0 0.0
        %v1735 = vand.u32 %v286, 4294901760
        %1736 = vmatpush1.msra.mxu0 %v1735
        %1737 = vmatprep.subr.mxu0 0.0
        %1738 = vmatpush1.msra.mxu0 0.0
        %1739 = vmatprep.subr.mxu0 0.0
        %1740 = vmatpush1.msra.mxu0 0.0
        %1741 = vmatprep.subr.mxu0 0.0
        %1742 = vmatpush1.msra.mxu0 0.0
        %1743 = vmatprep.subr.mxu0 0.0
        %1744 = vmatpush1.msra.mxu0 0.0
        %1745 = vmatprep.subr.mxu0 0.0
        %1746 = vmatpush1.msra.mxu0 0.0
        %1747 = vmatprep.subr.mxu0 0.0
        %1748 = vmatpush1.msra.mxu0 0.0
        %1749 = vmatprep.subr.mxu0 0.0
        %1750 = vmatpush1.msra.mxu0 0.0
        %1751 = vmatprep.subr.mxu0 0.0
        %1752 = vmatpush1.msra.mxu0 0.0
        %1753 = vmatprep.subr.mxu0 0.0
        %1754 = vmatpush1.msra.mxu0 0.0
        %1755 = vmatprep.subr.mxu0 0.0
        %1756 = vmatpush1.msra.mxu0 0.0
        %1757 = vmatprep.subr.mxu0 0.0
        %1758 = vmatpush1.msra.mxu0 0.0
        %1759 = vmatprep.subr.mxu0 0.0
        %1760 = vmatpush1.msra.mxu0 0.0
        %1761 = vmatprep.subr.mxu0 0.0
        %1762 = vmatpush1.msra.mxu0 0.0
        %1763 = vmatprep.subr.mxu0 0.0
        %1764 = vmatpush1.msra.mxu0 0.0
        %1765 = vmatprep.subr.mxu0 0.0
        %1766 = vmatpush1.msra.mxu0 0.0
        %1767 = vmatprep.subr.mxu0 0.0
        %1768 = vmatpush1.msra.mxu0 0.0
        %1769 = vmatprep.subr.mxu0 0.0
        %1770 = vmatpush1.msra.mxu0 0.0
        %1771 = vmatprep.subr.mxu0 0.0
        %1772 = vmatpush1.msra.mxu0 0.0
        %1773 = vmatprep.subr.mxu0 0.0
        %1774 = vmatpush1.msra.mxu0 0.0
        %1775 = vmatprep.subr.mxu0 0.0
        %1776 = vmatpush1.msra.mxu0 0.0
        %1777 = vmatprep.subr.mxu0 0.0
        %1778 = vmatpush1.msra.mxu0 0.0
        %1779 = vmatprep.subr.mxu0 0.0
        %1780 = vmatpush1.msra.mxu0 0.0
        %1781 = vmatprep.subr.mxu0 0.0
        %1782 = vmatpush1.msra.mxu0 0.0
        %1783 = vmatprep.subr.mxu0 0.0
        %1784 = vmatpush1.msra.mxu0 0.0
        %1785 = vmatprep.subr.mxu0 0.0
        %1786 = vmatpush1.msra.mxu0 0.0
        %1787 = vmatprep.subr.mxu0 0.0
        %1788 = vmatpush1.msra.mxu0 0.0
        %1789 = vmatprep.subr.mxu0 0.0
        %1790 = vmatpush1.msra.mxu0 0.0
        %1791 = vmatprep.subr.mxu0 0.0
        %1792 = vmatpush1.msra.mxu0 0.0
        %1793 = vmatprep.subr.mxu0 0.0
        %1794 = vmatpush1.msra.mxu0 0.0
        %1795 = vmatprep.subr.mxu0 0.0
        %1796 = vmatpush1.msra.mxu0 0.0
        %1797 = vmatprep.mubr.f32.mxu0 0.0
        %v1798 = vand.u32 %v293, 4294901760
        %1799 = vmatmul.mubr.f32.gmra.mrb[0].mxu0 %v1798
        %v1800 = vpop.f32.mrb[0].mxu0
        %v1801 = vadd.f32 %v1722, %v1800
        %v1802 = vpop.f32.mrb[0].mxu0
        %1803 = vmatprep.mubr.f32.mxu0 0.0
        %v1804 = vand.u32 %v296, 4294901760
        %1805 = vmatmul.mubr.f32.gmra.mrb[0].mxu0 %v1804
        %v1806 = vpop.f32.mrb[0].mxu0
        %v1807 = vadd.f32 %v1728, %v1806
        %v1808 = vpop.f32.mrb[0].mxu0
        %1809 = vdwg.mxu0
        %v1811 = vsel %vm291, %v1801, 0
        %v1814 = vsel %vm291, %v1807, 0
        %1816 = vmatprep.subr.mxu0 0.0
        %v1817 = vand.u32 %v289, 4294901760
        %1818 = vmatpush1.msra.mxu0 %v1817
        %1819 = vmatprep.subr.mxu0 0.0
        %v1820 = vand.u32 %v290, 4294901760
        %1821 = vmatpush1.msra.mxu0 %v1820
        %1822 = vmatprep.subr.mxu0 0.0
        %1823 = vmatpush1.msra.mxu0 0.0
        %1824 = vmatprep.subr.mxu0 0.0
        %1825 = vmatpush1.msra.mxu0 0.0
        %1826 = vmatprep.subr.mxu0 0.0
        %1827 = vmatpush1.msra.mxu0 0.0
        %1828 = vmatprep.subr.mxu0 0.0
        %1829 = vmatpush1.msra.mxu0 0.0
        %1830 = vmatprep.subr.mxu0 0.0
        %1831 = vmatpush1.msra.mxu0 0.0
        %1832 = vmatprep.subr.mxu0 0.0
        %1833 = vmatpush1.msra.mxu0 0.0
        %1834 = vmatprep.subr.mxu0 0.0
        %1835 = vmatpush1.msra.mxu0 0.0
        %1836 = vmatprep.subr.mxu0 0.0
        %1837 = vmatpush1.msra.mxu0 0.0
        %1838 = vmatprep.subr.mxu0 0.0
        %1839 = vmatpush1.msra.mxu0 0.0
        %1840 = vmatprep.subr.mxu0 0.0
        %1841 = vmatpush1.msra.mxu0 0.0
        %1842 = vmatprep.subr.mxu0 0.0
        %1843 = vmatpush1.msra.mxu0 0.0
        %1844 = vmatprep.subr.mxu0 0.0
        %1845 = vmatpush1.msra.mxu0 0.0
        %1846 = vmatprep.subr.mxu0 0.0
        %1847 = vmatpush1.msra.mxu0 0.0
        %1848 = vmatprep.subr.mxu0 0.0
        %1849 = vmatpush1.msra.mxu0 0.0
        %1850 = vmatprep.subr.mxu0 0.0
        %1851 = vmatpush1.msra.mxu0 0.0
        %1852 = vmatprep.subr.mxu0 0.0
        %1853 = vmatpush1.msra.mxu0 0.0
        %1854 = vmatprep.subr.mxu0 0.0
        %1855 = vmatpush1.msra.mxu0 0.0
        %1856 = vmatprep.subr.mxu0 0.0
        %1857 = vmatpush1.msra.mxu0 0.0
        %1858 = vmatprep.subr.mxu0 0.0
        %1859 = vmatpush1.msra.mxu0 0.0
        %1860 = vmatprep.subr.mxu0 0.0
        %1861 = vmatpush1.msra.mxu0 0.0
        %1862 = vmatprep.subr.mxu0 0.0
        %1863 = vmatpush1.msra.mxu0 0.0
        %1864 = vmatprep.subr.mxu0 0.0
        %1865 = vmatpush1.msra.mxu0 0.0
        %1866 = vmatprep.subr.mxu0 0.0
        %1867 = vmatpush1.msra.mxu0 0.0
        %1868 = vmatprep.subr.mxu0 0.0
        %1869 = vmatpush1.msra.mxu0 0.0
        %1870 = vmatprep.subr.mxu0 0.0
        %1871 = vmatpush1.msra.mxu0 0.0
        %1872 = vmatprep.subr.mxu0 0.0
        %1873 = vmatpush1.msra.mxu0 0.0
        %1874 = vmatprep.subr.mxu0 0.0
        %1875 = vmatpush1.msra.mxu0 0.0
        %1876 = vmatprep.subr.mxu0 0.0
        %1877 = vmatpush1.msra.mxu0 0.0
        %1878 = vmatprep.subr.mxu0 0.0
        %1879 = vmatpush1.msra.mxu0 0.0
        %1880 = vmatprep.subr.mxu0 0.0
        %1881 = vmatpush1.msra.mxu0 0.0
        %1882 = vmatprep.mubr.f32.mxu0 0.0
        %v1883 = vand.u32 %v1811, 4294901760
        %v1884 = vsub.f32 %v1811, %v1883
        %v1885 = vand.u32 %v1884, 4294901760
        %v1886 = vsub.f32 %v1884, %v1885
        %v1887 = vand.u32 %v1886, 4294901760
        %1888 = vmatmul.mubr.f32.gmra.mrb[0].mxu0 %v1887
        %v1889 = vpop.f32.mrb[0].mxu0
        %v1890 = vadd.f32 0.0, %v1889
        %v1891 = vpop.f32.mrb[0].mxu0
        %1892 = vmatprep.mubr.f32.mxu0 0.0
        %v1893 = vand.u32 %v1814, 4294901760
        %v1894 = vsub.f32 %v1814, %v1893
        %v1895 = vand.u32 %v1894, 4294901760
        %v1896 = vsub.f32 %v1894, %v1895
        %v1897 = vand.u32 %v1896, 4294901760
        %1898 = vmatmul.mubr.f32.gmra.mrb[0].mxu0 %v1897
        %v1899 = vpop.f32.mrb[0].mxu0
        %v1900 = vadd.f32 0.0, %v1899
        %v1901 = vpop.f32.mrb[0].mxu0
        %1902 = vdwg.mxu0
        %1903 = vmatprep.subr.mxu0 0.0
        %v1904 = vand.u32 %v289, 4294901760
        %v1905 = vsub.f32 %v289, %v1904
        %v1906 = vand.u32 %v1905, 4294901760
        %v1907 = vsub.f32 %v1905, %v1906
        %v1908 = vand.u32 %v1907, 4294901760
        %1909 = vmatpush1.msra.mxu0 %v1908
        %1910 = vmatprep.subr.mxu0 0.0
        %v1911 = vand.u32 %v290, 4294901760
        %v1912 = vsub.f32 %v290, %v1911
        %v1913 = vand.u32 %v1912, 4294901760
        %v1914 = vsub.f32 %v1912, %v1913
        %v1915 = vand.u32 %v1914, 4294901760
        %1916 = vmatpush1.msra.mxu0 %v1915
        %1917 = vmatprep.subr.mxu0 0.0
        %1918 = vmatpush1.msra.mxu0 0.0
        %1919 = vmatprep.subr.mxu0 0.0
        %1920 = vmatpush1.msra.mxu0 0.0
        %1921 = vmatprep.subr.mxu0 0.0
        %1922 = vmatpush1.msra.mxu0 0.0
        %1923 = vmatprep.subr.mxu0 0.0
        %1924 = vmatpush1.msra.mxu0 0.0
        %1925 = vmatprep.subr.mxu0 0.0
        %1926 = vmatpush1.msra.mxu0 0.0
        %1927 = vmatprep.subr.mxu0 0.0
        %1928 = vmatpush1.msra.mxu0 0.0
        %1929 = vmatprep.subr.mxu0 0.0
        %1930 = vmatpush1.msra.mxu0 0.0
        %1931 = vmatprep.subr.mxu0 0.0
        %1932 = vmatpush1.msra.mxu0 0.0
        %1933 = vmatprep.subr.mxu0 0.0
        %1934 = vmatpush1.msra.mxu0 0.0
        %1935 = vmatprep.subr.mxu0 0.0
        %1936 = vmatpush1.msra.mxu0 0.0
        %1937 = vmatprep.subr.mxu0 0.0
        %1938 = vmatpush1.msra.mxu0 0.0
        %1939 = vmatprep.subr.mxu0 0.0
        %1940 = vmatpush1.msra.mxu0 0.0
        %1941 = vmatprep.subr.mxu0 0.0
        %1942 = vmatpush1.msra.mxu0 0.0
        %1943 = vmatprep.subr.mxu0 0.0
        %1944 = vmatpush1.msra.mxu0 0.0
        %1945 = vmatprep.subr.mxu0 0.0
        %1946 = vmatpush1.msra.mxu0 0.0
        %1947 = vmatprep.subr.mxu0 0.0
        %1948 = vmatpush1.msra.mxu0 0.0
        %1949 = vmatprep.subr.mxu0 0.0
        %1950 = vmatpush1.msra.mxu0 0.0
        %1951 = vmatprep.subr.mxu0 0.0
        %1952 = vmatpush1.msra.mxu0 0.0
        %1953 = vmatprep.subr.mxu0 0.0
        %1954 = vmatpush1.msra.mxu0 0.0
        %1955 = vmatprep.subr.mxu0 0.0
        %1956 = vmatpush1.msra.mxu0 0.0
        %1957 = vmatprep.subr.mxu0 0.0
        %1958 = vmatpush1.msra.mxu0 0.0
        %1959 = vmatprep.subr.mxu0 0.0
        %1960 = vmatpush1.msra.mxu0 0.0
        %1961 = vmatprep.subr.mxu0 0.0
        %1962 = vmatpush1.msra.mxu0 0.0
        %1963 = vmatprep.subr.mxu0 0.0
        %1964 = vmatpush1.msra.mxu0 0.0
        %1965 = vmatprep.subr.mxu0 0.0
        %1966 = vmatpush1.msra.mxu0 0.0
        %1967 = vmatprep.subr.mxu0 0.0
        %1968 = vmatpush1.msra.mxu0 0.0
        %1969 = vmatprep.subr.mxu0 0.0
        %1970 = vmatpush1.msra.mxu0 0.0
        %1971 = vmatprep.subr.mxu0 0.0
        %1972 = vmatpush1.msra.mxu0 0.0
        %1973 = vmatprep.subr.mxu0 0.0
        %1974 = vmatpush1.msra.mxu0 0.0
        %1975 = vmatprep.subr.mxu0 0.0
        %1976 = vmatpush1.msra.mxu0 0.0
        %1977 = vmatprep.mubr.f32.mxu0 0.0
        %v1978 = vand.u32 %v1811, 4294901760
        %1979 = vmatmul.mubr.f32.gmra.mrb[0].mxu0 %v1978
        %v1980 = vpop.f32.mrb[0].mxu0
        %v1981 = vadd.f32 %v1890, %v1980
        %v1982 = vpop.f32.mrb[0].mxu0
        %1983 = vmatprep.mubr.f32.mxu0 0.0
        %v1984 = vand.u32 %v1814, 4294901760
        %1985 = vmatmul.mubr.f32.gmra.mrb[0].mxu0 %v1984
        %v1986 = vpop.f32.mrb[0].mxu0
        %v1987 = vadd.f32 %v1900, %v1986
        %v1988 = vpop.f32.mrb[0].mxu0
        %1989 = vdwg.mxu0
        %1990 = vmatprep.subr.mxu0 0.0
        %v1991 = vand.u32 %v289, 4294901760
        %v1992 = vsub.f32 %v289, %v1991
        %1993 = vmatpush1.msra.mxu0 %v1992
        %1994 = vmatprep.subr.mxu0 0.0
        %v1995 = vand.u32 %v290, 4294901760
        %v1996 = vsub.f32 %v290, %v1995
        %1997 = vmatpush1.msra.mxu0 %v1996
        %1998 = vmatprep.subr.mxu0 0.0
        %1999 = vmatpush1.msra.mxu0 0.0
        %2000 = vmatprep.subr.mxu0 0.0
        %2001 = vmatpush1.msra.mxu0 0.0
        %2002 = vmatprep.subr.mxu0 0.0
        %2003 = vmatpush1.msra.mxu0 0.0
        %2004 = vmatprep.subr.mxu0 0.0
        %2005 = vmatpush1.msra.mxu0 0.0
        %2006 = vmatprep.subr.mxu0 0.0
        %2007 = vmatpush1.msra.mxu0 0.0
        %2008 = vmatprep.subr.mxu0 0.0
        %2009 = vmatpush1.msra.mxu0 0.0
        %2010 = vmatprep.subr.mxu0 0.0
        %2011 = vmatpush1.msra.mxu0 0.0
        %2012 = vmatprep.subr.mxu0 0.0
        %2013 = vmatpush1.msra.mxu0 0.0
        %2014 = vmatprep.subr.mxu0 0.0
        %2015 = vmatpush1.msra.mxu0 0.0
        %2016 = vmatprep.subr.mxu0 0.0
        %2017 = vmatpush1.msra.mxu0 0.0
        %2018 = vmatprep.subr.mxu0 0.0
        %2019 = vmatpush1.msra.mxu0 0.0
        %2020 = vmatprep.subr.mxu0 0.0
        %2021 = vmatpush1.msra.mxu0 0.0
        %2022 = vmatprep.subr.mxu0 0.0
        %2023 = vmatpush1.msra.mxu0 0.0
        %2024 = vmatprep.subr.mxu0 0.0
        %2025 = vmatpush1.msra.mxu0 0.0
        %2026 = vmatprep.subr.mxu0 0.0
        %2027 = vmatpush1.msra.mxu0 0.0
        %2028 = vmatprep.subr.mxu0 0.0
        %2029 = vmatpush1.msra.mxu0 0.0
        %2030 = vmatprep.subr.mxu0 0.0
        %2031 = vmatpush1.msra.mxu0 0.0
        %2032 = vmatprep.subr.mxu0 0.0
        %2033 = vmatpush1.msra.mxu0 0.0
        %2034 = vmatprep.subr.mxu0 0.0
        %2035 = vmatpush1.msra.mxu0 0.0
        %2036 = vmatprep.subr.mxu0 0.0
        %2037 = vmatpush1.msra.mxu0 0.0
        %2038 = vmatprep.subr.mxu0 0.0
        %2039 = vmatpush1.msra.mxu0 0.0
        %2040 = vmatprep.subr.mxu0 0.0
        %2041 = vmatpush1.msra.mxu0 0.0
        %2042 = vmatprep.subr.mxu0 0.0
        %2043 = vmatpush1.msra.mxu0 0.0
        %2044 = vmatprep.subr.mxu0 0.0
        %2045 = vmatpush1.msra.mxu0 0.0
        %2046 = vmatprep.subr.mxu0 0.0
        %2047 = vmatpush1.msra.mxu0 0.0
        %2048 = vmatprep.subr.mxu0 0.0
        %2049 = vmatpush1.msra.mxu0 0.0
        %2050 = vmatprep.subr.mxu0 0.0
        %2051 = vmatpush1.msra.mxu0 0.0
        %2052 = vmatprep.subr.mxu0 0.0
        %2053 = vmatpush1.msra.mxu0 0.0
        %2054 = vmatprep.subr.mxu0 0.0
        %2055 = vmatpush1.msra.mxu0 0.0
        %2056 = vmatprep.subr.mxu0 0.0
        %2057 = vmatpush1.msra.mxu0 0.0
        %2058 = vmatprep.mubr.f32.mxu0 0.0
        %v2059 = vand.u32 %v1811, 4294901760
        %v2060 = vsub.f32 %v1811, %v2059
        %2061 = vmatmul.mubr.f32.gmra.mrb[0].mxu0 %v2060
        %v2062 = vpop.f32.mrb[0].mxu0
        %v2063 = vadd.f32 %v1981, %v2062
        %v2064 = vpop.f32.mrb[0].mxu0
        %2065 = vmatprep.mubr.f32.mxu0 0.0
        %v2066 = vand.u32 %v1814, 4294901760
        %v2067 = vsub.f32 %v1814, %v2066
        %2068 = vmatmul.mubr.f32.gmra.mrb[0].mxu0 %v2067
        %v2069 = vpop.f32.mrb[0].mxu0
        %v2070 = vadd.f32 %v1987, %v2069
        %v2071 = vpop.f32.mrb[0].mxu0
        %2072 = vdwg.mxu0
        %2073 = vmatprep.subr.mxu0 0.0
        %v2074 = vand.u32 %v289, 4294901760
        %2075 = vmatpush1.msra.mxu0 %v2074
        %2076 = vmatprep.subr.mxu0 0.0
        %v2077 = vand.u32 %v290, 4294901760
        %2078 = vmatpush1.msra.mxu0 %v2077
        %2079 = vmatprep.subr.mxu0 0.0
        %2080 = vmatpush1.msra.mxu0 0.0
        %2081 = vmatprep.subr.mxu0 0.0
        %2082 = vmatpush1.msra.mxu0 0.0
        %2083 = vmatprep.subr.mxu0 0.0
        %2084 = vmatpush1.msra.mxu0 0.0
        %2085 = vmatprep.subr.mxu0 0.0
        %2086 = vmatpush1.msra.mxu0 0.0
        %2087 = vmatprep.subr.mxu0 0.0
        %2088 = vmatpush1.msra.mxu0 0.0
        %2089 = vmatprep.subr.mxu0 0.0
        %2090 = vmatpush1.msra.mxu0 0.0
        %2091 = vmatprep.subr.mxu0 0.0
        %2092 = vmatpush1.msra.mxu0 0.0
        %2093 = vmatprep.subr.mxu0 0.0
        %2094 = vmatpush1.msra.mxu0 0.0
        %2095 = vmatprep.subr.mxu0 0.0
        %2096 = vmatpush1.msra.mxu0 0.0
        %2097 = vmatprep.subr.mxu0 0.0
        %2098 = vmatpush1.msra.mxu0 0.0
        %2099 = vmatprep.subr.mxu0 0.0
        %2100 = vmatpush1.msra.mxu0 0.0
        %2101 = vmatprep.subr.mxu0 0.0
        %2102 = vmatpush1.msra.mxu0 0.0
        %2103 = vmatprep.subr.mxu0 0.0
        %2104 = vmatpush1.msra.mxu0 0.0
        %2105 = vmatprep.subr.mxu0 0.0
        %2106 = vmatpush1.msra.mxu0 0.0
        %2107 = vmatprep.subr.mxu0 0.0
        %2108 = vmatpush1.msra.mxu0 0.0
        %2109 = vmatprep.subr.mxu0 0.0
        %2110 = vmatpush1.msra.mxu0 0.0
        %2111 = vmatprep.subr.mxu0 0.0
        %2112 = vmatpush1.msra.mxu0 0.0
        %2113 = vmatprep.subr.mxu0 0.0
        %2114 = vmatpush1.msra.mxu0 0.0
        %2115 = vmatprep.subr.mxu0 0.0
        %2116 = vmatpush1.msra.mxu0 0.0
        %2117 = vmatprep.subr.mxu0 0.0
        %2118 = vmatpush1.msra.mxu0 0.0
        %2119 = vmatprep.subr.mxu0 0.0
        %2120 = vmatpush1.msra.mxu0 0.0
        %2121 = vmatprep.subr.mxu0 0.0
        %2122 = vmatpush1.msra.mxu0 0.0
        %2123 = vmatprep.subr.mxu0 0.0
        %2124 = vmatpush1.msra.mxu0 0.0
        %2125 = vmatprep.subr.mxu0 0.0
        %2126 = vmatpush1.msra.mxu0 0.0
        %2127 = vmatprep.subr.mxu0 0.0
        %2128 = vmatpush1.msra.mxu0 0.0
        %2129 = vmatprep.subr.mxu0 0.0
        %2130 = vmatpush1.msra.mxu0 0.0
        %2131 = vmatprep.subr.mxu0 0.0
        %2132 = vmatpush1.msra.mxu0 0.0
        %2133 = vmatprep.subr.mxu0 0.0
        %2134 = vmatpush1.msra.mxu0 0.0
        %2135 = vmatprep.subr.mxu0 0.0
        %2136 = vmatpush1.msra.mxu0 0.0
        %2137 = vmatprep.subr.mxu0 0.0
        %2138 = vmatpush1.msra.mxu0 0.0
        %2139 = vmatprep.mubr.f32.mxu0 0.0
        %v2140 = vand.u32 %v1811, 4294901760
        %v2141 = vsub.f32 %v1811, %v2140
        %v2142 = vand.u32 %v2141, 4294901760
        %2143 = vmatmul.mubr.f32.gmra.mrb[0].mxu0 %v2142
        %v2144 = vpop.f32.mrb[0].mxu0
        %v2145 = vadd.f32 %v2063, %v2144
        %v2146 = vpop.f32.mrb[0].mxu0
        %2147 = vmatprep.mubr.f32.mxu0 0.0
        %v2148 = vand.u32 %v1814, 4294901760
        %v2149 = vsub.f32 %v1814, %v2148
        %v2150 = vand.u32 %v2149, 4294901760
        %2151 = vmatmul.mubr.f32.gmra.mrb[0].mxu0 %v2150
        %v2152 = vpop.f32.mrb[0].mxu0
        %v2153 = vadd.f32 %v2070, %v2152
        %v2154 = vpop.f32.mrb[0].mxu0
        %2155 = vdwg.mxu0
        %2156 = vmatprep.subr.mxu0 0.0
        %v2157 = vand.u32 %v289, 4294901760
        %v2158 = vsub.f32 %v289, %v2157
        %v2159 = vand.u32 %v2158, 4294901760
        %2160 = vmatpush1.msra.mxu0 %v2159
        %2161 = vmatprep.subr.mxu0 0.0
        %v2162 = vand.u32 %v290, 4294901760
        %v2163 = vsub.f32 %v290, %v2162
        %v2164 = vand.u32 %v2163, 4294901760
        %2165 = vmatpush1.msra.mxu0 %v2164
        %2166 = vmatprep.subr.mxu0 0.0
        %2167 = vmatpush1.msra.mxu0 0.0
        %2168 = vmatprep.subr.mxu0 0.0
        %2169 = vmatpush1.msra.mxu0 0.0
        %2170 = vmatprep.subr.mxu0 0.0
        %2171 = vmatpush1.msra.mxu0 0.0
        %2172 = vmatprep.subr.mxu0 0.0
        %2173 = vmatpush1.msra.mxu0 0.0
        %2174 = vmatprep.subr.mxu0 0.0
        %2175 = vmatpush1.msra.mxu0 0.0
        %2176 = vmatprep.subr.mxu0 0.0
        %2177 = vmatpush1.msra.mxu0 0.0
        %2178 = vmatprep.subr.mxu0 0.0
        %2179 = vmatpush1.msra.mxu0 0.0
        %2180 = vmatprep.subr.mxu0 0.0
        %2181 = vmatpush1.msra.mxu0 0.0
        %2182 = vmatprep.subr.mxu0 0.0
        %2183 = vmatpush1.msra.mxu0 0.0
        %2184 = vmatprep.subr.mxu0 0.0
        %2185 = vmatpush1.msra.mxu0 0.0
        %2186 = vmatprep.subr.mxu0 0.0
        %2187 = vmatpush1.msra.mxu0 0.0
        %2188 = vmatprep.subr.mxu0 0.0
        %2189 = vmatpush1.msra.mxu0 0.0
        %2190 = vmatprep.subr.mxu0 0.0
        %2191 = vmatpush1.msra.mxu0 0.0
        %2192 = vmatprep.subr.mxu0 0.0
        %2193 = vmatpush1.msra.mxu0 0.0
        %2194 = vmatprep.subr.mxu0 0.0
        %2195 = vmatpush1.msra.mxu0 0.0
        %2196 = vmatprep.subr.mxu0 0.0
        %2197 = vmatpush1.msra.mxu0 0.0
        %2198 = vmatprep.subr.mxu0 0.0
        %2199 = vmatpush1.msra.mxu0 0.0
        %2200 = vmatprep.subr.mxu0 0.0
        %2201 = vmatpush1.msra.mxu0 0.0
        %2202 = vmatprep.subr.mxu0 0.0
        %2203 = vmatpush1.msra.mxu0 0.0
        %2204 = vmatprep.subr.mxu0 0.0
        %2205 = vmatpush1.msra.mxu0 0.0
        %2206 = vmatprep.subr.mxu0 0.0
        %2207 = vmatpush1.msra.mxu0 0.0
        %2208 = vmatprep.subr.mxu0 0.0
        %2209 = vmatpush1.msra.mxu0 0.0
        %2210 = vmatprep.subr.mxu0 0.0
        %2211 = vmatpush1.msra.mxu0 0.0
        %2212 = vmatprep.subr.mxu0 0.0
        %2213 = vmatpush1.msra.mxu0 0.0
        %2214 = vmatprep.subr.mxu0 0.0
        %2215 = vmatpush1.msra.mxu0 0.0
        %2216 = vmatprep.subr.mxu0 0.0
        %2217 = vmatpush1.msra.mxu0 0.0
        %2218 = vmatprep.subr.mxu0 0.0
        %2219 = vmatpush1.msra.mxu0 0.0
        %2220 = vmatprep.subr.mxu0 0.0
        %2221 = vmatpush1.msra.mxu0 0.0
        %2222 = vmatprep.subr.mxu0 0.0
        %2223 = vmatpush1.msra.mxu0 0.0
        %2224 = vmatprep.subr.mxu0 0.0
        %2225 = vmatpush1.msra.mxu0 0.0
        %2226 = vmatprep.mubr.f32.mxu0 0.0
        %v2227 = vand.u32 %v1811, 4294901760
        %2228 = vmatmul.mubr.f32.gmra.mrb[0].mxu0 %v2227
        %v2229 = vpop.f32.mrb[0].mxu0
        %v2230 = vadd.f32 %v2145, %v2229
        %v2231 = vpop.f32.mrb[0].mxu0
        %2232 = vmatprep.mubr.f32.mxu0 0.0
        %v2233 = vand.u32 %v1814, 4294901760
        %2234 = vmatmul.mubr.f32.gmra.mrb[0].mxu0 %v2233
        %v2235 = vpop.f32.mrb[0].mxu0
        %v2236 = vadd.f32 %v2153, %v2235
        %v2237 = vpop.f32.mrb[0].mxu0
        %2238 = vdwg.mxu0
        %2239 = vmatprep.subr.mxu0 0.0
        %v2240 = vand.u32 %v289, 4294901760
        %2241 = vmatpush1.msra.mxu0 %v2240
        %2242 = vmatprep.subr.mxu0 0.0
        %v2243 = vand.u32 %v290, 4294901760
        %2244 = vmatpush1.msra.mxu0 %v2243
        %2245 = vmatprep.subr.mxu0 0.0
        %2246 = vmatpush1.msra.mxu0 0.0
        %2247 = vmatprep.subr.mxu0 0.0
        %2248 = vmatpush1.msra.mxu0 0.0
        %2249 = vmatprep.subr.mxu0 0.0
        %2250 = vmatpush1.msra.mxu0 0.0
        %2251 = vmatprep.subr.mxu0 0.0
        %2252 = vmatpush1.msra.mxu0 0.0
        %2253 = vmatprep.subr.mxu0 0.0
        %2254 = vmatpush1.msra.mxu0 0.0
        %2255 = vmatprep.subr.mxu0 0.0
        %2256 = vmatpush1.msra.mxu0 0.0
        %2257 = vmatprep.subr.mxu0 0.0
        %2258 = vmatpush1.msra.mxu0 0.0
        %2259 = vmatprep.subr.mxu0 0.0
        %2260 = vmatpush1.msra.mxu0 0.0
        %2261 = vmatprep.subr.mxu0 0.0
        %2262 = vmatpush1.msra.mxu0 0.0
        %2263 = vmatprep.subr.mxu0 0.0
        %2264 = vmatpush1.msra.mxu0 0.0
        %2265 = vmatprep.subr.mxu0 0.0
        %2266 = vmatpush1.msra.mxu0 0.0
        %2267 = vmatprep.subr.mxu0 0.0
        %2268 = vmatpush1.msra.mxu0 0.0
        %2269 = vmatprep.subr.mxu0 0.0
        %2270 = vmatpush1.msra.mxu0 0.0
        %2271 = vmatprep.subr.mxu0 0.0
        %2272 = vmatpush1.msra.mxu0 0.0
        %2273 = vmatprep.subr.mxu0 0.0
        %2274 = vmatpush1.msra.mxu0 0.0
        %2275 = vmatprep.subr.mxu0 0.0
        %2276 = vmatpush1.msra.mxu0 0.0
        %2277 = vmatprep.subr.mxu0 0.0
        %2278 = vmatpush1.msra.mxu0 0.0
        %2279 = vmatprep.subr.mxu0 0.0
        %2280 = vmatpush1.msra.mxu0 0.0
        %2281 = vmatprep.subr.mxu0 0.0
        %2282 = vmatpush1.msra.mxu0 0.0
        %2283 = vmatprep.subr.mxu0 0.0
        %2284 = vmatpush1.msra.mxu0 0.0
        %2285 = vmatprep.subr.mxu0 0.0
        %2286 = vmatpush1.msra.mxu0 0.0
        %2287 = vmatprep.subr.mxu0 0.0
        %2288 = vmatpush1.msra.mxu0 0.0
        %2289 = vmatprep.subr.mxu0 0.0
        %2290 = vmatpush1.msra.mxu0 0.0
        %2291 = vmatprep.subr.mxu0 0.0
        %2292 = vmatpush1.msra.mxu0 0.0
        %2293 = vmatprep.subr.mxu0 0.0
        %2294 = vmatpush1.msra.mxu0 0.0
        %2295 = vmatprep.subr.mxu0 0.0
        %2296 = vmatpush1.msra.mxu0 0.0
        %2297 = vmatprep.subr.mxu0 0.0
        %2298 = vmatpush1.msra.mxu0 0.0
        %2299 = vmatprep.subr.mxu0 0.0
        %2300 = vmatpush1.msra.mxu0 0.0
        %2301 = vmatprep.subr.mxu0 0.0
        %2302 = vmatpush1.msra.mxu0 0.0
        %2303 = vmatprep.subr.mxu0 0.0
        %2304 = vmatpush1.msra.mxu0 0.0
        %2305 = vmatprep.mubr.f32.mxu0 0.0
        %v2306 = vand.u32 %v1811, 4294901760
        %2307 = vmatmul.mubr.f32.gmra.mrb[0].mxu0 %v2306
        %v2308 = vpop.f32.mrb[0].mxu0
        %v2309 = vadd.f32 %v2230, %v2308
        %v2310 = vpop.f32.mrb[0].mxu0
        %2311 = vmatprep.mubr.f32.mxu0 0.0
        %v2312 = vand.u32 %v1814, 4294901760
        %2313 = vmatmul.mubr.f32.gmra.mrb[0].mxu0 %v2312
        %v2314 = vpop.f32.mrb[0].mxu0
        %v2315 = vadd.f32 %v2236, %v2314
        %v2316 = vpop.f32.mrb[0].mxu0
        %2317 = vdwg.mxu0
        %v2318 = vmul.f32 %v283, %v283
        %v2319 = vmul.f32 %v284, %v284
        %2320 = vmatprep.subr.mxu0 0.0
        %v2321 = vand.u32 %v2318, 4294901760
        %2322 = vmatpush1.msra.mxu0 %v2321
        %2323 = vmatprep.subr.mxu0 0.0
        %v2324 = vand.u32 %v2319, 4294901760
        %2325 = vmatpush1.msra.mxu0 %v2324
        %2326 = vmatprep.subr.mxu0 0.0
        %2327 = vmatpush1.msra.mxu0 0.0
        %2328 = vmatprep.subr.mxu0 0.0
        %2329 = vmatpush1.msra.mxu0 0.0
        %2330 = vmatprep.subr.mxu0 0.0
        %2331 = vmatpush1.msra.mxu0 0.0
        %2332 = vmatprep.subr.mxu0 0.0
        %2333 = vmatpush1.msra.mxu0 0.0
        %2334 = vmatprep.subr.mxu0 0.0
        %2335 = vmatpush1.msra.mxu0 0.0
        %2336 = vmatprep.subr.mxu0 0.0
        %2337 = vmatpush1.msra.mxu0 0.0
        %2338 = vmatprep.subr.mxu0 0.0
        %2339 = vmatpush1.msra.mxu0 0.0
        %2340 = vmatprep.subr.mxu0 0.0
        %2341 = vmatpush1.msra.mxu0 0.0
        %2342 = vmatprep.subr.mxu0 0.0
        %2343 = vmatpush1.msra.mxu0 0.0
        %2344 = vmatprep.subr.mxu0 0.0
        %2345 = vmatpush1.msra.mxu0 0.0
        %2346 = vmatprep.subr.mxu0 0.0
        %2347 = vmatpush1.msra.mxu0 0.0
        %2348 = vmatprep.subr.mxu0 0.0
        %2349 = vmatpush1.msra.mxu0 0.0
        %2350 = vmatprep.subr.mxu0 0.0
        %2351 = vmatpush1.msra.mxu0 0.0
        %2352 = vmatprep.subr.mxu0 0.0
        %2353 = vmatpush1.msra.mxu0 0.0
        %2354 = vmatprep.subr.mxu0 0.0
        %2355 = vmatpush1.msra.mxu0 0.0
        %2356 = vmatprep.subr.mxu0 0.0
        %2357 = vmatpush1.msra.mxu0 0.0
        %2358 = vmatprep.subr.mxu0 0.0
        %2359 = vmatpush1.msra.mxu0 0.0
        %2360 = vmatprep.subr.mxu0 0.0
        %2361 = vmatpush1.msra.mxu0 0.0
        %2362 = vmatprep.subr.mxu0 0.0
        %2363 = vmatpush1.msra.mxu0 0.0
        %2364 = vmatprep.subr.mxu0 0.0
        %2365 = vmatpush1.msra.mxu0 0.0
        %2366 = vmatprep.subr.mxu0 0.0
        %2367 = vmatpush1.msra.mxu0 0.0
        %2368 = vmatprep.subr.mxu0 0.0
        %2369 = vmatpush1.msra.mxu0 0.0
        %2370 = vmatprep.subr.mxu0 0.0
        %2371 = vmatpush1.msra.mxu0 0.0
        %2372 = vmatprep.subr.mxu0 0.0
        %2373 = vmatpush1.msra.mxu0 0.0
        %2374 = vmatprep.subr.mxu0 0.0
        %2375 = vmatpush1.msra.mxu0 0.0
        %2376 = vmatprep.subr.mxu0 0.0
        %2377 = vmatpush1.msra.mxu0 0.0
        %2378 = vmatprep.subr.mxu0 0.0
        %2379 = vmatpush1.msra.mxu0 0.0
        %2380 = vmatprep.subr.mxu0 0.0
        %2381 = vmatpush1.msra.mxu0 0.0
        %2382 = vmatprep.subr.mxu0 0.0
        %2383 = vmatpush1.msra.mxu0 0.0
        %2384 = vmatprep.subr.mxu0 0.0
        %2385 = vmatpush1.msra.mxu0 0.0
        %2386 = vmatprep.mubr.f32.mxu0 0.0
        %v2387 = vand.u32 %v293, 4294901760
        %v2388 = vsub.f32 %v293, %v2387
        %v2389 = vand.u32 %v2388, 4294901760
        %v2390 = vsub.f32 %v2388, %v2389
        %v2391 = vand.u32 %v2390, 4294901760
        %2392 = vmatmul.mubr.f32.gmra.mrb[0].mxu0 %v2391
        %v2393 = vpop.f32.mrb[0].mxu0
        %v2394 = vadd.f32 0.0, %v2393
        %v2395 = vpop.f32.mrb[0].mxu0
        %2396 = vmatprep.mubr.f32.mxu0 0.0
        %v2397 = vand.u32 %v296, 4294901760
        %v2398 = vsub.f32 %v296, %v2397
        %v2399 = vand.u32 %v2398, 4294901760
        %v2400 = vsub.f32 %v2398, %v2399
        %v2401 = vand.u32 %v2400, 4294901760
        %2402 = vmatmul.mubr.f32.gmra.mrb[0].mxu0 %v2401
        %v2403 = vpop.f32.mrb[0].mxu0
        %v2404 = vadd.f32 0.0, %v2403
        %v2405 = vpop.f32.mrb[0].mxu0
        %2406 = vdwg.mxu0
        %2407 = vmatprep.subr.mxu0 0.0
        %v2408 = vand.u32 %v2318, 4294901760
        %v2409 = vsub.f32 %v2318, %v2408
        %v2410 = vand.u32 %v2409, 4294901760
        %v2411 = vsub.f32 %v2409, %v2410
        %v2412 = vand.u32 %v2411, 4294901760
        %2413 = vmatpush1.msra.mxu0 %v2412
        %2414 = vmatprep.subr.mxu0 0.0
        %v2415 = vand.u32 %v2319, 4294901760
        %v2416 = vsub.f32 %v2319, %v2415
        %v2417 = vand.u32 %v2416, 4294901760
        %v2418 = vsub.f32 %v2416, %v2417
        %v2419 = vand.u32 %v2418, 4294901760
        %2420 = vmatpush1.msra.mxu0 %v2419
        %2421 = vmatprep.subr.mxu0 0.0
        %2422 = vmatpush1.msra.mxu0 0.0
        %2423 = vmatprep.subr.mxu0 0.0
        %2424 = vmatpush1.msra.mxu0 0.0
        %2425 = vmatprep.subr.mxu0 0.0
        %2426 = vmatpush1.msra.mxu0 0.0
        %2427 = vmatprep.subr.mxu0 0.0
        %2428 = vmatpush1.msra.mxu0 0.0
        %2429 = vmatprep.subr.mxu0 0.0
        %2430 = vmatpush1.msra.mxu0 0.0
        %2431 = vmatprep.subr.mxu0 0.0
        %2432 = vmatpush1.msra.mxu0 0.0
        %2433 = vmatprep.subr.mxu0 0.0
        %2434 = vmatpush1.msra.mxu0 0.0
        %2435 = vmatprep.subr.mxu0 0.0
        %2436 = vmatpush1.msra.mxu0 0.0
        %2437 = vmatprep.subr.mxu0 0.0
        %2438 = vmatpush1.msra.mxu0 0.0
        %2439 = vmatprep.subr.mxu0 0.0
        %2440 = vmatpush1.msra.mxu0 0.0
        %2441 = vmatprep.subr.mxu0 0.0
        %2442 = vmatpush1.msra.mxu0 0.0
        %2443 = vmatprep.subr.mxu0 0.0
        %2444 = vmatpush1.msra.mxu0 0.0
        %2445 = vmatprep.subr.mxu0 0.0
        %2446 = vmatpush1.msra.mxu0 0.0
        %2447 = vmatprep.subr.mxu0 0.0
        %2448 = vmatpush1.msra.mxu0 0.0
        %2449 = vmatprep.subr.mxu0 0.0
        %2450 = vmatpush1.msra.mxu0 0.0
        %2451 = vmatprep.subr.mxu0 0.0
        %2452 = vmatpush1.msra.mxu0 0.0
        %2453 = vmatprep.subr.mxu0 0.0
        %2454 = vmatpush1.msra.mxu0 0.0
        %2455 = vmatprep.subr.mxu0 0.0
        %2456 = vmatpush1.msra.mxu0 0.0
        %2457 = vmatprep.subr.mxu0 0.0
        %2458 = vmatpush1.msra.mxu0 0.0
        %2459 = vmatprep.subr.mxu0 0.0
        %2460 = vmatpush1.msra.mxu0 0.0
        %2461 = vmatprep.subr.mxu0 0.0
        %2462 = vmatpush1.msra.mxu0 0.0
        %2463 = vmatprep.subr.mxu0 0.0
        %2464 = vmatpush1.msra.mxu0 0.0
        %2465 = vmatprep.subr.mxu0 0.0
        %2466 = vmatpush1.msra.mxu0 0.0
        %2467 = vmatprep.subr.mxu0 0.0
        %2468 = vmatpush1.msra.mxu0 0.0
        %2469 = vmatprep.subr.mxu0 0.0
        %2470 = vmatpush1.msra.mxu0 0.0
        %2471 = vmatprep.subr.mxu0 0.0
        %2472 = vmatpush1.msra.mxu0 0.0
        %2473 = vmatprep.subr.mxu0 0.0
        %2474 = vmatpush1.msra.mxu0 0.0
        %2475 = vmatprep.subr.mxu0 0.0
        %2476 = vmatpush1.msra.mxu0 0.0
        %2477 = vmatprep.subr.mxu0 0.0
        %2478 = vmatpush1.msra.mxu0 0.0
        %2479 = vmatprep.subr.mxu0 0.0
        %2480 = vmatpush1.msra.mxu0 0.0
        %2481 = vmatprep.mubr.f32.mxu0 0.0
        %v2482 = vand.u32 %v293, 4294901760
        %2483 = vmatmul.mubr.f32.gmra.mrb[0].mxu0 %v2482
        %v2484 = vpop.f32.mrb[0].mxu0
        %v2485 = vadd.f32 %v2394, %v2484
        %v2486 = vpop.f32.mrb[0].mxu0
        %2487 = vmatprep.mubr.f32.mxu0 0.0
        %v2488 = vand.u32 %v296, 4294901760
        %2489 = vmatmul.mubr.f32.gmra.mrb[0].mxu0 %v2488
        %v2490 = vpop.f32.mrb[0].mxu0
        %v2491 = vadd.f32 %v2404, %v2490
        %v2492 = vpop.f32.mrb[0].mxu0
        %2493 = vdwg.mxu0
        %2494 = vmatprep.subr.mxu0 0.0
        %v2495 = vand.u32 %v2318, 4294901760
        %v2496 = vsub.f32 %v2318, %v2495
        %2497 = vmatpush1.msra.mxu0 %v2496
        %2498 = vmatprep.subr.mxu0 0.0
        %v2499 = vand.u32 %v2319, 4294901760
        %v2500 = vsub.f32 %v2319, %v2499
        %2501 = vmatpush1.msra.mxu0 %v2500
        %2502 = vmatprep.subr.mxu0 0.0
        %2503 = vmatpush1.msra.mxu0 0.0
        %2504 = vmatprep.subr.mxu0 0.0
        %2505 = vmatpush1.msra.mxu0 0.0
        %2506 = vmatprep.subr.mxu0 0.0
        %2507 = vmatpush1.msra.mxu0 0.0
        %2508 = vmatprep.subr.mxu0 0.0
        %2509 = vmatpush1.msra.mxu0 0.0
        %2510 = vmatprep.subr.mxu0 0.0
        %2511 = vmatpush1.msra.mxu0 0.0
        %2512 = vmatprep.subr.mxu0 0.0
        %2513 = vmatpush1.msra.mxu0 0.0
        %2514 = vmatprep.subr.mxu0 0.0
        %2515 = vmatpush1.msra.mxu0 0.0
        %2516 = vmatprep.subr.mxu0 0.0
        %2517 = vmatpush1.msra.mxu0 0.0
        %2518 = vmatprep.subr.mxu0 0.0
        %2519 = vmatpush1.msra.mxu0 0.0
        %2520 = vmatprep.subr.mxu0 0.0
        %2521 = vmatpush1.msra.mxu0 0.0
        %2522 = vmatprep.subr.mxu0 0.0
        %2523 = vmatpush1.msra.mxu0 0.0
        %2524 = vmatprep.subr.mxu0 0.0
        %2525 = vmatpush1.msra.mxu0 0.0
        %2526 = vmatprep.subr.mxu0 0.0
        %2527 = vmatpush1.msra.mxu0 0.0
        %2528 = vmatprep.subr.mxu0 0.0
        %2529 = vmatpush1.msra.mxu0 0.0
        %2530 = vmatprep.subr.mxu0 0.0
        %2531 = vmatpush1.msra.mxu0 0.0
        %2532 = vmatprep.subr.mxu0 0.0
        %2533 = vmatpush1.msra.mxu0 0.0
        %2534 = vmatprep.subr.mxu0 0.0
        %2535 = vmatpush1.msra.mxu0 0.0
        %2536 = vmatprep.subr.mxu0 0.0
        %2537 = vmatpush1.msra.mxu0 0.0
        %2538 = vmatprep.subr.mxu0 0.0
        %2539 = vmatpush1.msra.mxu0 0.0
        %2540 = vmatprep.subr.mxu0 0.0
        %2541 = vmatpush1.msra.mxu0 0.0
        %2542 = vmatprep.subr.mxu0 0.0
        %2543 = vmatpush1.msra.mxu0 0.0
        %2544 = vmatprep.subr.mxu0 0.0
        %2545 = vmatpush1.msra.mxu0 0.0
        %2546 = vmatprep.subr.mxu0 0.0
        %2547 = vmatpush1.msra.mxu0 0.0
        %2548 = vmatprep.subr.mxu0 0.0
        %2549 = vmatpush1.msra.mxu0 0.0
        %2550 = vmatprep.subr.mxu0 0.0
        %2551 = vmatpush1.msra.mxu0 0.0
        %2552 = vmatprep.subr.mxu0 0.0
        %2553 = vmatpush1.msra.mxu0 0.0
        %2554 = vmatprep.subr.mxu0 0.0
        %2555 = vmatpush1.msra.mxu0 0.0
        %2556 = vmatprep.subr.mxu0 0.0
        %2557 = vmatpush1.msra.mxu0 0.0
        %2558 = vmatprep.subr.mxu0 0.0
        %2559 = vmatpush1.msra.mxu0 0.0
        %2560 = vmatprep.subr.mxu0 0.0
        %2561 = vmatpush1.msra.mxu0 0.0
        %2562 = vmatprep.mubr.f32.mxu0 0.0
        %v2563 = vand.u32 %v293, 4294901760
        %v2564 = vsub.f32 %v293, %v2563
        %2565 = vmatmul.mubr.f32.gmra.mrb[0].mxu0 %v2564
        %v2566 = vpop.f32.mrb[0].mxu0
        %v2567 = vadd.f32 %v2485, %v2566
        %v2568 = vpop.f32.mrb[0].mxu0
        %2569 = vmatprep.mubr.f32.mxu0 0.0
        %v2570 = vand.u32 %v296, 4294901760
        %v2571 = vsub.f32 %v296, %v2570
        %2572 = vmatmul.mubr.f32.gmra.mrb[0].mxu0 %v2571
        %v2573 = vpop.f32.mrb[0].mxu0
        %v2574 = vadd.f32 %v2491, %v2573
        %v2575 = vpop.f32.mrb[0].mxu0
        %2576 = vdwg.mxu0
        %2577 = vmatprep.subr.mxu0 0.0
        %v2578 = vand.u32 %v2318, 4294901760
        %2579 = vmatpush1.msra.mxu0 %v2578
        %2580 = vmatprep.subr.mxu0 0.0
        %v2581 = vand.u32 %v2319, 4294901760
        %2582 = vmatpush1.msra.mxu0 %v2581
        %2583 = vmatprep.subr.mxu0 0.0
        %2584 = vmatpush1.msra.mxu0 0.0
        %2585 = vmatprep.subr.mxu0 0.0
        %2586 = vmatpush1.msra.mxu0 0.0
        %2587 = vmatprep.subr.mxu0 0.0
        %2588 = vmatpush1.msra.mxu0 0.0
        %2589 = vmatprep.subr.mxu0 0.0
        %2590 = vmatpush1.msra.mxu0 0.0
        %2591 = vmatprep.subr.mxu0 0.0
        %2592 = vmatpush1.msra.mxu0 0.0
        %2593 = vmatprep.subr.mxu0 0.0
        %2594 = vmatpush1.msra.mxu0 0.0
        %2595 = vmatprep.subr.mxu0 0.0
        %2596 = vmatpush1.msra.mxu0 0.0
        %2597 = vmatprep.subr.mxu0 0.0
        %2598 = vmatpush1.msra.mxu0 0.0
        %2599 = vmatprep.subr.mxu0 0.0
        %2600 = vmatpush1.msra.mxu0 0.0
        %2601 = vmatprep.subr.mxu0 0.0
        %2602 = vmatpush1.msra.mxu0 0.0
        %2603 = vmatprep.subr.mxu0 0.0
        %2604 = vmatpush1.msra.mxu0 0.0
        %2605 = vmatprep.subr.mxu0 0.0
        %2606 = vmatpush1.msra.mxu0 0.0
        %2607 = vmatprep.subr.mxu0 0.0
        %2608 = vmatpush1.msra.mxu0 0.0
        %2609 = vmatprep.subr.mxu0 0.0
        %2610 = vmatpush1.msra.mxu0 0.0
        %2611 = vmatprep.subr.mxu0 0.0
        %2612 = vmatpush1.msra.mxu0 0.0
        %2613 = vmatprep.subr.mxu0 0.0
        %2614 = vmatpush1.msra.mxu0 0.0
        %2615 = vmatprep.subr.mxu0 0.0
        %2616 = vmatpush1.msra.mxu0 0.0
        %2617 = vmatprep.subr.mxu0 0.0
        %2618 = vmatpush1.msra.mxu0 0.0
        %2619 = vmatprep.subr.mxu0 0.0
        %2620 = vmatpush1.msra.mxu0 0.0
        %2621 = vmatprep.subr.mxu0 0.0
        %2622 = vmatpush1.msra.mxu0 0.0
        %2623 = vmatprep.subr.mxu0 0.0
        %2624 = vmatpush1.msra.mxu0 0.0
        %2625 = vmatprep.subr.mxu0 0.0
        %2626 = vmatpush1.msra.mxu0 0.0
        %2627 = vmatprep.subr.mxu0 0.0
        %2628 = vmatpush1.msra.mxu0 0.0
        %2629 = vmatprep.subr.mxu0 0.0
        %2630 = vmatpush1.msra.mxu0 0.0
        %2631 = vmatprep.subr.mxu0 0.0
        %2632 = vmatpush1.msra.mxu0 0.0
        %2633 = vmatprep.subr.mxu0 0.0
        %2634 = vmatpush1.msra.mxu0 0.0
        %2635 = vmatprep.subr.mxu0 0.0
        %2636 = vmatpush1.msra.mxu0 0.0
        %2637 = vmatprep.subr.mxu0 0.0
        %2638 = vmatpush1.msra.mxu0 0.0
        %2639 = vmatprep.subr.mxu0 0.0
        %2640 = vmatpush1.msra.mxu0 0.0
        %2641 = vmatprep.subr.mxu0 0.0
        %2642 = vmatpush1.msra.mxu0 0.0
        %2643 = vmatprep.mubr.f32.mxu0 0.0
        %v2644 = vand.u32 %v293, 4294901760
        %v2645 = vsub.f32 %v293, %v2644
        %v2646 = vand.u32 %v2645, 4294901760
        %2647 = vmatmul.mubr.f32.gmra.mrb[0].mxu0 %v2646
        %v2648 = vpop.f32.mrb[0].mxu0
        %v2649 = vadd.f32 %v2567, %v2648
        %v2650 = vpop.f32.mrb[0].mxu0
        %2651 = vmatprep.mubr.f32.mxu0 0.0
        %v2652 = vand.u32 %v296, 4294901760
        %v2653 = vsub.f32 %v296, %v2652
        %v2654 = vand.u32 %v2653, 4294901760
        %2655 = vmatmul.mubr.f32.gmra.mrb[0].mxu0 %v2654
        %v2656 = vpop.f32.mrb[0].mxu0
        %v2657 = vadd.f32 %v2574, %v2656
        %v2658 = vpop.f32.mrb[0].mxu0
        %2659 = vdwg.mxu0
        %2660 = vmatprep.subr.mxu0 0.0
        %v2661 = vand.u32 %v2318, 4294901760
        %v2662 = vsub.f32 %v2318, %v2661
        %v2663 = vand.u32 %v2662, 4294901760
        %2664 = vmatpush1.msra.mxu0 %v2663
        %2665 = vmatprep.subr.mxu0 0.0
        %v2666 = vand.u32 %v2319, 4294901760
        %v2667 = vsub.f32 %v2319, %v2666
        %v2668 = vand.u32 %v2667, 4294901760
        %2669 = vmatpush1.msra.mxu0 %v2668
        %2670 = vmatprep.subr.mxu0 0.0
        %2671 = vmatpush1.msra.mxu0 0.0
        %2672 = vmatprep.subr.mxu0 0.0
        %2673 = vmatpush1.msra.mxu0 0.0
        %2674 = vmatprep.subr.mxu0 0.0
        %2675 = vmatpush1.msra.mxu0 0.0
        %2676 = vmatprep.subr.mxu0 0.0
        %2677 = vmatpush1.msra.mxu0 0.0
        %2678 = vmatprep.subr.mxu0 0.0
        %2679 = vmatpush1.msra.mxu0 0.0
        %2680 = vmatprep.subr.mxu0 0.0
        %2681 = vmatpush1.msra.mxu0 0.0
        %2682 = vmatprep.subr.mxu0 0.0
        %2683 = vmatpush1.msra.mxu0 0.0
        %2684 = vmatprep.subr.mxu0 0.0
        %2685 = vmatpush1.msra.mxu0 0.0
        %2686 = vmatprep.subr.mxu0 0.0
        %2687 = vmatpush1.msra.mxu0 0.0
        %2688 = vmatprep.subr.mxu0 0.0
        %2689 = vmatpush1.msra.mxu0 0.0
        %2690 = vmatprep.subr.mxu0 0.0
        %2691 = vmatpush1.msra.mxu0 0.0
        %2692 = vmatprep.subr.mxu0 0.0
        %2693 = vmatpush1.msra.mxu0 0.0
        %2694 = vmatprep.subr.mxu0 0.0
        %2695 = vmatpush1.msra.mxu0 0.0
        %2696 = vmatprep.subr.mxu0 0.0
        %2697 = vmatpush1.msra.mxu0 0.0
        %2698 = vmatprep.subr.mxu0 0.0
        %2699 = vmatpush1.msra.mxu0 0.0
        %2700 = vmatprep.subr.mxu0 0.0
        %2701 = vmatpush1.msra.mxu0 0.0
        %2702 = vmatprep.subr.mxu0 0.0
        %2703 = vmatpush1.msra.mxu0 0.0
        %2704 = vmatprep.subr.mxu0 0.0
        %2705 = vmatpush1.msra.mxu0 0.0
        %2706 = vmatprep.subr.mxu0 0.0
        %2707 = vmatpush1.msra.mxu0 0.0
        %2708 = vmatprep.subr.mxu0 0.0
        %2709 = vmatpush1.msra.mxu0 0.0
        %2710 = vmatprep.subr.mxu0 0.0
        %2711 = vmatpush1.msra.mxu0 0.0
        %2712 = vmatprep.subr.mxu0 0.0
        %2713 = vmatpush1.msra.mxu0 0.0
        %2714 = vmatprep.subr.mxu0 0.0
        %2715 = vmatpush1.msra.mxu0 0.0
        %2716 = vmatprep.subr.mxu0 0.0
        %2717 = vmatpush1.msra.mxu0 0.0
        %2718 = vmatprep.subr.mxu0 0.0
        %2719 = vmatpush1.msra.mxu0 0.0
        %2720 = vmatprep.subr.mxu0 0.0
        %2721 = vmatpush1.msra.mxu0 0.0
        %2722 = vmatprep.subr.mxu0 0.0
        %2723 = vmatpush1.msra.mxu0 0.0
        %2724 = vmatprep.subr.mxu0 0.0
        %2725 = vmatpush1.msra.mxu0 0.0
        %2726 = vmatprep.subr.mxu0 0.0
        %2727 = vmatpush1.msra.mxu0 0.0
        %2728 = vmatprep.subr.mxu0 0.0
        %2729 = vmatpush1.msra.mxu0 0.0
        %2730 = vmatprep.mubr.f32.mxu0 0.0
        %v2731 = vand.u32 %v293, 4294901760
        %2732 = vmatmul.mubr.f32.gmra.mrb[0].mxu0 %v2731
        %v2733 = vpop.f32.mrb[0].mxu0
        %v2734 = vadd.f32 %v2649, %v2733
        %v2735 = vpop.f32.mrb[0].mxu0
        %2736 = vmatprep.mubr.f32.mxu0 0.0
        %v2737 = vand.u32 %v296, 4294901760
        %2738 = vmatmul.mubr.f32.gmra.mrb[0].mxu0 %v2737
        %v2739 = vpop.f32.mrb[0].mxu0
        %v2740 = vadd.f32 %v2657, %v2739
        %v2741 = vpop.f32.mrb[0].mxu0
        %2742 = vdwg.mxu0
        %2743 = vmatprep.subr.mxu0 0.0
        %v2744 = vand.u32 %v2318, 4294901760
        %2745 = vmatpush1.msra.mxu0 %v2744
        %2746 = vmatprep.subr.mxu0 0.0
        %v2747 = vand.u32 %v2319, 4294901760
        %2748 = vmatpush1.msra.mxu0 %v2747
        %2749 = vmatprep.subr.mxu0 0.0
        %2750 = vmatpush1.msra.mxu0 0.0
        %2751 = vmatprep.subr.mxu0 0.0
        %2752 = vmatpush1.msra.mxu0 0.0
        %2753 = vmatprep.subr.mxu0 0.0
        %2754 = vmatpush1.msra.mxu0 0.0
        %2755 = vmatprep.subr.mxu0 0.0
        %2756 = vmatpush1.msra.mxu0 0.0
        %2757 = vmatprep.subr.mxu0 0.0
        %2758 = vmatpush1.msra.mxu0 0.0
        %2759 = vmatprep.subr.mxu0 0.0
        %2760 = vmatpush1.msra.mxu0 0.0
        %2761 = vmatprep.subr.mxu0 0.0
        %2762 = vmatpush1.msra.mxu0 0.0
        %2763 = vmatprep.subr.mxu0 0.0
        %2764 = vmatpush1.msra.mxu0 0.0
        %2765 = vmatprep.subr.mxu0 0.0
        %2766 = vmatpush1.msra.mxu0 0.0
        %2767 = vmatprep.subr.mxu0 0.0
        %2768 = vmatpush1.msra.mxu0 0.0
        %2769 = vmatprep.subr.mxu0 0.0
        %2770 = vmatpush1.msra.mxu0 0.0
        %2771 = vmatprep.subr.mxu0 0.0
        %2772 = vmatpush1.msra.mxu0 0.0
        %2773 = vmatprep.subr.mxu0 0.0
        %2774 = vmatpush1.msra.mxu0 0.0
        %2775 = vmatprep.subr.mxu0 0.0
        %2776 = vmatpush1.msra.mxu0 0.0
        %2777 = vmatprep.subr.mxu0 0.0
        %2778 = vmatpush1.msra.mxu0 0.0
        %2779 = vmatprep.subr.mxu0 0.0
        %2780 = vmatpush1.msra.mxu0 0.0
        %2781 = vmatprep.subr.mxu0 0.0
        %2782 = vmatpush1.msra.mxu0 0.0
        %2783 = vmatprep.subr.mxu0 0.0
        %2784 = vmatpush1.msra.mxu0 0.0
        %2785 = vmatprep.subr.mxu0 0.0
        %2786 = vmatpush1.msra.mxu0 0.0
        %2787 = vmatprep.subr.mxu0 0.0
        %2788 = vmatpush1.msra.mxu0 0.0
        %2789 = vmatprep.subr.mxu0 0.0
        %2790 = vmatpush1.msra.mxu0 0.0
        %2791 = vmatprep.subr.mxu0 0.0
        %2792 = vmatpush1.msra.mxu0 0.0
        %2793 = vmatprep.subr.mxu0 0.0
        %2794 = vmatpush1.msra.mxu0 0.0
        %2795 = vmatprep.subr.mxu0 0.0
        %2796 = vmatpush1.msra.mxu0 0.0
        %2797 = vmatprep.subr.mxu0 0.0
        %2798 = vmatpush1.msra.mxu0 0.0
        %2799 = vmatprep.subr.mxu0 0.0
        %2800 = vmatpush1.msra.mxu0 0.0
        %2801 = vmatprep.subr.mxu0 0.0
        %2802 = vmatpush1.msra.mxu0 0.0
        %2803 = vmatprep.subr.mxu0 0.0
        %2804 = vmatpush1.msra.mxu0 0.0
        %2805 = vmatprep.subr.mxu0 0.0
        %2806 = vmatpush1.msra.mxu0 0.0
        %2807 = vmatprep.subr.mxu0 0.0
        %2808 = vmatpush1.msra.mxu0 0.0
        %2809 = vmatprep.mubr.f32.mxu0 0.0
        %v2810 = vand.u32 %v293, 4294901760
        %2811 = vmatmul.mubr.f32.gmra.mrb[0].mxu0 %v2810
        %v2812 = vpop.f32.mrb[0].mxu0
        %v2813 = vadd.f32 %v2734, %v2812
        %v2814 = vpop.f32.mrb[0].mxu0
        %2815 = vmatprep.mubr.f32.mxu0 0.0
        %v2816 = vand.u32 %v296, 4294901760
        %2817 = vmatmul.mubr.f32.gmra.mrb[0].mxu0 %v2816
        %v2818 = vpop.f32.mrb[0].mxu0
        %v2819 = vadd.f32 %v2740, %v2818
        %v2820 = vpop.f32.mrb[0].mxu0
        %2821 = vdwg.mxu0
        %v2823 = vsel %vm291, %v2813, 0
        %v2826 = vsel %vm291, %v2819, 0
        %2828 = vmatprep.subr.mxu0 0.0
        %v2829 = vand.u32 %v289, 4294901760
        %2830 = vmatpush1.msra.mxu0 %v2829
        %2831 = vmatprep.subr.mxu0 0.0
        %v2832 = vand.u32 %v290, 4294901760
        %2833 = vmatpush1.msra.mxu0 %v2832
        %2834 = vmatprep.subr.mxu0 0.0
        %2835 = vmatpush1.msra.mxu0 0.0
        %2836 = vmatprep.subr.mxu0 0.0
        %2837 = vmatpush1.msra.mxu0 0.0
        %2838 = vmatprep.subr.mxu0 0.0
        %2839 = vmatpush1.msra.mxu0 0.0
        %2840 = vmatprep.subr.mxu0 0.0
        %2841 = vmatpush1.msra.mxu0 0.0
        %2842 = vmatprep.subr.mxu0 0.0
        %2843 = vmatpush1.msra.mxu0 0.0
        %2844 = vmatprep.subr.mxu0 0.0
        %2845 = vmatpush1.msra.mxu0 0.0
        %2846 = vmatprep.subr.mxu0 0.0
        %2847 = vmatpush1.msra.mxu0 0.0
        %2848 = vmatprep.subr.mxu0 0.0
        %2849 = vmatpush1.msra.mxu0 0.0
        %2850 = vmatprep.subr.mxu0 0.0
        %2851 = vmatpush1.msra.mxu0 0.0
        %2852 = vmatprep.subr.mxu0 0.0
        %2853 = vmatpush1.msra.mxu0 0.0
        %2854 = vmatprep.subr.mxu0 0.0
        %2855 = vmatpush1.msra.mxu0 0.0
        %2856 = vmatprep.subr.mxu0 0.0
        %2857 = vmatpush1.msra.mxu0 0.0
        %2858 = vmatprep.subr.mxu0 0.0
        %2859 = vmatpush1.msra.mxu0 0.0
        %2860 = vmatprep.subr.mxu0 0.0
        %2861 = vmatpush1.msra.mxu0 0.0
        %2862 = vmatprep.subr.mxu0 0.0
        %2863 = vmatpush1.msra.mxu0 0.0
        %2864 = vmatprep.subr.mxu0 0.0
        %2865 = vmatpush1.msra.mxu0 0.0
        %2866 = vmatprep.subr.mxu0 0.0
        %2867 = vmatpush1.msra.mxu0 0.0
        %2868 = vmatprep.subr.mxu0 0.0
        %2869 = vmatpush1.msra.mxu0 0.0
        %2870 = vmatprep.subr.mxu0 0.0
        %2871 = vmatpush1.msra.mxu0 0.0
        %2872 = vmatprep.subr.mxu0 0.0
        %2873 = vmatpush1.msra.mxu0 0.0
        %2874 = vmatprep.subr.mxu0 0.0
        %2875 = vmatpush1.msra.mxu0 0.0
        %2876 = vmatprep.subr.mxu0 0.0
        %2877 = vmatpush1.msra.mxu0 0.0
        %2878 = vmatprep.subr.mxu0 0.0
        %2879 = vmatpush1.msra.mxu0 0.0
        %2880 = vmatprep.subr.mxu0 0.0
        %2881 = vmatpush1.msra.mxu0 0.0
        %2882 = vmatprep.subr.mxu0 0.0
        %2883 = vmatpush1.msra.mxu0 0.0
        %2884 = vmatprep.subr.mxu0 0.0
        %2885 = vmatpush1.msra.mxu0 0.0
        %2886 = vmatprep.subr.mxu0 0.0
        %2887 = vmatpush1.msra.mxu0 0.0
        %2888 = vmatprep.subr.mxu0 0.0
        %2889 = vmatpush1.msra.mxu0 0.0
        %2890 = vmatprep.subr.mxu0 0.0
        %2891 = vmatpush1.msra.mxu0 0.0
        %2892 = vmatprep.subr.mxu0 0.0
        %2893 = vmatpush1.msra.mxu0 0.0
        %2894 = vmatprep.mubr.f32.mxu0 0.0
        %v2895 = vand.u32 %v2823, 4294901760
        %v2896 = vsub.f32 %v2823, %v2895
        %v2897 = vand.u32 %v2896, 4294901760
        %v2898 = vsub.f32 %v2896, %v2897
        %v2899 = vand.u32 %v2898, 4294901760
        %2900 = vmatmul.mubr.f32.gmra.mrb[0].mxu0 %v2899
        %v2901 = vpop.f32.mrb[0].mxu0
        %v2902 = vadd.f32 0.0, %v2901
        %v2903 = vpop.f32.mrb[0].mxu0
        %2904 = vmatprep.mubr.f32.mxu0 0.0
        %v2905 = vand.u32 %v2826, 4294901760
        %v2906 = vsub.f32 %v2826, %v2905
        %v2907 = vand.u32 %v2906, 4294901760
        %v2908 = vsub.f32 %v2906, %v2907
        %v2909 = vand.u32 %v2908, 4294901760
        %2910 = vmatmul.mubr.f32.gmra.mrb[0].mxu0 %v2909
        %v2911 = vpop.f32.mrb[0].mxu0
        %v2912 = vadd.f32 0.0, %v2911
        %v2913 = vpop.f32.mrb[0].mxu0
        %2914 = vdwg.mxu0
        %2915 = vmatprep.subr.mxu0 0.0
        %v2916 = vand.u32 %v289, 4294901760
        %v2917 = vsub.f32 %v289, %v2916
        %v2918 = vand.u32 %v2917, 4294901760
        %v2919 = vsub.f32 %v2917, %v2918
        %v2920 = vand.u32 %v2919, 4294901760
        %2921 = vmatpush1.msra.mxu0 %v2920
        %2922 = vmatprep.subr.mxu0 0.0
        %v2923 = vand.u32 %v290, 4294901760
        %v2924 = vsub.f32 %v290, %v2923
        %v2925 = vand.u32 %v2924, 4294901760
        %v2926 = vsub.f32 %v2924, %v2925
        %v2927 = vand.u32 %v2926, 4294901760
        %2928 = vmatpush1.msra.mxu0 %v2927
        %2929 = vmatprep.subr.mxu0 0.0
        %2930 = vmatpush1.msra.mxu0 0.0
        %2931 = vmatprep.subr.mxu0 0.0
        %2932 = vmatpush1.msra.mxu0 0.0
        %2933 = vmatprep.subr.mxu0 0.0
        %2934 = vmatpush1.msra.mxu0 0.0
        %2935 = vmatprep.subr.mxu0 0.0
        %2936 = vmatpush1.msra.mxu0 0.0
        %2937 = vmatprep.subr.mxu0 0.0
        %2938 = vmatpush1.msra.mxu0 0.0
        %2939 = vmatprep.subr.mxu0 0.0
        %2940 = vmatpush1.msra.mxu0 0.0
        %2941 = vmatprep.subr.mxu0 0.0
        %2942 = vmatpush1.msra.mxu0 0.0
        %2943 = vmatprep.subr.mxu0 0.0
        %2944 = vmatpush1.msra.mxu0 0.0
        %2945 = vmatprep.subr.mxu0 0.0
        %2946 = vmatpush1.msra.mxu0 0.0
        %2947 = vmatprep.subr.mxu0 0.0
        %2948 = vmatpush1.msra.mxu0 0.0
        %2949 = vmatprep.subr.mxu0 0.0
        %2950 = vmatpush1.msra.mxu0 0.0
        %2951 = vmatprep.subr.mxu0 0.0
        %2952 = vmatpush1.msra.mxu0 0.0
        %2953 = vmatprep.subr.mxu0 0.0
        %2954 = vmatpush1.msra.mxu0 0.0
        %2955 = vmatprep.subr.mxu0 0.0
        %2956 = vmatpush1.msra.mxu0 0.0
        %2957 = vmatprep.subr.mxu0 0.0
        %2958 = vmatpush1.msra.mxu0 0.0
        %2959 = vmatprep.subr.mxu0 0.0
        %2960 = vmatpush1.msra.mxu0 0.0
        %2961 = vmatprep.subr.mxu0 0.0
        %2962 = vmatpush1.msra.mxu0 0.0
        %2963 = vmatprep.subr.mxu0 0.0
        %2964 = vmatpush1.msra.mxu0 0.0
        %2965 = vmatprep.subr.mxu0 0.0
        %2966 = vmatpush1.msra.mxu0 0.0
        %2967 = vmatprep.subr.mxu0 0.0
        %2968 = vmatpush1.msra.mxu0 0.0
        %2969 = vmatprep.subr.mxu0 0.0
        %2970 = vmatpush1.msra.mxu0 0.0
        %2971 = vmatprep.subr.mxu0 0.0
        %2972 = vmatpush1.msra.mxu0 0.0
        %2973 = vmatprep.subr.mxu0 0.0
        %2974 = vmatpush1.msra.mxu0 0.0
        %2975 = vmatprep.subr.mxu0 0.0
        %2976 = vmatpush1.msra.mxu0 0.0
        %2977 = vmatprep.subr.mxu0 0.0
        %2978 = vmatpush1.msra.mxu0 0.0
        %2979 = vmatprep.subr.mxu0 0.0
        %2980 = vmatpush1.msra.mxu0 0.0
        %2981 = vmatprep.subr.mxu0 0.0
        %2982 = vmatpush1.msra.mxu0 0.0
        %2983 = vmatprep.subr.mxu0 0.0
        %2984 = vmatpush1.msra.mxu0 0.0
        %2985 = vmatprep.subr.mxu0 0.0
        %2986 = vmatpush1.msra.mxu0 0.0
        %2987 = vmatprep.subr.mxu0 0.0
        %2988 = vmatpush1.msra.mxu0 0.0
        %2989 = vmatprep.mubr.f32.mxu0 0.0
        %v2990 = vand.u32 %v2823, 4294901760
        %2991 = vmatmul.mubr.f32.gmra.mrb[0].mxu0 %v2990
        %v2992 = vpop.f32.mrb[0].mxu0
        %v2993 = vadd.f32 %v2902, %v2992
        %v2994 = vpop.f32.mrb[0].mxu0
        %2995 = vmatprep.mubr.f32.mxu0 0.0
        %v2996 = vand.u32 %v2826, 4294901760
        %2997 = vmatmul.mubr.f32.gmra.mrb[0].mxu0 %v2996
        %v2998 = vpop.f32.mrb[0].mxu0
        %v2999 = vadd.f32 %v2912, %v2998
        %v3000 = vpop.f32.mrb[0].mxu0
        %3001 = vdwg.mxu0
        %3002 = vmatprep.subr.mxu0 0.0
        %v3003 = vand.u32 %v289, 4294901760
        %v3004 = vsub.f32 %v289, %v3003
        %3005 = vmatpush1.msra.mxu0 %v3004
        %3006 = vmatprep.subr.mxu0 0.0
        %v3007 = vand.u32 %v290, 4294901760
        %v3008 = vsub.f32 %v290, %v3007
        %3009 = vmatpush1.msra.mxu0 %v3008
        %3010 = vmatprep.subr.mxu0 0.0
        %3011 = vmatpush1.msra.mxu0 0.0
        %3012 = vmatprep.subr.mxu0 0.0
        %3013 = vmatpush1.msra.mxu0 0.0
        %3014 = vmatprep.subr.mxu0 0.0
        %3015 = vmatpush1.msra.mxu0 0.0
        %3016 = vmatprep.subr.mxu0 0.0
        %3017 = vmatpush1.msra.mxu0 0.0
        %3018 = vmatprep.subr.mxu0 0.0
        %3019 = vmatpush1.msra.mxu0 0.0
        %3020 = vmatprep.subr.mxu0 0.0
        %3021 = vmatpush1.msra.mxu0 0.0
        %3022 = vmatprep.subr.mxu0 0.0
        %3023 = vmatpush1.msra.mxu0 0.0
        %3024 = vmatprep.subr.mxu0 0.0
        %3025 = vmatpush1.msra.mxu0 0.0
        %3026 = vmatprep.subr.mxu0 0.0
        %3027 = vmatpush1.msra.mxu0 0.0
        %3028 = vmatprep.subr.mxu0 0.0
        %3029 = vmatpush1.msra.mxu0 0.0
        %3030 = vmatprep.subr.mxu0 0.0
        %3031 = vmatpush1.msra.mxu0 0.0
        %3032 = vmatprep.subr.mxu0 0.0
        %3033 = vmatpush1.msra.mxu0 0.0
        %3034 = vmatprep.subr.mxu0 0.0
        %3035 = vmatpush1.msra.mxu0 0.0
        %3036 = vmatprep.subr.mxu0 0.0
        %3037 = vmatpush1.msra.mxu0 0.0
        %3038 = vmatprep.subr.mxu0 0.0
        %3039 = vmatpush1.msra.mxu0 0.0
        %3040 = vmatprep.subr.mxu0 0.0
        %3041 = vmatpush1.msra.mxu0 0.0
        %3042 = vmatprep.subr.mxu0 0.0
        %3043 = vmatpush1.msra.mxu0 0.0
        %3044 = vmatprep.subr.mxu0 0.0
        %3045 = vmatpush1.msra.mxu0 0.0
        %3046 = vmatprep.subr.mxu0 0.0
        %3047 = vmatpush1.msra.mxu0 0.0
        %3048 = vmatprep.subr.mxu0 0.0
        %3049 = vmatpush1.msra.mxu0 0.0
        %3050 = vmatprep.subr.mxu0 0.0
        %3051 = vmatpush1.msra.mxu0 0.0
        %3052 = vmatprep.subr.mxu0 0.0
        %3053 = vmatpush1.msra.mxu0 0.0
        %3054 = vmatprep.subr.mxu0 0.0
        %3055 = vmatpush1.msra.mxu0 0.0
        %3056 = vmatprep.subr.mxu0 0.0
        %3057 = vmatpush1.msra.mxu0 0.0
        %3058 = vmatprep.subr.mxu0 0.0
        %3059 = vmatpush1.msra.mxu0 0.0
        %3060 = vmatprep.subr.mxu0 0.0
        %3061 = vmatpush1.msra.mxu0 0.0
        %3062 = vmatprep.subr.mxu0 0.0
        %3063 = vmatpush1.msra.mxu0 0.0
        %3064 = vmatprep.subr.mxu0 0.0
        %3065 = vmatpush1.msra.mxu0 0.0
        %3066 = vmatprep.subr.mxu0 0.0
        %3067 = vmatpush1.msra.mxu0 0.0
        %3068 = vmatprep.subr.mxu0 0.0
        %3069 = vmatpush1.msra.mxu0 0.0
        %3070 = vmatprep.mubr.f32.mxu0 0.0
        %v3071 = vand.u32 %v2823, 4294901760
        %v3072 = vsub.f32 %v2823, %v3071
        %3073 = vmatmul.mubr.f32.gmra.mrb[0].mxu0 %v3072
        %v3074 = vpop.f32.mrb[0].mxu0
        %v3075 = vadd.f32 %v2993, %v3074
        %v3076 = vpop.f32.mrb[0].mxu0
        %3077 = vmatprep.mubr.f32.mxu0 0.0
        %v3078 = vand.u32 %v2826, 4294901760
        %v3079 = vsub.f32 %v2826, %v3078
        %3080 = vmatmul.mubr.f32.gmra.mrb[0].mxu0 %v3079
        %v3081 = vpop.f32.mrb[0].mxu0
        %v3082 = vadd.f32 %v2999, %v3081
        %v3083 = vpop.f32.mrb[0].mxu0
        %3084 = vdwg.mxu0
        %3085 = vmatprep.subr.mxu0 0.0
        %v3086 = vand.u32 %v289, 4294901760
        %3087 = vmatpush1.msra.mxu0 %v3086
        %3088 = vmatprep.subr.mxu0 0.0
        %v3089 = vand.u32 %v290, 4294901760
        %3090 = vmatpush1.msra.mxu0 %v3089
        %3091 = vmatprep.subr.mxu0 0.0
        %3092 = vmatpush1.msra.mxu0 0.0
        %3093 = vmatprep.subr.mxu0 0.0
        %3094 = vmatpush1.msra.mxu0 0.0
        %3095 = vmatprep.subr.mxu0 0.0
        %3096 = vmatpush1.msra.mxu0 0.0
        %3097 = vmatprep.subr.mxu0 0.0
        %3098 = vmatpush1.msra.mxu0 0.0
        %3099 = vmatprep.subr.mxu0 0.0
        %3100 = vmatpush1.msra.mxu0 0.0
        %3101 = vmatprep.subr.mxu0 0.0
        %3102 = vmatpush1.msra.mxu0 0.0
        %3103 = vmatprep.subr.mxu0 0.0
        %3104 = vmatpush1.msra.mxu0 0.0
        %3105 = vmatprep.subr.mxu0 0.0
        %3106 = vmatpush1.msra.mxu0 0.0
        %3107 = vmatprep.subr.mxu0 0.0
        %3108 = vmatpush1.msra.mxu0 0.0
        %3109 = vmatprep.subr.mxu0 0.0
        %3110 = vmatpush1.msra.mxu0 0.0
        %3111 = vmatprep.subr.mxu0 0.0
        %3112 = vmatpush1.msra.mxu0 0.0
        %3113 = vmatprep.subr.mxu0 0.0
        %3114 = vmatpush1.msra.mxu0 0.0
        %3115 = vmatprep.subr.mxu0 0.0
        %3116 = vmatpush1.msra.mxu0 0.0
        %3117 = vmatprep.subr.mxu0 0.0
        %3118 = vmatpush1.msra.mxu0 0.0
        %3119 = vmatprep.subr.mxu0 0.0
        %3120 = vmatpush1.msra.mxu0 0.0
        %3121 = vmatprep.subr.mxu0 0.0
        %3122 = vmatpush1.msra.mxu0 0.0
        %3123 = vmatprep.subr.mxu0 0.0
        %3124 = vmatpush1.msra.mxu0 0.0
        %3125 = vmatprep.subr.mxu0 0.0
        %3126 = vmatpush1.msra.mxu0 0.0
        %3127 = vmatprep.subr.mxu0 0.0
        %3128 = vmatpush1.msra.mxu0 0.0
        %3129 = vmatprep.subr.mxu0 0.0
        %3130 = vmatpush1.msra.mxu0 0.0
        %3131 = vmatprep.subr.mxu0 0.0
        %3132 = vmatpush1.msra.mxu0 0.0
        %3133 = vmatprep.subr.mxu0 0.0
        %3134 = vmatpush1.msra.mxu0 0.0
        %3135 = vmatprep.subr.mxu0 0.0
        %3136 = vmatpush1.msra.mxu0 0.0
        %3137 = vmatprep.subr.mxu0 0.0
        %3138 = vmatpush1.msra.mxu0 0.0
        %3139 = vmatprep.subr.mxu0 0.0
        %3140 = vmatpush1.msra.mxu0 0.0
        %3141 = vmatprep.subr.mxu0 0.0
        %3142 = vmatpush1.msra.mxu0 0.0
        %3143 = vmatprep.subr.mxu0 0.0
        %3144 = vmatpush1.msra.mxu0 0.0
        %3145 = vmatprep.subr.mxu0 0.0
        %3146 = vmatpush1.msra.mxu0 0.0
        %3147 = vmatprep.subr.mxu0 0.0
        %3148 = vmatpush1.msra.mxu0 0.0
        %3149 = vmatprep.subr.mxu0 0.0
        %3150 = vmatpush1.msra.mxu0 0.0
        %3151 = vmatprep.mubr.f32.mxu0 0.0
        %v3152 = vand.u32 %v2823, 4294901760
        %v3153 = vsub.f32 %v2823, %v3152
        %v3154 = vand.u32 %v3153, 4294901760
        %3155 = vmatmul.mubr.f32.gmra.mrb[0].mxu0 %v3154
        %v3156 = vpop.f32.mrb[0].mxu0
        %v3157 = vadd.f32 %v3075, %v3156
        %v3158 = vpop.f32.mrb[0].mxu0
        %3159 = vmatprep.mubr.f32.mxu0 0.0
        %v3160 = vand.u32 %v2826, 4294901760
        %v3161 = vsub.f32 %v2826, %v3160
        %v3162 = vand.u32 %v3161, 4294901760
        %3163 = vmatmul.mubr.f32.gmra.mrb[0].mxu0 %v3162
        %v3164 = vpop.f32.mrb[0].mxu0
        %v3165 = vadd.f32 %v3082, %v3164
        %v3166 = vpop.f32.mrb[0].mxu0
        %3167 = vdwg.mxu0
        %3168 = vmatprep.subr.mxu0 0.0
        %v3169 = vand.u32 %v289, 4294901760
        %v3170 = vsub.f32 %v289, %v3169
        %v3171 = vand.u32 %v3170, 4294901760
        %3172 = vmatpush1.msra.mxu0 %v3171
        %3173 = vmatprep.subr.mxu0 0.0
        %v3174 = vand.u32 %v290, 4294901760
        %v3175 = vsub.f32 %v290, %v3174
        %v3176 = vand.u32 %v3175, 4294901760
        %3177 = vmatpush1.msra.mxu0 %v3176
        %3178 = vmatprep.subr.mxu0 0.0
        %3179 = vmatpush1.msra.mxu0 0.0
        %3180 = vmatprep.subr.mxu0 0.0
        %3181 = vmatpush1.msra.mxu0 0.0
        %3182 = vmatprep.subr.mxu0 0.0
        %3183 = vmatpush1.msra.mxu0 0.0
        %3184 = vmatprep.subr.mxu0 0.0
        %3185 = vmatpush1.msra.mxu0 0.0
        %3186 = vmatprep.subr.mxu0 0.0
        %3187 = vmatpush1.msra.mxu0 0.0
        %3188 = vmatprep.subr.mxu0 0.0
        %3189 = vmatpush1.msra.mxu0 0.0
        %3190 = vmatprep.subr.mxu0 0.0
        %3191 = vmatpush1.msra.mxu0 0.0
        %3192 = vmatprep.subr.mxu0 0.0
        %3193 = vmatpush1.msra.mxu0 0.0
        %3194 = vmatprep.subr.mxu0 0.0
        %3195 = vmatpush1.msra.mxu0 0.0
        %3196 = vmatprep.subr.mxu0 0.0
        %3197 = vmatpush1.msra.mxu0 0.0
        %3198 = vmatprep.subr.mxu0 0.0
        %3199 = vmatpush1.msra.mxu0 0.0
        %3200 = vmatprep.subr.mxu0 0.0
        %3201 = vmatpush1.msra.mxu0 0.0
        %3202 = vmatprep.subr.mxu0 0.0
        %3203 = vmatpush1.msra.mxu0 0.0
        %3204 = vmatprep.subr.mxu0 0.0
        %3205 = vmatpush1.msra.mxu0 0.0
        %3206 = vmatprep.subr.mxu0 0.0
        %3207 = vmatpush1.msra.mxu0 0.0
        %3208 = vmatprep.subr.mxu0 0.0
        %3209 = vmatpush1.msra.mxu0 0.0
        %3210 = vmatprep.subr.mxu0 0.0
        %3211 = vmatpush1.msra.mxu0 0.0
        %3212 = vmatprep.subr.mxu0 0.0
        %3213 = vmatpush1.msra.mxu0 0.0
        %3214 = vmatprep.subr.mxu0 0.0
        %3215 = vmatpush1.msra.mxu0 0.0
        %3216 = vmatprep.subr.mxu0 0.0
        %3217 = vmatpush1.msra.mxu0 0.0
        %3218 = vmatprep.subr.mxu0 0.0
        %3219 = vmatpush1.msra.mxu0 0.0
        %3220 = vmatprep.subr.mxu0 0.0
        %3221 = vmatpush1.msra.mxu0 0.0
        %3222 = vmatprep.subr.mxu0 0.0
        %3223 = vmatpush1.msra.mxu0 0.0
        %3224 = vmatprep.subr.mxu0 0.0
        %3225 = vmatpush1.msra.mxu0 0.0
        %3226 = vmatprep.subr.mxu0 0.0
        %3227 = vmatpush1.msra.mxu0 0.0
        %3228 = vmatprep.subr.mxu0 0.0
        %3229 = vmatpush1.msra.mxu0 0.0
        %3230 = vmatprep.subr.mxu0 0.0
        %3231 = vmatpush1.msra.mxu0 0.0
        %3232 = vmatprep.subr.mxu0 0.0
        %3233 = vmatpush1.msra.mxu0 0.0
        %3234 = vmatprep.subr.mxu0 0.0
        %3235 = vmatpush1.msra.mxu0 0.0
        %3236 = vmatprep.subr.mxu0 0.0
        %3237 = vmatpush1.msra.mxu0 0.0
        %3238 = vmatprep.mubr.f32.mxu0 0.0
        %v3239 = vand.u32 %v2823, 4294901760
        %3240 = vmatmul.mubr.f32.gmra.mrb[0].mxu0 %v3239
        %v3241 = vpop.f32.mrb[0].mxu0
        %v3242 = vadd.f32 %v3157, %v3241
        %v3243 = vpop.f32.mrb[0].mxu0
        %3244 = vmatprep.mubr.f32.mxu0 0.0
        %v3245 = vand.u32 %v2826, 4294901760
        %3246 = vmatmul.mubr.f32.gmra.mrb[0].mxu0 %v3245
        %v3247 = vpop.f32.mrb[0].mxu0
        %v3248 = vadd.f32 %v3165, %v3247
        %v3249 = vpop.f32.mrb[0].mxu0
        %3250 = vdwg.mxu0
        %3251 = vmatprep.subr.mxu0 0.0
        %v3252 = vand.u32 %v289, 4294901760
        %3253 = vmatpush1.msra.mxu0 %v3252
        %3254 = vmatprep.subr.mxu0 0.0
        %v3255 = vand.u32 %v290, 4294901760
        %3256 = vmatpush1.msra.mxu0 %v3255
        %3257 = vmatprep.subr.mxu0 0.0
        %3258 = vmatpush1.msra.mxu0 0.0
        %3259 = vmatprep.subr.mxu0 0.0
        %3260 = vmatpush1.msra.mxu0 0.0
        %3261 = vmatprep.subr.mxu0 0.0
        %3262 = vmatpush1.msra.mxu0 0.0
        %3263 = vmatprep.subr.mxu0 0.0
        %3264 = vmatpush1.msra.mxu0 0.0
        %3265 = vmatprep.subr.mxu0 0.0
        %3266 = vmatpush1.msra.mxu0 0.0
        %3267 = vmatprep.subr.mxu0 0.0
        %3268 = vmatpush1.msra.mxu0 0.0
        %3269 = vmatprep.subr.mxu0 0.0
        %3270 = vmatpush1.msra.mxu0 0.0
        %3271 = vmatprep.subr.mxu0 0.0
        %3272 = vmatpush1.msra.mxu0 0.0
        %3273 = vmatprep.subr.mxu0 0.0
        %3274 = vmatpush1.msra.mxu0 0.0
        %3275 = vmatprep.subr.mxu0 0.0
        %3276 = vmatpush1.msra.mxu0 0.0
        %3277 = vmatprep.subr.mxu0 0.0
        %3278 = vmatpush1.msra.mxu0 0.0
        %3279 = vmatprep.subr.mxu0 0.0
        %3280 = vmatpush1.msra.mxu0 0.0
        %3281 = vmatprep.subr.mxu0 0.0
        %3282 = vmatpush1.msra.mxu0 0.0
        %3283 = vmatprep.subr.mxu0 0.0
        %3284 = vmatpush1.msra.mxu0 0.0
        %3285 = vmatprep.subr.mxu0 0.0
        %3286 = vmatpush1.msra.mxu0 0.0
        %3287 = vmatprep.subr.mxu0 0.0
        %3288 = vmatpush1.msra.mxu0 0.0
        %3289 = vmatprep.subr.mxu0 0.0
        %3290 = vmatpush1.msra.mxu0 0.0
        %3291 = vmatprep.subr.mxu0 0.0
        %3292 = vmatpush1.msra.mxu0 0.0
        %3293 = vmatprep.subr.mxu0 0.0
        %3294 = vmatpush1.msra.mxu0 0.0
        %3295 = vmatprep.subr.mxu0 0.0
        %3296 = vmatpush1.msra.mxu0 0.0
        %3297 = vmatprep.subr.mxu0 0.0
        %3298 = vmatpush1.msra.mxu0 0.0
        %3299 = vmatprep.subr.mxu0 0.0
        %3300 = vmatpush1.msra.mxu0 0.0
        %3301 = vmatprep.subr.mxu0 0.0
        %3302 = vmatpush1.msra.mxu0 0.0
        %3303 = vmatprep.subr.mxu0 0.0
        %3304 = vmatpush1.msra.mxu0 0.0
        %3305 = vmatprep.subr.mxu0 0.0
        %3306 = vmatpush1.msra.mxu0 0.0
        %3307 = vmatprep.subr.mxu0 0.0
        %3308 = vmatpush1.msra.mxu0 0.0
        %3309 = vmatprep.subr.mxu0 0.0
        %3310 = vmatpush1.msra.mxu0 0.0
        %3311 = vmatprep.subr.mxu0 0.0
        %3312 = vmatpush1.msra.mxu0 0.0
        %3313 = vmatprep.subr.mxu0 0.0
        %3314 = vmatpush1.msra.mxu0 0.0
        %3315 = vmatprep.subr.mxu0 0.0
        %3316 = vmatpush1.msra.mxu0 0.0
        %3317 = vmatprep.mubr.f32.mxu0 0.0
        %v3318 = vand.u32 %v2823, 4294901760
        %3319 = vmatmul.mubr.f32.gmra.mrb[0].mxu0 %v3318
        %v3320 = vpop.f32.mrb[0].mxu0
        %v3321 = vadd.f32 %v3242, %v3320
        %v3322 = vpop.f32.mrb[0].mxu0
        %3323 = vmatprep.mubr.f32.mxu0 0.0
        %v3324 = vand.u32 %v2826, 4294901760
        %3325 = vmatmul.mubr.f32.gmra.mrb[0].mxu0 %v3324
        %v3326 = vpop.f32.mrb[0].mxu0
        %v3327 = vadd.f32 %v3248, %v3326
        %v3328 = vpop.f32.mrb[0].mxu0
        %3329 = vdwg.mxu0
        %v3330 = vmul.f32 %v285, %v285
        %v3331 = vmul.f32 %v286, %v286
        %3332 = vmatprep.subr.mxu0 0.0
        %v3333 = vand.u32 %v3330, 4294901760
        %3334 = vmatpush1.msra.mxu0 %v3333
        %3335 = vmatprep.subr.mxu0 0.0
        %v3336 = vand.u32 %v3331, 4294901760
        %3337 = vmatpush1.msra.mxu0 %v3336
        %3338 = vmatprep.subr.mxu0 0.0
        %3339 = vmatpush1.msra.mxu0 0.0
        %3340 = vmatprep.subr.mxu0 0.0
        %3341 = vmatpush1.msra.mxu0 0.0
        %3342 = vmatprep.subr.mxu0 0.0
        %3343 = vmatpush1.msra.mxu0 0.0
        %3344 = vmatprep.subr.mxu0 0.0
        %3345 = vmatpush1.msra.mxu0 0.0
        %3346 = vmatprep.subr.mxu0 0.0
        %3347 = vmatpush1.msra.mxu0 0.0
        %3348 = vmatprep.subr.mxu0 0.0
        %3349 = vmatpush1.msra.mxu0 0.0
        %3350 = vmatprep.subr.mxu0 0.0
        %3351 = vmatpush1.msra.mxu0 0.0
        %3352 = vmatprep.subr.mxu0 0.0
        %3353 = vmatpush1.msra.mxu0 0.0
        %3354 = vmatprep.subr.mxu0 0.0
        %3355 = vmatpush1.msra.mxu0 0.0
        %3356 = vmatprep.subr.mxu0 0.0
        %3357 = vmatpush1.msra.mxu0 0.0
        %3358 = vmatprep.subr.mxu0 0.0
        %3359 = vmatpush1.msra.mxu0 0.0
        %3360 = vmatprep.subr.mxu0 0.0
        %3361 = vmatpush1.msra.mxu0 0.0
        %3362 = vmatprep.subr.mxu0 0.0
        %3363 = vmatpush1.msra.mxu0 0.0
        %3364 = vmatprep.subr.mxu0 0.0
        %3365 = vmatpush1.msra.mxu0 0.0
        %3366 = vmatprep.subr.mxu0 0.0
        %3367 = vmatpush1.msra.mxu0 0.0
        %3368 = vmatprep.subr.mxu0 0.0
        %3369 = vmatpush1.msra.mxu0 0.0
        %3370 = vmatprep.subr.mxu0 0.0
        %3371 = vmatpush1.msra.mxu0 0.0
        %3372 = vmatprep.subr.mxu0 0.0
        %3373 = vmatpush1.msra.mxu0 0.0
        %3374 = vmatprep.subr.mxu0 0.0
        %3375 = vmatpush1.msra.mxu0 0.0
        %3376 = vmatprep.subr.mxu0 0.0
        %3377 = vmatpush1.msra.mxu0 0.0
        %3378 = vmatprep.subr.mxu0 0.0
        %3379 = vmatpush1.msra.mxu0 0.0
        %3380 = vmatprep.subr.mxu0 0.0
        %3381 = vmatpush1.msra.mxu0 0.0
        %3382 = vmatprep.subr.mxu0 0.0
        %3383 = vmatpush1.msra.mxu0 0.0
        %3384 = vmatprep.subr.mxu0 0.0
        %3385 = vmatpush1.msra.mxu0 0.0
        %3386 = vmatprep.subr.mxu0 0.0
        %3387 = vmatpush1.msra.mxu0 0.0
        %3388 = vmatprep.subr.mxu0 0.0
        %3389 = vmatpush1.msra.mxu0 0.0
        %3390 = vmatprep.subr.mxu0 0.0
        %3391 = vmatpush1.msra.mxu0 0.0
        %3392 = vmatprep.subr.mxu0 0.0
        %3393 = vmatpush1.msra.mxu0 0.0
        %3394 = vmatprep.subr.mxu0 0.0
        %3395 = vmatpush1.msra.mxu0 0.0
        %3396 = vmatprep.subr.mxu0 0.0
        %3397 = vmatpush1.msra.mxu0 0.0
        %3398 = vmatprep.mubr.f32.mxu0 0.0
        %v3399 = vand.u32 %v293, 4294901760
        %v3400 = vsub.f32 %v293, %v3399
        %v3401 = vand.u32 %v3400, 4294901760
        %v3402 = vsub.f32 %v3400, %v3401
        %v3403 = vand.u32 %v3402, 4294901760
        %3404 = vmatmul.mubr.f32.gmra.mrb[0].mxu0 %v3403
        %v3405 = vpop.f32.mrb[0].mxu0
        %v3406 = vadd.f32 0.0, %v3405
        %v3407 = vpop.f32.mrb[0].mxu0
        %3408 = vmatprep.mubr.f32.mxu0 0.0
        %v3409 = vand.u32 %v296, 4294901760
        %v3410 = vsub.f32 %v296, %v3409
        %v3411 = vand.u32 %v3410, 4294901760
        %v3412 = vsub.f32 %v3410, %v3411
        %v3413 = vand.u32 %v3412, 4294901760
        %3414 = vmatmul.mubr.f32.gmra.mrb[0].mxu0 %v3413
        %v3415 = vpop.f32.mrb[0].mxu0
        %v3416 = vadd.f32 0.0, %v3415
        %v3417 = vpop.f32.mrb[0].mxu0
        %3418 = vdwg.mxu0
        %3419 = vmatprep.subr.mxu0 0.0
        %v3420 = vand.u32 %v3330, 4294901760
        %v3421 = vsub.f32 %v3330, %v3420
        %v3422 = vand.u32 %v3421, 4294901760
        %v3423 = vsub.f32 %v3421, %v3422
        %v3424 = vand.u32 %v3423, 4294901760
        %3425 = vmatpush1.msra.mxu0 %v3424
        %3426 = vmatprep.subr.mxu0 0.0
        %v3427 = vand.u32 %v3331, 4294901760
        %v3428 = vsub.f32 %v3331, %v3427
        %v3429 = vand.u32 %v3428, 4294901760
        %v3430 = vsub.f32 %v3428, %v3429
        %v3431 = vand.u32 %v3430, 4294901760
        %3432 = vmatpush1.msra.mxu0 %v3431
        %3433 = vmatprep.subr.mxu0 0.0
        %3434 = vmatpush1.msra.mxu0 0.0
        %3435 = vmatprep.subr.mxu0 0.0
        %3436 = vmatpush1.msra.mxu0 0.0
        %3437 = vmatprep.subr.mxu0 0.0
        %3438 = vmatpush1.msra.mxu0 0.0
        %3439 = vmatprep.subr.mxu0 0.0
        %3440 = vmatpush1.msra.mxu0 0.0
        %3441 = vmatprep.subr.mxu0 0.0
        %3442 = vmatpush1.msra.mxu0 0.0
        %3443 = vmatprep.subr.mxu0 0.0
        %3444 = vmatpush1.msra.mxu0 0.0
        %3445 = vmatprep.subr.mxu0 0.0
        %3446 = vmatpush1.msra.mxu0 0.0
        %3447 = vmatprep.subr.mxu0 0.0
        %3448 = vmatpush1.msra.mxu0 0.0
        %3449 = vmatprep.subr.mxu0 0.0
        %3450 = vmatpush1.msra.mxu0 0.0
        %3451 = vmatprep.subr.mxu0 0.0
        %3452 = vmatpush1.msra.mxu0 0.0
        %3453 = vmatprep.subr.mxu0 0.0
        %3454 = vmatpush1.msra.mxu0 0.0
        %3455 = vmatprep.subr.mxu0 0.0
        %3456 = vmatpush1.msra.mxu0 0.0
        %3457 = vmatprep.subr.mxu0 0.0
        %3458 = vmatpush1.msra.mxu0 0.0
        %3459 = vmatprep.subr.mxu0 0.0
        %3460 = vmatpush1.msra.mxu0 0.0
        %3461 = vmatprep.subr.mxu0 0.0
        %3462 = vmatpush1.msra.mxu0 0.0
        %3463 = vmatprep.subr.mxu0 0.0
        %3464 = vmatpush1.msra.mxu0 0.0
        %3465 = vmatprep.subr.mxu0 0.0
        %3466 = vmatpush1.msra.mxu0 0.0
        %3467 = vmatprep.subr.mxu0 0.0
        %3468 = vmatpush1.msra.mxu0 0.0
        %3469 = vmatprep.subr.mxu0 0.0
        %3470 = vmatpush1.msra.mxu0 0.0
        %3471 = vmatprep.subr.mxu0 0.0
        %3472 = vmatpush1.msra.mxu0 0.0
        %3473 = vmatprep.subr.mxu0 0.0
        %3474 = vmatpush1.msra.mxu0 0.0
        %3475 = vmatprep.subr.mxu0 0.0
        %3476 = vmatpush1.msra.mxu0 0.0
        %3477 = vmatprep.subr.mxu0 0.0
        %3478 = vmatpush1.msra.mxu0 0.0
        %3479 = vmatprep.subr.mxu0 0.0
        %3480 = vmatpush1.msra.mxu0 0.0
        %3481 = vmatprep.subr.mxu0 0.0
        %3482 = vmatpush1.msra.mxu0 0.0
        %3483 = vmatprep.subr.mxu0 0.0
        %3484 = vmatpush1.msra.mxu0 0.0
        %3485 = vmatprep.subr.mxu0 0.0
        %3486 = vmatpush1.msra.mxu0 0.0
        %3487 = vmatprep.subr.mxu0 0.0
        %3488 = vmatpush1.msra.mxu0 0.0
        %3489 = vmatprep.subr.mxu0 0.0
        %3490 = vmatpush1.msra.mxu0 0.0
        %3491 = vmatprep.subr.mxu0 0.0
        %3492 = vmatpush1.msra.mxu0 0.0
        %3493 = vmatprep.mubr.f32.mxu0 0.0
        %v3494 = vand.u32 %v293, 4294901760
        %3495 = vmatmul.mubr.f32.gmra.mrb[0].mxu0 %v3494
        %v3496 = vpop.f32.mrb[0].mxu0
        %v3497 = vadd.f32 %v3406, %v3496
        %v3498 = vpop.f32.mrb[0].mxu0
        %3499 = vmatprep.mubr.f32.mxu0 0.0
        %v3500 = vand.u32 %v296, 4294901760
        %3501 = vmatmul.mubr.f32.gmra.mrb[0].mxu0 %v3500
        %v3502 = vpop.f32.mrb[0].mxu0
        %v3503 = vadd.f32 %v3416, %v3502
        %v3504 = vpop.f32.mrb[0].mxu0
        %3505 = vdwg.mxu0
        %3506 = vmatprep.subr.mxu0 0.0
        %v3507 = vand.u32 %v3330, 4294901760
        %v3508 = vsub.f32 %v3330, %v3507
        %3509 = vmatpush1.msra.mxu0 %v3508
        %3510 = vmatprep.subr.mxu0 0.0
        %v3511 = vand.u32 %v3331, 4294901760
        %v3512 = vsub.f32 %v3331, %v3511
        %3513 = vmatpush1.msra.mxu0 %v3512
        %3514 = vmatprep.subr.mxu0 0.0
        %3515 = vmatpush1.msra.mxu0 0.0
        %3516 = vmatprep.subr.mxu0 0.0
        %3517 = vmatpush1.msra.mxu0 0.0
        %3518 = vmatprep.subr.mxu0 0.0
        %3519 = vmatpush1.msra.mxu0 0.0
        %3520 = vmatprep.subr.mxu0 0.0
        %3521 = vmatpush1.msra.mxu0 0.0
        %3522 = vmatprep.subr.mxu0 0.0
        %3523 = vmatpush1.msra.mxu0 0.0
        %3524 = vmatprep.subr.mxu0 0.0
        %3525 = vmatpush1.msra.mxu0 0.0
        %3526 = vmatprep.subr.mxu0 0.0
        %3527 = vmatpush1.msra.mxu0 0.0
        %3528 = vmatprep.subr.mxu0 0.0
        %3529 = vmatpush1.msra.mxu0 0.0
        %3530 = vmatprep.subr.mxu0 0.0
        %3531 = vmatpush1.msra.mxu0 0.0
        %3532 = vmatprep.subr.mxu0 0.0
        %3533 = vmatpush1.msra.mxu0 0.0
        %3534 = vmatprep.subr.mxu0 0.0
        %3535 = vmatpush1.msra.mxu0 0.0
        %3536 = vmatprep.subr.mxu0 0.0
        %3537 = vmatpush1.msra.mxu0 0.0
        %3538 = vmatprep.subr.mxu0 0.0
        %3539 = vmatpush1.msra.mxu0 0.0
        %3540 = vmatprep.subr.mxu0 0.0
        %3541 = vmatpush1.msra.mxu0 0.0
        %3542 = vmatprep.subr.mxu0 0.0
        %3543 = vmatpush1.msra.mxu0 0.0
        %3544 = vmatprep.subr.mxu0 0.0
        %3545 = vmatpush1.msra.mxu0 0.0
        %3546 = vmatprep.subr.mxu0 0.0
        %3547 = vmatpush1.msra.mxu0 0.0
        %3548 = vmatprep.subr.mxu0 0.0
        %3549 = vmatpush1.msra.mxu0 0.0
        %3550 = vmatprep.subr.mxu0 0.0
        %3551 = vmatpush1.msra.mxu0 0.0
        %3552 = vmatprep.subr.mxu0 0.0
        %3553 = vmatpush1.msra.mxu0 0.0
        %3554 = vmatprep.subr.mxu0 0.0
        %3555 = vmatpush1.msra.mxu0 0.0
        %3556 = vmatprep.subr.mxu0 0.0
        %3557 = vmatpush1.msra.mxu0 0.0
        %3558 = vmatprep.subr.mxu0 0.0
        %3559 = vmatpush1.msra.mxu0 0.0
        %3560 = vmatprep.subr.mxu0 0.0
        %3561 = vmatpush1.msra.mxu0 0.0
        %3562 = vmatprep.subr.mxu0 0.0
        %3563 = vmatpush1.msra.mxu0 0.0
        %3564 = vmatprep.subr.mxu0 0.0
        %3565 = vmatpush1.msra.mxu0 0.0
        %3566 = vmatprep.subr.mxu0 0.0
        %3567 = vmatpush1.msra.mxu0 0.0
        %3568 = vmatprep.subr.mxu0 0.0
        %3569 = vmatpush1.msra.mxu0 0.0
        %3570 = vmatprep.subr.mxu0 0.0
        %3571 = vmatpush1.msra.mxu0 0.0
        %3572 = vmatprep.subr.mxu0 0.0
        %3573 = vmatpush1.msra.mxu0 0.0
        %3574 = vmatprep.mubr.f32.mxu0 0.0
        %v3575 = vand.u32 %v293, 4294901760
        %v3576 = vsub.f32 %v293, %v3575
        %3577 = vmatmul.mubr.f32.gmra.mrb[0].mxu0 %v3576
        %v3578 = vpop.f32.mrb[0].mxu0
        %v3579 = vadd.f32 %v3497, %v3578
        %v3580 = vpop.f32.mrb[0].mxu0
        %3581 = vmatprep.mubr.f32.mxu0 0.0
        %v3582 = vand.u32 %v296, 4294901760
        %v3583 = vsub.f32 %v296, %v3582
        %3584 = vmatmul.mubr.f32.gmra.mrb[0].mxu0 %v3583
        %v3585 = vpop.f32.mrb[0].mxu0
        %v3586 = vadd.f32 %v3503, %v3585
        %v3587 = vpop.f32.mrb[0].mxu0
        %3588 = vdwg.mxu0
        %3589 = vmatprep.subr.mxu0 0.0
        %v3590 = vand.u32 %v3330, 4294901760
        %3591 = vmatpush1.msra.mxu0 %v3590
        %3592 = vmatprep.subr.mxu0 0.0
        %v3593 = vand.u32 %v3331, 4294901760
        %3594 = vmatpush1.msra.mxu0 %v3593
        %3595 = vmatprep.subr.mxu0 0.0
        %3596 = vmatpush1.msra.mxu0 0.0
        %3597 = vmatprep.subr.mxu0 0.0
        %3598 = vmatpush1.msra.mxu0 0.0
        %3599 = vmatprep.subr.mxu0 0.0
        %3600 = vmatpush1.msra.mxu0 0.0
        %3601 = vmatprep.subr.mxu0 0.0
        %3602 = vmatpush1.msra.mxu0 0.0
        %3603 = vmatprep.subr.mxu0 0.0
        %3604 = vmatpush1.msra.mxu0 0.0
        %3605 = vmatprep.subr.mxu0 0.0
        %3606 = vmatpush1.msra.mxu0 0.0
        %3607 = vmatprep.subr.mxu0 0.0
        %3608 = vmatpush1.msra.mxu0 0.0
        %3609 = vmatprep.subr.mxu0 0.0
        %3610 = vmatpush1.msra.mxu0 0.0
        %3611 = vmatprep.subr.mxu0 0.0
        %3612 = vmatpush1.msra.mxu0 0.0
        %3613 = vmatprep.subr.mxu0 0.0
        %3614 = vmatpush1.msra.mxu0 0.0
        %3615 = vmatprep.subr.mxu0 0.0
        %3616 = vmatpush1.msra.mxu0 0.0
        %3617 = vmatprep.subr.mxu0 0.0
        %3618 = vmatpush1.msra.mxu0 0.0
        %3619 = vmatprep.subr.mxu0 0.0
        %3620 = vmatpush1.msra.mxu0 0.0
        %3621 = vmatprep.subr.mxu0 0.0
        %3622 = vmatpush1.msra.mxu0 0.0
        %3623 = vmatprep.subr.mxu0 0.0
        %3624 = vmatpush1.msra.mxu0 0.0
        %3625 = vmatprep.subr.mxu0 0.0
        %3626 = vmatpush1.msra.mxu0 0.0
        %3627 = vmatprep.subr.mxu0 0.0
        %3628 = vmatpush1.msra.mxu0 0.0
        %3629 = vmatprep.subr.mxu0 0.0
        %3630 = vmatpush1.msra.mxu0 0.0
        %3631 = vmatprep.subr.mxu0 0.0
        %3632 = vmatpush1.msra.mxu0 0.0
        %3633 = vmatprep.subr.mxu0 0.0
        %3634 = vmatpush1.msra.mxu0 0.0
        %3635 = vmatprep.subr.mxu0 0.0
        %3636 = vmatpush1.msra.mxu0 0.0
        %3637 = vmatprep.subr.mxu0 0.0
        %3638 = vmatpush1.msra.mxu0 0.0
        %3639 = vmatprep.subr.mxu0 0.0
        %3640 = vmatpush1.msra.mxu0 0.0
        %3641 = vmatprep.subr.mxu0 0.0
        %3642 = vmatpush1.msra.mxu0 0.0
        %3643 = vmatprep.subr.mxu0 0.0
        %3644 = vmatpush1.msra.mxu0 0.0
        %3645 = vmatprep.subr.mxu0 0.0
        %3646 = vmatpush1.msra.mxu0 0.0
        %3647 = vmatprep.subr.mxu0 0.0
        %3648 = vmatpush1.msra.mxu0 0.0
        %3649 = vmatprep.subr.mxu0 0.0
        %3650 = vmatpush1.msra.mxu0 0.0
        %3651 = vmatprep.subr.mxu0 0.0
        %3652 = vmatpush1.msra.mxu0 0.0
        %3653 = vmatprep.subr.mxu0 0.0
        %3654 = vmatpush1.msra.mxu0 0.0
        %3655 = vmatprep.mubr.f32.mxu0 0.0
        %v3656 = vand.u32 %v293, 4294901760
        %v3657 = vsub.f32 %v293, %v3656
        %v3658 = vand.u32 %v3657, 4294901760
        %3659 = vmatmul.mubr.f32.gmra.mrb[0].mxu0 %v3658
        %v3660 = vpop.f32.mrb[0].mxu0
        %v3661 = vadd.f32 %v3579, %v3660
        %v3662 = vpop.f32.mrb[0].mxu0
        %3663 = vmatprep.mubr.f32.mxu0 0.0
        %v3664 = vand.u32 %v296, 4294901760
        %v3665 = vsub.f32 %v296, %v3664
        %v3666 = vand.u32 %v3665, 4294901760
        %3667 = vmatmul.mubr.f32.gmra.mrb[0].mxu0 %v3666
        %v3668 = vpop.f32.mrb[0].mxu0
        %v3669 = vadd.f32 %v3586, %v3668
        %v3670 = vpop.f32.mrb[0].mxu0
        %3671 = vdwg.mxu0
        %3672 = vmatprep.subr.mxu0 0.0
        %v3673 = vand.u32 %v3330, 4294901760
        %v3674 = vsub.f32 %v3330, %v3673
        %v3675 = vand.u32 %v3674, 4294901760
        %3676 = vmatpush1.msra.mxu0 %v3675
        %3677 = vmatprep.subr.mxu0 0.0
        %v3678 = vand.u32 %v3331, 4294901760
        %v3679 = vsub.f32 %v3331, %v3678
        %v3680 = vand.u32 %v3679, 4294901760
        %3681 = vmatpush1.msra.mxu0 %v3680
        %3682 = vmatprep.subr.mxu0 0.0
        %3683 = vmatpush1.msra.mxu0 0.0
        %3684 = vmatprep.subr.mxu0 0.0
        %3685 = vmatpush1.msra.mxu0 0.0
        %3686 = vmatprep.subr.mxu0 0.0
        %3687 = vmatpush1.msra.mxu0 0.0
        %3688 = vmatprep.subr.mxu0 0.0
        %3689 = vmatpush1.msra.mxu0 0.0
        %3690 = vmatprep.subr.mxu0 0.0
        %3691 = vmatpush1.msra.mxu0 0.0
        %3692 = vmatprep.subr.mxu0 0.0
        %3693 = vmatpush1.msra.mxu0 0.0
        %3694 = vmatprep.subr.mxu0 0.0
        %3695 = vmatpush1.msra.mxu0 0.0
        %3696 = vmatprep.subr.mxu0 0.0
        %3697 = vmatpush1.msra.mxu0 0.0
        %3698 = vmatprep.subr.mxu0 0.0
        %3699 = vmatpush1.msra.mxu0 0.0
        %3700 = vmatprep.subr.mxu0 0.0
        %3701 = vmatpush1.msra.mxu0 0.0
        %3702 = vmatprep.subr.mxu0 0.0
        %3703 = vmatpush1.msra.mxu0 0.0
        %3704 = vmatprep.subr.mxu0 0.0
        %3705 = vmatpush1.msra.mxu0 0.0
        %3706 = vmatprep.subr.mxu0 0.0
        %3707 = vmatpush1.msra.mxu0 0.0
        %3708 = vmatprep.subr.mxu0 0.0
        %3709 = vmatpush1.msra.mxu0 0.0
        %3710 = vmatprep.subr.mxu0 0.0
        %3711 = vmatpush1.msra.mxu0 0.0
        %3712 = vmatprep.subr.mxu0 0.0
        %3713 = vmatpush1.msra.mxu0 0.0
        %3714 = vmatprep.subr.mxu0 0.0
        %3715 = vmatpush1.msra.mxu0 0.0
        %3716 = vmatprep.subr.mxu0 0.0
        %3717 = vmatpush1.msra.mxu0 0.0
        %3718 = vmatprep.subr.mxu0 0.0
        %3719 = vmatpush1.msra.mxu0 0.0
        %3720 = vmatprep.subr.mxu0 0.0
        %3721 = vmatpush1.msra.mxu0 0.0
        %3722 = vmatprep.subr.mxu0 0.0
        %3723 = vmatpush1.msra.mxu0 0.0
        %3724 = vmatprep.subr.mxu0 0.0
        %3725 = vmatpush1.msra.mxu0 0.0
        %3726 = vmatprep.subr.mxu0 0.0
        %3727 = vmatpush1.msra.mxu0 0.0
        %3728 = vmatprep.subr.mxu0 0.0
        %3729 = vmatpush1.msra.mxu0 0.0
        %3730 = vmatprep.subr.mxu0 0.0
        %3731 = vmatpush1.msra.mxu0 0.0
        %3732 = vmatprep.subr.mxu0 0.0
        %3733 = vmatpush1.msra.mxu0 0.0
        %3734 = vmatprep.subr.mxu0 0.0
        %3735 = vmatpush1.msra.mxu0 0.0
        %3736 = vmatprep.subr.mxu0 0.0
        %3737 = vmatpush1.msra.mxu0 0.0
        %3738 = vmatprep.subr.mxu0 0.0
        %3739 = vmatpush1.msra.mxu0 0.0
        %3740 = vmatprep.subr.mxu0 0.0
        %3741 = vmatpush1.msra.mxu0 0.0
        %3742 = vmatprep.mubr.f32.mxu0 0.0
        %v3743 = vand.u32 %v293, 4294901760
        %3744 = vmatmul.mubr.f32.gmra.mrb[0].mxu0 %v3743
        %v3745 = vpop.f32.mrb[0].mxu0
        %v3746 = vadd.f32 %v3661, %v3745
        %v3747 = vpop.f32.mrb[0].mxu0
        %3748 = vmatprep.mubr.f32.mxu0 0.0
        %v3749 = vand.u32 %v296, 4294901760
        %3750 = vmatmul.mubr.f32.gmra.mrb[0].mxu0 %v3749
        %v3751 = vpop.f32.mrb[0].mxu0
        %v3752 = vadd.f32 %v3669, %v3751
        %v3753 = vpop.f32.mrb[0].mxu0
        %3754 = vdwg.mxu0
        %3755 = vmatprep.subr.mxu0 0.0
        %v3756 = vand.u32 %v3330, 4294901760
        %3757 = vmatpush1.msra.mxu0 %v3756
        %3758 = vmatprep.subr.mxu0 0.0
        %v3759 = vand.u32 %v3331, 4294901760
        %3760 = vmatpush1.msra.mxu0 %v3759
        %3761 = vmatprep.subr.mxu0 0.0
        %3762 = vmatpush1.msra.mxu0 0.0
        %3763 = vmatprep.subr.mxu0 0.0
        %3764 = vmatpush1.msra.mxu0 0.0
        %3765 = vmatprep.subr.mxu0 0.0
        %3766 = vmatpush1.msra.mxu0 0.0
        %3767 = vmatprep.subr.mxu0 0.0
        %3768 = vmatpush1.msra.mxu0 0.0
        %3769 = vmatprep.subr.mxu0 0.0
        %3770 = vmatpush1.msra.mxu0 0.0
        %3771 = vmatprep.subr.mxu0 0.0
        %3772 = vmatpush1.msra.mxu0 0.0
        %3773 = vmatprep.subr.mxu0 0.0
        %3774 = vmatpush1.msra.mxu0 0.0
        %3775 = vmatprep.subr.mxu0 0.0
        %3776 = vmatpush1.msra.mxu0 0.0
        %3777 = vmatprep.subr.mxu0 0.0
        %3778 = vmatpush1.msra.mxu0 0.0
        %3779 = vmatprep.subr.mxu0 0.0
        %3780 = vmatpush1.msra.mxu0 0.0
        %3781 = vmatprep.subr.mxu0 0.0
        %3782 = vmatpush1.msra.mxu0 0.0
        %3783 = vmatprep.subr.mxu0 0.0
        %3784 = vmatpush1.msra.mxu0 0.0
        %3785 = vmatprep.subr.mxu0 0.0
        %3786 = vmatpush1.msra.mxu0 0.0
        %3787 = vmatprep.subr.mxu0 0.0
        %3788 = vmatpush1.msra.mxu0 0.0
        %3789 = vmatprep.subr.mxu0 0.0
        %3790 = vmatpush1.msra.mxu0 0.0
        %3791 = vmatprep.subr.mxu0 0.0
        %3792 = vmatpush1.msra.mxu0 0.0
        %3793 = vmatprep.subr.mxu0 0.0
        %3794 = vmatpush1.msra.mxu0 0.0
        %3795 = vmatprep.subr.mxu0 0.0
        %3796 = vmatpush1.msra.mxu0 0.0
        %3797 = vmatprep.subr.mxu0 0.0
        %3798 = vmatpush1.msra.mxu0 0.0
        %3799 = vmatprep.subr.mxu0 0.0
        %3800 = vmatpush1.msra.mxu0 0.0
        %3801 = vmatprep.subr.mxu0 0.0
        %3802 = vmatpush1.msra.mxu0 0.0
        %3803 = vmatprep.subr.mxu0 0.0
        %3804 = vmatpush1.msra.mxu0 0.0
        %3805 = vmatprep.subr.mxu0 0.0
        %3806 = vmatpush1.msra.mxu0 0.0
        %3807 = vmatprep.subr.mxu0 0.0
        %3808 = vmatpush1.msra.mxu0 0.0
        %3809 = vmatprep.subr.mxu0 0.0
        %3810 = vmatpush1.msra.mxu0 0.0
        %3811 = vmatprep.subr.mxu0 0.0
        %3812 = vmatpush1.msra.mxu0 0.0
        %3813 = vmatprep.subr.mxu0 0.0
        %3814 = vmatpush1.msra.mxu0 0.0
        %3815 = vmatprep.subr.mxu0 0.0
        %3816 = vmatpush1.msra.mxu0 0.0
        %3817 = vmatprep.subr.mxu0 0.0
        %3818 = vmatpush1.msra.mxu0 0.0
        %3819 = vmatprep.subr.mxu0 0.0
        %3820 = vmatpush1.msra.mxu0 0.0
        %3821 = vmatprep.mubr.f32.mxu0 0.0
        %v3822 = vand.u32 %v293, 4294901760
        %3823 = vmatmul.mubr.f32.gmra.mrb[0].mxu0 %v3822
        %v3824 = vpop.f32.mrb[0].mxu0
        %v3825 = vadd.f32 %v3746, %v3824
        %v3826 = vpop.f32.mrb[0].mxu0
        %3827 = vmatprep.mubr.f32.mxu0 0.0
        %v3828 = vand.u32 %v296, 4294901760
        %3829 = vmatmul.mubr.f32.gmra.mrb[0].mxu0 %v3828
        %v3830 = vpop.f32.mrb[0].mxu0
        %v3831 = vadd.f32 %v3752, %v3830
        %v3832 = vpop.f32.mrb[0].mxu0
        %3833 = vdwg.mxu0
        %v3835 = vsel %vm291, %v3825, 0
        %v3838 = vsel %vm291, %v3831, 0
        %3840 = vmatprep.subr.mxu0 0.0
        %v3841 = vand.u32 %v289, 4294901760
        %3842 = vmatpush1.msra.mxu0 %v3841
        %3843 = vmatprep.subr.mxu0 0.0
        %v3844 = vand.u32 %v290, 4294901760
        %3845 = vmatpush1.msra.mxu0 %v3844
        %3846 = vmatprep.subr.mxu0 0.0
        %3847 = vmatpush1.msra.mxu0 0.0
        %3848 = vmatprep.subr.mxu0 0.0
        %3849 = vmatpush1.msra.mxu0 0.0
        %3850 = vmatprep.subr.mxu0 0.0
        %3851 = vmatpush1.msra.mxu0 0.0
        %3852 = vmatprep.subr.mxu0 0.0
        %3853 = vmatpush1.msra.mxu0 0.0
        %3854 = vmatprep.subr.mxu0 0.0
        %3855 = vmatpush1.msra.mxu0 0.0
        %3856 = vmatprep.subr.mxu0 0.0
        %3857 = vmatpush1.msra.mxu0 0.0
        %3858 = vmatprep.subr.mxu0 0.0
        %3859 = vmatpush1.msra.mxu0 0.0
        %3860 = vmatprep.subr.mxu0 0.0
        %3861 = vmatpush1.msra.mxu0 0.0
        %3862 = vmatprep.subr.mxu0 0.0
        %3863 = vmatpush1.msra.mxu0 0.0
        %3864 = vmatprep.subr.mxu0 0.0
        %3865 = vmatpush1.msra.mxu0 0.0
        %3866 = vmatprep.subr.mxu0 0.0
        %3867 = vmatpush1.msra.mxu0 0.0
        %3868 = vmatprep.subr.mxu0 0.0
        %3869 = vmatpush1.msra.mxu0 0.0
        %3870 = vmatprep.subr.mxu0 0.0
        %3871 = vmatpush1.msra.mxu0 0.0
        %3872 = vmatprep.subr.mxu0 0.0
        %3873 = vmatpush1.msra.mxu0 0.0
        %3874 = vmatprep.subr.mxu0 0.0
        %3875 = vmatpush1.msra.mxu0 0.0
        %3876 = vmatprep.subr.mxu0 0.0
        %3877 = vmatpush1.msra.mxu0 0.0
        %3878 = vmatprep.subr.mxu0 0.0
        %3879 = vmatpush1.msra.mxu0 0.0
        %3880 = vmatprep.subr.mxu0 0.0
        %3881 = vmatpush1.msra.mxu0 0.0
        %3882 = vmatprep.subr.mxu0 0.0
        %3883 = vmatpush1.msra.mxu0 0.0
        %3884 = vmatprep.subr.mxu0 0.0
        %3885 = vmatpush1.msra.mxu0 0.0
        %3886 = vmatprep.subr.mxu0 0.0
        %3887 = vmatpush1.msra.mxu0 0.0
        %3888 = vmatprep.subr.mxu0 0.0
        %3889 = vmatpush1.msra.mxu0 0.0
        %3890 = vmatprep.subr.mxu0 0.0
        %3891 = vmatpush1.msra.mxu0 0.0
        %3892 = vmatprep.subr.mxu0 0.0
        %3893 = vmatpush1.msra.mxu0 0.0
        %3894 = vmatprep.subr.mxu0 0.0
        %3895 = vmatpush1.msra.mxu0 0.0
        %3896 = vmatprep.subr.mxu0 0.0
        %3897 = vmatpush1.msra.mxu0 0.0
        %3898 = vmatprep.subr.mxu0 0.0
        %3899 = vmatpush1.msra.mxu0 0.0
        %3900 = vmatprep.subr.mxu0 0.0
        %3901 = vmatpush1.msra.mxu0 0.0
        %3902 = vmatprep.subr.mxu0 0.0
        %3903 = vmatpush1.msra.mxu0 0.0
        %3904 = vmatprep.subr.mxu0 0.0
        %3905 = vmatpush1.msra.mxu0 0.0
        %3906 = vmatprep.mubr.f32.mxu0 0.0
        %v3907 = vand.u32 %v3835, 4294901760
        %v3908 = vsub.f32 %v3835, %v3907
        %v3909 = vand.u32 %v3908, 4294901760
        %v3910 = vsub.f32 %v3908, %v3909
        %v3911 = vand.u32 %v3910, 4294901760
        %3912 = vmatmul.mubr.f32.gmra.mrb[0].mxu0 %v3911
        %v3913 = vpop.f32.mrb[0].mxu0
        %v3914 = vadd.f32 0.0, %v3913
        %v3915 = vpop.f32.mrb[0].mxu0
        %3916 = vmatprep.mubr.f32.mxu0 0.0
        %v3917 = vand.u32 %v3838, 4294901760
        %v3918 = vsub.f32 %v3838, %v3917
        %v3919 = vand.u32 %v3918, 4294901760
        %v3920 = vsub.f32 %v3918, %v3919
        %v3921 = vand.u32 %v3920, 4294901760
        %3922 = vmatmul.mubr.f32.gmra.mrb[0].mxu0 %v3921
        %v3923 = vpop.f32.mrb[0].mxu0
        %v3924 = vadd.f32 0.0, %v3923
        %v3925 = vpop.f32.mrb[0].mxu0
        %3926 = vdwg.mxu0
        %3927 = vmatprep.subr.mxu0 0.0
        %v3928 = vand.u32 %v289, 4294901760
        %v3929 = vsub.f32 %v289, %v3928
        %v3930 = vand.u32 %v3929, 4294901760
        %v3931 = vsub.f32 %v3929, %v3930
        %v3932 = vand.u32 %v3931, 4294901760
        %3933 = vmatpush1.msra.mxu0 %v3932
        %3934 = vmatprep.subr.mxu0 0.0
        %v3935 = vand.u32 %v290, 4294901760
        %v3936 = vsub.f32 %v290, %v3935
        %v3937 = vand.u32 %v3936, 4294901760
        %v3938 = vsub.f32 %v3936, %v3937
        %v3939 = vand.u32 %v3938, 4294901760
        %3940 = vmatpush1.msra.mxu0 %v3939
        %3941 = vmatprep.subr.mxu0 0.0
        %3942 = vmatpush1.msra.mxu0 0.0
        %3943 = vmatprep.subr.mxu0 0.0
        %3944 = vmatpush1.msra.mxu0 0.0
        %3945 = vmatprep.subr.mxu0 0.0
        %3946 = vmatpush1.msra.mxu0 0.0
        %3947 = vmatprep.subr.mxu0 0.0
        %3948 = vmatpush1.msra.mxu0 0.0
        %3949 = vmatprep.subr.mxu0 0.0
        %3950 = vmatpush1.msra.mxu0 0.0
        %3951 = vmatprep.subr.mxu0 0.0
        %3952 = vmatpush1.msra.mxu0 0.0
        %3953 = vmatprep.subr.mxu0 0.0
        %3954 = vmatpush1.msra.mxu0 0.0
        %3955 = vmatprep.subr.mxu0 0.0
        %3956 = vmatpush1.msra.mxu0 0.0
        %3957 = vmatprep.subr.mxu0 0.0
        %3958 = vmatpush1.msra.mxu0 0.0
        %3959 = vmatprep.subr.mxu0 0.0
        %3960 = vmatpush1.msra.mxu0 0.0
        %3961 = vmatprep.subr.mxu0 0.0
        %3962 = vmatpush1.msra.mxu0 0.0
        %3963 = vmatprep.subr.mxu0 0.0
        %3964 = vmatpush1.msra.mxu0 0.0
        %3965 = vmatprep.subr.mxu0 0.0
        %3966 = vmatpush1.msra.mxu0 0.0
        %3967 = vmatprep.subr.mxu0 0.0
        %3968 = vmatpush1.msra.mxu0 0.0
        %3969 = vmatprep.subr.mxu0 0.0
        %3970 = vmatpush1.msra.mxu0 0.0
        %3971 = vmatprep.subr.mxu0 0.0
        %3972 = vmatpush1.msra.mxu0 0.0
        %3973 = vmatprep.subr.mxu0 0.0
        %3974 = vmatpush1.msra.mxu0 0.0
        %3975 = vmatprep.subr.mxu0 0.0
        %3976 = vmatpush1.msra.mxu0 0.0
        %3977 = vmatprep.subr.mxu0 0.0
        %3978 = vmatpush1.msra.mxu0 0.0
        %3979 = vmatprep.subr.mxu0 0.0
        %3980 = vmatpush1.msra.mxu0 0.0
        %3981 = vmatprep.subr.mxu0 0.0
        %3982 = vmatpush1.msra.mxu0 0.0
        %3983 = vmatprep.subr.mxu0 0.0
        %3984 = vmatpush1.msra.mxu0 0.0
        %3985 = vmatprep.subr.mxu0 0.0
        %3986 = vmatpush1.msra.mxu0 0.0
        %3987 = vmatprep.subr.mxu0 0.0
        %3988 = vmatpush1.msra.mxu0 0.0
        %3989 = vmatprep.subr.mxu0 0.0
        %3990 = vmatpush1.msra.mxu0 0.0
        %3991 = vmatprep.subr.mxu0 0.0
        %3992 = vmatpush1.msra.mxu0 0.0
        %3993 = vmatprep.subr.mxu0 0.0
        %3994 = vmatpush1.msra.mxu0 0.0
        %3995 = vmatprep.subr.mxu0 0.0
        %3996 = vmatpush1.msra.mxu0 0.0
        %3997 = vmatprep.subr.mxu0 0.0
        %3998 = vmatpush1.msra.mxu0 0.0
        %3999 = vmatprep.subr.mxu0 0.0
        %4000 = vmatpush1.msra.mxu0 0.0
        %4001 = vmatprep.mubr.f32.mxu0 0.0
        %v4002 = vand.u32 %v3835, 4294901760
        %4003 = vmatmul.mubr.f32.gmra.mrb[0].mxu0 %v4002
        %v4004 = vpop.f32.mrb[0].mxu0
        %v4005 = vadd.f32 %v3914, %v4004
        %v4006 = vpop.f32.mrb[0].mxu0
        %4007 = vmatprep.mubr.f32.mxu0 0.0
        %v4008 = vand.u32 %v3838, 4294901760
        %4009 = vmatmul.mubr.f32.gmra.mrb[0].mxu0 %v4008
        %v4010 = vpop.f32.mrb[0].mxu0
        %v4011 = vadd.f32 %v3924, %v4010
        %v4012 = vpop.f32.mrb[0].mxu0
        %4013 = vdwg.mxu0
        %4014 = vmatprep.subr.mxu0 0.0
        %v4015 = vand.u32 %v289, 4294901760
        %v4016 = vsub.f32 %v289, %v4015
        %4017 = vmatpush1.msra.mxu0 %v4016
        %4018 = vmatprep.subr.mxu0 0.0
        %v4019 = vand.u32 %v290, 4294901760
        %v4020 = vsub.f32 %v290, %v4019
        %4021 = vmatpush1.msra.mxu0 %v4020
        %4022 = vmatprep.subr.mxu0 0.0
        %4023 = vmatpush1.msra.mxu0 0.0
        %4024 = vmatprep.subr.mxu0 0.0
        %4025 = vmatpush1.msra.mxu0 0.0
        %4026 = vmatprep.subr.mxu0 0.0
        %4027 = vmatpush1.msra.mxu0 0.0
        %4028 = vmatprep.subr.mxu0 0.0
        %4029 = vmatpush1.msra.mxu0 0.0
        %4030 = vmatprep.subr.mxu0 0.0
        %4031 = vmatpush1.msra.mxu0 0.0
        %4032 = vmatprep.subr.mxu0 0.0
        %4033 = vmatpush1.msra.mxu0 0.0
        %4034 = vmatprep.subr.mxu0 0.0
        %4035 = vmatpush1.msra.mxu0 0.0
        %4036 = vmatprep.subr.mxu0 0.0
        %4037 = vmatpush1.msra.mxu0 0.0
        %4038 = vmatprep.subr.mxu0 0.0
        %4039 = vmatpush1.msra.mxu0 0.0
        %4040 = vmatprep.subr.mxu0 0.0
        %4041 = vmatpush1.msra.mxu0 0.0
        %4042 = vmatprep.subr.mxu0 0.0
        %4043 = vmatpush1.msra.mxu0 0.0
        %4044 = vmatprep.subr.mxu0 0.0
        %4045 = vmatpush1.msra.mxu0 0.0
        %4046 = vmatprep.subr.mxu0 0.0
        %4047 = vmatpush1.msra.mxu0 0.0
        %4048 = vmatprep.subr.mxu0 0.0
        %4049 = vmatpush1.msra.mxu0 0.0
        %4050 = vmatprep.subr.mxu0 0.0
        %4051 = vmatpush1.msra.mxu0 0.0
        %4052 = vmatprep.subr.mxu0 0.0
        %4053 = vmatpush1.msra.mxu0 0.0
        %4054 = vmatprep.subr.mxu0 0.0
        %4055 = vmatpush1.msra.mxu0 0.0
        %4056 = vmatprep.subr.mxu0 0.0
        %4057 = vmatpush1.msra.mxu0 0.0
        %4058 = vmatprep.subr.mxu0 0.0
        %4059 = vmatpush1.msra.mxu0 0.0
        %4060 = vmatprep.subr.mxu0 0.0
        %4061 = vmatpush1.msra.mxu0 0.0
        %4062 = vmatprep.subr.mxu0 0.0
        %4063 = vmatpush1.msra.mxu0 0.0
        %4064 = vmatprep.subr.mxu0 0.0
        %4065 = vmatpush1.msra.mxu0 0.0
        %4066 = vmatprep.subr.mxu0 0.0
        %4067 = vmatpush1.msra.mxu0 0.0
        %4068 = vmatprep.subr.mxu0 0.0
        %4069 = vmatpush1.msra.mxu0 0.0
        %4070 = vmatprep.subr.mxu0 0.0
        %4071 = vmatpush1.msra.mxu0 0.0
        %4072 = vmatprep.subr.mxu0 0.0
        %4073 = vmatpush1.msra.mxu0 0.0
        %4074 = vmatprep.subr.mxu0 0.0
        %4075 = vmatpush1.msra.mxu0 0.0
        %4076 = vmatprep.subr.mxu0 0.0
        %4077 = vmatpush1.msra.mxu0 0.0
        %4078 = vmatprep.subr.mxu0 0.0
        %4079 = vmatpush1.msra.mxu0 0.0
        %4080 = vmatprep.subr.mxu0 0.0
        %4081 = vmatpush1.msra.mxu0 0.0
        %4082 = vmatprep.mubr.f32.mxu0 0.0
        %v4083 = vand.u32 %v3835, 4294901760
        %v4084 = vsub.f32 %v3835, %v4083
        %4085 = vmatmul.mubr.f32.gmra.mrb[0].mxu0 %v4084
        %v4086 = vpop.f32.mrb[0].mxu0
        %v4087 = vadd.f32 %v4005, %v4086
        %v4088 = vpop.f32.mrb[0].mxu0
        %4089 = vmatprep.mubr.f32.mxu0 0.0
        %v4090 = vand.u32 %v3838, 4294901760
        %v4091 = vsub.f32 %v3838, %v4090
        %4092 = vmatmul.mubr.f32.gmra.mrb[0].mxu0 %v4091
        %v4093 = vpop.f32.mrb[0].mxu0
        %v4094 = vadd.f32 %v4011, %v4093
        %v4095 = vpop.f32.mrb[0].mxu0
        %4096 = vdwg.mxu0
        %4097 = vmatprep.subr.mxu0 0.0
        %v4098 = vand.u32 %v289, 4294901760
        %4099 = vmatpush1.msra.mxu0 %v4098
        %4100 = vmatprep.subr.mxu0 0.0
        %v4101 = vand.u32 %v290, 4294901760
        %4102 = vmatpush1.msra.mxu0 %v4101
        %4103 = vmatprep.subr.mxu0 0.0
        %4104 = vmatpush1.msra.mxu0 0.0
        %4105 = vmatprep.subr.mxu0 0.0
        %4106 = vmatpush1.msra.mxu0 0.0
        %4107 = vmatprep.subr.mxu0 0.0
        %4108 = vmatpush1.msra.mxu0 0.0
        %4109 = vmatprep.subr.mxu0 0.0
        %4110 = vmatpush1.msra.mxu0 0.0
        %4111 = vmatprep.subr.mxu0 0.0
        %4112 = vmatpush1.msra.mxu0 0.0
        %4113 = vmatprep.subr.mxu0 0.0
        %4114 = vmatpush1.msra.mxu0 0.0
        %4115 = vmatprep.subr.mxu0 0.0
        %4116 = vmatpush1.msra.mxu0 0.0
        %4117 = vmatprep.subr.mxu0 0.0
        %4118 = vmatpush1.msra.mxu0 0.0
        %4119 = vmatprep.subr.mxu0 0.0
        %4120 = vmatpush1.msra.mxu0 0.0
        %4121 = vmatprep.subr.mxu0 0.0
        %4122 = vmatpush1.msra.mxu0 0.0
        %4123 = vmatprep.subr.mxu0 0.0
        %4124 = vmatpush1.msra.mxu0 0.0
        %4125 = vmatprep.subr.mxu0 0.0
        %4126 = vmatpush1.msra.mxu0 0.0
        %4127 = vmatprep.subr.mxu0 0.0
        %4128 = vmatpush1.msra.mxu0 0.0
        %4129 = vmatprep.subr.mxu0 0.0
        %4130 = vmatpush1.msra.mxu0 0.0
        %4131 = vmatprep.subr.mxu0 0.0
        %4132 = vmatpush1.msra.mxu0 0.0
        %4133 = vmatprep.subr.mxu0 0.0
        %4134 = vmatpush1.msra.mxu0 0.0
        %4135 = vmatprep.subr.mxu0 0.0
        %4136 = vmatpush1.msra.mxu0 0.0
        %4137 = vmatprep.subr.mxu0 0.0
        %4138 = vmatpush1.msra.mxu0 0.0
        %4139 = vmatprep.subr.mxu0 0.0
        %4140 = vmatpush1.msra.mxu0 0.0
        %4141 = vmatprep.subr.mxu0 0.0
        %4142 = vmatpush1.msra.mxu0 0.0
        %4143 = vmatprep.subr.mxu0 0.0
        %4144 = vmatpush1.msra.mxu0 0.0
        %4145 = vmatprep.subr.mxu0 0.0
        %4146 = vmatpush1.msra.mxu0 0.0
        %4147 = vmatprep.subr.mxu0 0.0
        %4148 = vmatpush1.msra.mxu0 0.0
        %4149 = vmatprep.subr.mxu0 0.0
        %4150 = vmatpush1.msra.mxu0 0.0
        %4151 = vmatprep.subr.mxu0 0.0
        %4152 = vmatpush1.msra.mxu0 0.0
        %4153 = vmatprep.subr.mxu0 0.0
        %4154 = vmatpush1.msra.mxu0 0.0
        %4155 = vmatprep.subr.mxu0 0.0
        %4156 = vmatpush1.msra.mxu0 0.0
        %4157 = vmatprep.subr.mxu0 0.0
        %4158 = vmatpush1.msra.mxu0 0.0
        %4159 = vmatprep.subr.mxu0 0.0
        %4160 = vmatpush1.msra.mxu0 0.0
        %4161 = vmatprep.subr.mxu0 0.0
        %4162 = vmatpush1.msra.mxu0 0.0
        %4163 = vmatprep.mubr.f32.mxu0 0.0
        %v4164 = vand.u32 %v3835, 4294901760
        %v4165 = vsub.f32 %v3835, %v4164
        %v4166 = vand.u32 %v4165, 4294901760
        %4167 = vmatmul.mubr.f32.gmra.mrb[0].mxu0 %v4166
        %v4168 = vpop.f32.mrb[0].mxu0
        %v4169 = vadd.f32 %v4087, %v4168
        %v4170 = vpop.f32.mrb[0].mxu0
        %4171 = vmatprep.mubr.f32.mxu0 0.0
        %v4172 = vand.u32 %v3838, 4294901760
        %v4173 = vsub.f32 %v3838, %v4172
        %v4174 = vand.u32 %v4173, 4294901760
        %4175 = vmatmul.mubr.f32.gmra.mrb[0].mxu0 %v4174
        %v4176 = vpop.f32.mrb[0].mxu0
        %v4177 = vadd.f32 %v4094, %v4176
        %v4178 = vpop.f32.mrb[0].mxu0
        %4179 = vdwg.mxu0
        %4180 = vmatprep.subr.mxu0 0.0
        %v4181 = vand.u32 %v289, 4294901760
        %v4182 = vsub.f32 %v289, %v4181
        %v4183 = vand.u32 %v4182, 4294901760
        %4184 = vmatpush1.msra.mxu0 %v4183
        %4185 = vmatprep.subr.mxu0 0.0
        %v4186 = vand.u32 %v290, 4294901760
        %v4187 = vsub.f32 %v290, %v4186
        %v4188 = vand.u32 %v4187, 4294901760
        %4189 = vmatpush1.msra.mxu0 %v4188
        %4190 = vmatprep.subr.mxu0 0.0
        %4191 = vmatpush1.msra.mxu0 0.0
        %4192 = vmatprep.subr.mxu0 0.0
        %4193 = vmatpush1.msra.mxu0 0.0
        %4194 = vmatprep.subr.mxu0 0.0
        %4195 = vmatpush1.msra.mxu0 0.0
        %4196 = vmatprep.subr.mxu0 0.0
        %4197 = vmatpush1.msra.mxu0 0.0
        %4198 = vmatprep.subr.mxu0 0.0
        %4199 = vmatpush1.msra.mxu0 0.0
        %4200 = vmatprep.subr.mxu0 0.0
        %4201 = vmatpush1.msra.mxu0 0.0
        %4202 = vmatprep.subr.mxu0 0.0
        %4203 = vmatpush1.msra.mxu0 0.0
        %4204 = vmatprep.subr.mxu0 0.0
        %4205 = vmatpush1.msra.mxu0 0.0
        %4206 = vmatprep.subr.mxu0 0.0
        %4207 = vmatpush1.msra.mxu0 0.0
        %4208 = vmatprep.subr.mxu0 0.0
        %4209 = vmatpush1.msra.mxu0 0.0
        %4210 = vmatprep.subr.mxu0 0.0
        %4211 = vmatpush1.msra.mxu0 0.0
        %4212 = vmatprep.subr.mxu0 0.0
        %4213 = vmatpush1.msra.mxu0 0.0
        %4214 = vmatprep.subr.mxu0 0.0
        %4215 = vmatpush1.msra.mxu0 0.0
        %4216 = vmatprep.subr.mxu0 0.0
        %4217 = vmatpush1.msra.mxu0 0.0
        %4218 = vmatprep.subr.mxu0 0.0
        %4219 = vmatpush1.msra.mxu0 0.0
        %4220 = vmatprep.subr.mxu0 0.0
        %4221 = vmatpush1.msra.mxu0 0.0
        %4222 = vmatprep.subr.mxu0 0.0
        %4223 = vmatpush1.msra.mxu0 0.0
        %4224 = vmatprep.subr.mxu0 0.0
        %4225 = vmatpush1.msra.mxu0 0.0
        %4226 = vmatprep.subr.mxu0 0.0
        %4227 = vmatpush1.msra.mxu0 0.0
        %4228 = vmatprep.subr.mxu0 0.0
        %4229 = vmatpush1.msra.mxu0 0.0
        %4230 = vmatprep.subr.mxu0 0.0
        %4231 = vmatpush1.msra.mxu0 0.0
        %4232 = vmatprep.subr.mxu0 0.0
        %4233 = vmatpush1.msra.mxu0 0.0
        %4234 = vmatprep.subr.mxu0 0.0
        %4235 = vmatpush1.msra.mxu0 0.0
        %4236 = vmatprep.subr.mxu0 0.0
        %4237 = vmatpush1.msra.mxu0 0.0
        %4238 = vmatprep.subr.mxu0 0.0
        %4239 = vmatpush1.msra.mxu0 0.0
        %4240 = vmatprep.subr.mxu0 0.0
        %4241 = vmatpush1.msra.mxu0 0.0
        %4242 = vmatprep.subr.mxu0 0.0
        %4243 = vmatpush1.msra.mxu0 0.0
        %4244 = vmatprep.subr.mxu0 0.0
        %4245 = vmatpush1.msra.mxu0 0.0
        %4246 = vmatprep.subr.mxu0 0.0
        %4247 = vmatpush1.msra.mxu0 0.0
        %4248 = vmatprep.subr.mxu0 0.0
        %4249 = vmatpush1.msra.mxu0 0.0
        %4250 = vmatprep.mubr.f32.mxu0 0.0
        %v4251 = vand.u32 %v3835, 4294901760
        %4252 = vmatmul.mubr.f32.gmra.mrb[0].mxu0 %v4251
        %v4253 = vpop.f32.mrb[0].mxu0
        %v4254 = vadd.f32 %v4169, %v4253
        %v4255 = vpop.f32.mrb[0].mxu0
        %4256 = vmatprep.mubr.f32.mxu0 0.0
        %v4257 = vand.u32 %v3838, 4294901760
        %4258 = vmatmul.mubr.f32.gmra.mrb[0].mxu0 %v4257
        %v4259 = vpop.f32.mrb[0].mxu0
        %v4260 = vadd.f32 %v4177, %v4259
        %v4261 = vpop.f32.mrb[0].mxu0
        %4262 = vdwg.mxu0
        %4263 = vmatprep.subr.mxu0 0.0
        %v4264 = vand.u32 %v289, 4294901760
        %4265 = vmatpush1.msra.mxu0 %v4264
        %4266 = vmatprep.subr.mxu0 0.0
        %v4267 = vand.u32 %v290, 4294901760
        %4268 = vmatpush1.msra.mxu0 %v4267
        %4269 = vmatprep.subr.mxu0 0.0
        %4270 = vmatpush1.msra.mxu0 0.0
        %4271 = vmatprep.subr.mxu0 0.0
        %4272 = vmatpush1.msra.mxu0 0.0
        %4273 = vmatprep.subr.mxu0 0.0
        %4274 = vmatpush1.msra.mxu0 0.0
        %4275 = vmatprep.subr.mxu0 0.0
        %4276 = vmatpush1.msra.mxu0 0.0
        %4277 = vmatprep.subr.mxu0 0.0
        %4278 = vmatpush1.msra.mxu0 0.0
        %4279 = vmatprep.subr.mxu0 0.0
        %4280 = vmatpush1.msra.mxu0 0.0
        %4281 = vmatprep.subr.mxu0 0.0
        %4282 = vmatpush1.msra.mxu0 0.0
        %4283 = vmatprep.subr.mxu0 0.0
        %4284 = vmatpush1.msra.mxu0 0.0
        %4285 = vmatprep.subr.mxu0 0.0
        %4286 = vmatpush1.msra.mxu0 0.0
        %4287 = vmatprep.subr.mxu0 0.0
        %4288 = vmatpush1.msra.mxu0 0.0
        %4289 = vmatprep.subr.mxu0 0.0
        %4290 = vmatpush1.msra.mxu0 0.0
        %4291 = vmatprep.subr.mxu0 0.0
        %4292 = vmatpush1.msra.mxu0 0.0
        %4293 = vmatprep.subr.mxu0 0.0
        %4294 = vmatpush1.msra.mxu0 0.0
        %4295 = vmatprep.subr.mxu0 0.0
        %4296 = vmatpush1.msra.mxu0 0.0
        %4297 = vmatprep.subr.mxu0 0.0
        %4298 = vmatpush1.msra.mxu0 0.0
        %4299 = vmatprep.subr.mxu0 0.0
        %4300 = vmatpush1.msra.mxu0 0.0
        %4301 = vmatprep.subr.mxu0 0.0
        %4302 = vmatpush1.msra.mxu0 0.0
        %4303 = vmatprep.subr.mxu0 0.0
        %4304 = vmatpush1.msra.mxu0 0.0
        %4305 = vmatprep.subr.mxu0 0.0
        %4306 = vmatpush1.msra.mxu0 0.0
        %4307 = vmatprep.subr.mxu0 0.0
        %4308 = vmatpush1.msra.mxu0 0.0
        %4309 = vmatprep.subr.mxu0 0.0
        %4310 = vmatpush1.msra.mxu0 0.0
        %4311 = vmatprep.subr.mxu0 0.0
        %4312 = vmatpush1.msra.mxu0 0.0
        %4313 = vmatprep.subr.mxu0 0.0
        %4314 = vmatpush1.msra.mxu0 0.0
        %4315 = vmatprep.subr.mxu0 0.0
        %4316 = vmatpush1.msra.mxu0 0.0
        %4317 = vmatprep.subr.mxu0 0.0
        %4318 = vmatpush1.msra.mxu0 0.0
        %4319 = vmatprep.subr.mxu0 0.0
        %4320 = vmatpush1.msra.mxu0 0.0
        %4321 = vmatprep.subr.mxu0 0.0
        %4322 = vmatpush1.msra.mxu0 0.0
        %4323 = vmatprep.subr.mxu0 0.0
        %4324 = vmatpush1.msra.mxu0 0.0
        %4325 = vmatprep.subr.mxu0 0.0
        %4326 = vmatpush1.msra.mxu0 0.0
        %4327 = vmatprep.subr.mxu0 0.0
        %4328 = vmatpush1.msra.mxu0 0.0
        %4329 = vmatprep.mubr.f32.mxu0 0.0
        %v4330 = vand.u32 %v3835, 4294901760
        %4331 = vmatmul.mubr.f32.gmra.mrb[0].mxu0 %v4330
        %v4332 = vpop.f32.mrb[0].mxu0
        %v4333 = vadd.f32 %v4254, %v4332
        %v4334 = vpop.f32.mrb[0].mxu0
        %4335 = vmatprep.mubr.f32.mxu0 0.0
        %v4336 = vand.u32 %v3838, 4294901760
        %4337 = vmatmul.mubr.f32.gmra.mrb[0].mxu0 %v4336
        %v4338 = vpop.f32.mrb[0].mxu0
        %v4339 = vadd.f32 %v4260, %v4338
        %v4340 = vpop.f32.mrb[0].mxu0
        %4341 = vdwg.mxu0
        %v4342 = vmul.f32 %v283, %v285
        %v4343 = vmul.f32 %v284, %v286
        %4344 = vmatprep.subr.mxu0 0.0
        %v4345 = vand.u32 %v4342, 4294901760
        %4346 = vmatpush1.msra.mxu0 %v4345
        %4347 = vmatprep.subr.mxu0 0.0
        %v4348 = vand.u32 %v4343, 4294901760
        %4349 = vmatpush1.msra.mxu0 %v4348
        %4350 = vmatprep.subr.mxu0 0.0
        %4351 = vmatpush1.msra.mxu0 0.0
        %4352 = vmatprep.subr.mxu0 0.0
        %4353 = vmatpush1.msra.mxu0 0.0
        %4354 = vmatprep.subr.mxu0 0.0
        %4355 = vmatpush1.msra.mxu0 0.0
        %4356 = vmatprep.subr.mxu0 0.0
        %4357 = vmatpush1.msra.mxu0 0.0
        %4358 = vmatprep.subr.mxu0 0.0
        %4359 = vmatpush1.msra.mxu0 0.0
        %4360 = vmatprep.subr.mxu0 0.0
        %4361 = vmatpush1.msra.mxu0 0.0
        %4362 = vmatprep.subr.mxu0 0.0
        %4363 = vmatpush1.msra.mxu0 0.0
        %4364 = vmatprep.subr.mxu0 0.0
        %4365 = vmatpush1.msra.mxu0 0.0
        %4366 = vmatprep.subr.mxu0 0.0
        %4367 = vmatpush1.msra.mxu0 0.0
        %4368 = vmatprep.subr.mxu0 0.0
        %4369 = vmatpush1.msra.mxu0 0.0
        %4370 = vmatprep.subr.mxu0 0.0
        %4371 = vmatpush1.msra.mxu0 0.0
        %4372 = vmatprep.subr.mxu0 0.0
        %4373 = vmatpush1.msra.mxu0 0.0
        %4374 = vmatprep.subr.mxu0 0.0
        %4375 = vmatpush1.msra.mxu0 0.0
        %4376 = vmatprep.subr.mxu0 0.0
        %4377 = vmatpush1.msra.mxu0 0.0
        %4378 = vmatprep.subr.mxu0 0.0
        %4379 = vmatpush1.msra.mxu0 0.0
        %4380 = vmatprep.subr.mxu0 0.0
        %4381 = vmatpush1.msra.mxu0 0.0
        %4382 = vmatprep.subr.mxu0 0.0
        %4383 = vmatpush1.msra.mxu0 0.0
        %4384 = vmatprep.subr.mxu0 0.0
        %4385 = vmatpush1.msra.mxu0 0.0
        %4386 = vmatprep.subr.mxu0 0.0
        %4387 = vmatpush1.msra.mxu0 0.0
        %4388 = vmatprep.subr.mxu0 0.0
        %4389 = vmatpush1.msra.mxu0 0.0
        %4390 = vmatprep.subr.mxu0 0.0
        %4391 = vmatpush1.msra.mxu0 0.0
        %4392 = vmatprep.subr.mxu0 0.0
        %4393 = vmatpush1.msra.mxu0 0.0
        %4394 = vmatprep.subr.mxu0 0.0
        %4395 = vmatpush1.msra.mxu0 0.0
        %4396 = vmatprep.subr.mxu0 0.0
        %4397 = vmatpush1.msra.mxu0 0.0
        %4398 = vmatprep.subr.mxu0 0.0
        %4399 = vmatpush1.msra.mxu0 0.0
        %4400 = vmatprep.subr.mxu0 0.0
        %4401 = vmatpush1.msra.mxu0 0.0
        %4402 = vmatprep.subr.mxu0 0.0
        %4403 = vmatpush1.msra.mxu0 0.0
        %4404 = vmatprep.subr.mxu0 0.0
        %4405 = vmatpush1.msra.mxu0 0.0
        %4406 = vmatprep.subr.mxu0 0.0
        %4407 = vmatpush1.msra.mxu0 0.0
        %4408 = vmatprep.subr.mxu0 0.0
        %4409 = vmatpush1.msra.mxu0 0.0
        %4410 = vmatprep.mubr.f32.mxu0 0.0
        %v4411 = vand.u32 %v293, 4294901760
        %v4412 = vsub.f32 %v293, %v4411
        %v4413 = vand.u32 %v4412, 4294901760
        %v4414 = vsub.f32 %v4412, %v4413
        %v4415 = vand.u32 %v4414, 4294901760
        %4416 = vmatmul.mubr.f32.gmra.mrb[0].mxu0 %v4415
        %v4417 = vpop.f32.mrb[0].mxu0
        %v4418 = vadd.f32 0.0, %v4417
        %v4419 = vpop.f32.mrb[0].mxu0
        %4420 = vmatprep.mubr.f32.mxu0 0.0
        %v4421 = vand.u32 %v296, 4294901760
        %v4422 = vsub.f32 %v296, %v4421
        %v4423 = vand.u32 %v4422, 4294901760
        %v4424 = vsub.f32 %v4422, %v4423
        %v4425 = vand.u32 %v4424, 4294901760
        %4426 = vmatmul.mubr.f32.gmra.mrb[0].mxu0 %v4425
        %v4427 = vpop.f32.mrb[0].mxu0
        %v4428 = vadd.f32 0.0, %v4427
        %v4429 = vpop.f32.mrb[0].mxu0
        %4430 = vdwg.mxu0
        %4431 = vmatprep.subr.mxu0 0.0
        %v4432 = vand.u32 %v4342, 4294901760
        %v4433 = vsub.f32 %v4342, %v4432
        %v4434 = vand.u32 %v4433, 4294901760
        %v4435 = vsub.f32 %v4433, %v4434
        %v4436 = vand.u32 %v4435, 4294901760
        %4437 = vmatpush1.msra.mxu0 %v4436
        %4438 = vmatprep.subr.mxu0 0.0
        %v4439 = vand.u32 %v4343, 4294901760
        %v4440 = vsub.f32 %v4343, %v4439
        %v4441 = vand.u32 %v4440, 4294901760
        %v4442 = vsub.f32 %v4440, %v4441
        %v4443 = vand.u32 %v4442, 4294901760
        %4444 = vmatpush1.msra.mxu0 %v4443
        %4445 = vmatprep.subr.mxu0 0.0
        %4446 = vmatpush1.msra.mxu0 0.0
        %4447 = vmatprep.subr.mxu0 0.0
        %4448 = vmatpush1.msra.mxu0 0.0
        %4449 = vmatprep.subr.mxu0 0.0
        %4450 = vmatpush1.msra.mxu0 0.0
        %4451 = vmatprep.subr.mxu0 0.0
        %4452 = vmatpush1.msra.mxu0 0.0
        %4453 = vmatprep.subr.mxu0 0.0
        %4454 = vmatpush1.msra.mxu0 0.0
        %4455 = vmatprep.subr.mxu0 0.0
        %4456 = vmatpush1.msra.mxu0 0.0
        %4457 = vmatprep.subr.mxu0 0.0
        %4458 = vmatpush1.msra.mxu0 0.0
        %4459 = vmatprep.subr.mxu0 0.0
        %4460 = vmatpush1.msra.mxu0 0.0
        %4461 = vmatprep.subr.mxu0 0.0
        %4462 = vmatpush1.msra.mxu0 0.0
        %4463 = vmatprep.subr.mxu0 0.0
        %4464 = vmatpush1.msra.mxu0 0.0
        %4465 = vmatprep.subr.mxu0 0.0
        %4466 = vmatpush1.msra.mxu0 0.0
        %4467 = vmatprep.subr.mxu0 0.0
        %4468 = vmatpush1.msra.mxu0 0.0
        %4469 = vmatprep.subr.mxu0 0.0
        %4470 = vmatpush1.msra.mxu0 0.0
        %4471 = vmatprep.subr.mxu0 0.0
        %4472 = vmatpush1.msra.mxu0 0.0
        %4473 = vmatprep.subr.mxu0 0.0
        %4474 = vmatpush1.msra.mxu0 0.0
        %4475 = vmatprep.subr.mxu0 0.0
        %4476 = vmatpush1.msra.mxu0 0.0
        %4477 = vmatprep.subr.mxu0 0.0
        %4478 = vmatpush1.msra.mxu0 0.0
        %4479 = vmatprep.subr.mxu0 0.0
        %4480 = vmatpush1.msra.mxu0 0.0
        %4481 = vmatprep.subr.mxu0 0.0
        %4482 = vmatpush1.msra.mxu0 0.0
        %4483 = vmatprep.subr.mxu0 0.0
        %4484 = vmatpush1.msra.mxu0 0.0
        %4485 = vmatprep.subr.mxu0 0.0
        %4486 = vmatpush1.msra.mxu0 0.0
        %4487 = vmatprep.subr.mxu0 0.0
        %4488 = vmatpush1.msra.mxu0 0.0
        %4489 = vmatprep.subr.mxu0 0.0
        %4490 = vmatpush1.msra.mxu0 0.0
        %4491 = vmatprep.subr.mxu0 0.0
        %4492 = vmatpush1.msra.mxu0 0.0
        %4493 = vmatprep.subr.mxu0 0.0
        %4494 = vmatpush1.msra.mxu0 0.0
        %4495 = vmatprep.subr.mxu0 0.0
        %4496 = vmatpush1.msra.mxu0 0.0
        %4497 = vmatprep.subr.mxu0 0.0
        %4498 = vmatpush1.msra.mxu0 0.0
        %4499 = vmatprep.subr.mxu0 0.0
        %4500 = vmatpush1.msra.mxu0 0.0
        %4501 = vmatprep.subr.mxu0 0.0
        %4502 = vmatpush1.msra.mxu0 0.0
        %4503 = vmatprep.subr.mxu0 0.0
        %4504 = vmatpush1.msra.mxu0 0.0
        %4505 = vmatprep.mubr.f32.mxu0 0.0
        %v4506 = vand.u32 %v293, 4294901760
        %4507 = vmatmul.mubr.f32.gmra.mrb[0].mxu0 %v4506
        %v4508 = vpop.f32.mrb[0].mxu0
        %v4509 = vadd.f32 %v4418, %v4508
        %v4510 = vpop.f32.mrb[0].mxu0
        %4511 = vmatprep.mubr.f32.mxu0 0.0
        %v4512 = vand.u32 %v296, 4294901760
        %4513 = vmatmul.mubr.f32.gmra.mrb[0].mxu0 %v4512
        %v4514 = vpop.f32.mrb[0].mxu0
        %v4515 = vadd.f32 %v4428, %v4514
        %v4516 = vpop.f32.mrb[0].mxu0
        %4517 = vdwg.mxu0
        %4518 = vmatprep.subr.mxu0 0.0
        %v4519 = vand.u32 %v4342, 4294901760
        %v4520 = vsub.f32 %v4342, %v4519
        %4521 = vmatpush1.msra.mxu0 %v4520
        %4522 = vmatprep.subr.mxu0 0.0
        %v4523 = vand.u32 %v4343, 4294901760
        %v4524 = vsub.f32 %v4343, %v4523
        %4525 = vmatpush1.msra.mxu0 %v4524
        %4526 = vmatprep.subr.mxu0 0.0
        %4527 = vmatpush1.msra.mxu0 0.0
        %4528 = vmatprep.subr.mxu0 0.0
        %4529 = vmatpush1.msra.mxu0 0.0
        %4530 = vmatprep.subr.mxu0 0.0
        %4531 = vmatpush1.msra.mxu0 0.0
        %4532 = vmatprep.subr.mxu0 0.0
        %4533 = vmatpush1.msra.mxu0 0.0
        %4534 = vmatprep.subr.mxu0 0.0
        %4535 = vmatpush1.msra.mxu0 0.0
        %4536 = vmatprep.subr.mxu0 0.0
        %4537 = vmatpush1.msra.mxu0 0.0
        %4538 = vmatprep.subr.mxu0 0.0
        %4539 = vmatpush1.msra.mxu0 0.0
        %4540 = vmatprep.subr.mxu0 0.0
        %4541 = vmatpush1.msra.mxu0 0.0
        %4542 = vmatprep.subr.mxu0 0.0
        %4543 = vmatpush1.msra.mxu0 0.0
        %4544 = vmatprep.subr.mxu0 0.0
        %4545 = vmatpush1.msra.mxu0 0.0
        %4546 = vmatprep.subr.mxu0 0.0
        %4547 = vmatpush1.msra.mxu0 0.0
        %4548 = vmatprep.subr.mxu0 0.0
        %4549 = vmatpush1.msra.mxu0 0.0
        %4550 = vmatprep.subr.mxu0 0.0
        %4551 = vmatpush1.msra.mxu0 0.0
        %4552 = vmatprep.subr.mxu0 0.0
        %4553 = vmatpush1.msra.mxu0 0.0
        %4554 = vmatprep.subr.mxu0 0.0
        %4555 = vmatpush1.msra.mxu0 0.0
        %4556 = vmatprep.subr.mxu0 0.0
        %4557 = vmatpush1.msra.mxu0 0.0
        %4558 = vmatprep.subr.mxu0 0.0
        %4559 = vmatpush1.msra.mxu0 0.0
        %4560 = vmatprep.subr.mxu0 0.0
        %4561 = vmatpush1.msra.mxu0 0.0
        %4562 = vmatprep.subr.mxu0 0.0
        %4563 = vmatpush1.msra.mxu0 0.0
        %4564 = vmatprep.subr.mxu0 0.0
        %4565 = vmatpush1.msra.mxu0 0.0
        %4566 = vmatprep.subr.mxu0 0.0
        %4567 = vmatpush1.msra.mxu0 0.0
        %4568 = vmatprep.subr.mxu0 0.0
        %4569 = vmatpush1.msra.mxu0 0.0
        %4570 = vmatprep.subr.mxu0 0.0
        %4571 = vmatpush1.msra.mxu0 0.0
        %4572 = vmatprep.subr.mxu0 0.0
        %4573 = vmatpush1.msra.mxu0 0.0
        %4574 = vmatprep.subr.mxu0 0.0
        %4575 = vmatpush1.msra.mxu0 0.0
        %4576 = vmatprep.subr.mxu0 0.0
        %4577 = vmatpush1.msra.mxu0 0.0
        %4578 = vmatprep.subr.mxu0 0.0
        %4579 = vmatpush1.msra.mxu0 0.0
        %4580 = vmatprep.subr.mxu0 0.0
        %4581 = vmatpush1.msra.mxu0 0.0
        %4582 = vmatprep.subr.mxu0 0.0
        %4583 = vmatpush1.msra.mxu0 0.0
        %4584 = vmatprep.subr.mxu0 0.0
        %4585 = vmatpush1.msra.mxu0 0.0
        %4586 = vmatprep.mubr.f32.mxu0 0.0
        %v4587 = vand.u32 %v293, 4294901760
        %v4588 = vsub.f32 %v293, %v4587
        %4589 = vmatmul.mubr.f32.gmra.mrb[0].mxu0 %v4588
        %v4590 = vpop.f32.mrb[0].mxu0
        %v4591 = vadd.f32 %v4509, %v4590
        %v4592 = vpop.f32.mrb[0].mxu0
        %4593 = vmatprep.mubr.f32.mxu0 0.0
        %v4594 = vand.u32 %v296, 4294901760
        %v4595 = vsub.f32 %v296, %v4594
        %4596 = vmatmul.mubr.f32.gmra.mrb[0].mxu0 %v4595
        %v4597 = vpop.f32.mrb[0].mxu0
        %v4598 = vadd.f32 %v4515, %v4597
        %v4599 = vpop.f32.mrb[0].mxu0
        %4600 = vdwg.mxu0
        %4601 = vmatprep.subr.mxu0 0.0
        %v4602 = vand.u32 %v4342, 4294901760
        %4603 = vmatpush1.msra.mxu0 %v4602
        %4604 = vmatprep.subr.mxu0 0.0
        %v4605 = vand.u32 %v4343, 4294901760
        %4606 = vmatpush1.msra.mxu0 %v4605
        %4607 = vmatprep.subr.mxu0 0.0
        %4608 = vmatpush1.msra.mxu0 0.0
        %4609 = vmatprep.subr.mxu0 0.0
        %4610 = vmatpush1.msra.mxu0 0.0
        %4611 = vmatprep.subr.mxu0 0.0
        %4612 = vmatpush1.msra.mxu0 0.0
        %4613 = vmatprep.subr.mxu0 0.0
        %4614 = vmatpush1.msra.mxu0 0.0
        %4615 = vmatprep.subr.mxu0 0.0
        %4616 = vmatpush1.msra.mxu0 0.0
        %4617 = vmatprep.subr.mxu0 0.0
        %4618 = vmatpush1.msra.mxu0 0.0
        %4619 = vmatprep.subr.mxu0 0.0
        %4620 = vmatpush1.msra.mxu0 0.0
        %4621 = vmatprep.subr.mxu0 0.0
        %4622 = vmatpush1.msra.mxu0 0.0
        %4623 = vmatprep.subr.mxu0 0.0
        %4624 = vmatpush1.msra.mxu0 0.0
        %4625 = vmatprep.subr.mxu0 0.0
        %4626 = vmatpush1.msra.mxu0 0.0
        %4627 = vmatprep.subr.mxu0 0.0
        %4628 = vmatpush1.msra.mxu0 0.0
        %4629 = vmatprep.subr.mxu0 0.0
        %4630 = vmatpush1.msra.mxu0 0.0
        %4631 = vmatprep.subr.mxu0 0.0
        %4632 = vmatpush1.msra.mxu0 0.0
        %4633 = vmatprep.subr.mxu0 0.0
        %4634 = vmatpush1.msra.mxu0 0.0
        %4635 = vmatprep.subr.mxu0 0.0
        %4636 = vmatpush1.msra.mxu0 0.0
        %4637 = vmatprep.subr.mxu0 0.0
        %4638 = vmatpush1.msra.mxu0 0.0
        %4639 = vmatprep.subr.mxu0 0.0
        %4640 = vmatpush1.msra.mxu0 0.0
        %4641 = vmatprep.subr.mxu0 0.0
        %4642 = vmatpush1.msra.mxu0 0.0
        %4643 = vmatprep.subr.mxu0 0.0
        %4644 = vmatpush1.msra.mxu0 0.0
        %4645 = vmatprep.subr.mxu0 0.0
        %4646 = vmatpush1.msra.mxu0 0.0
        %4647 = vmatprep.subr.mxu0 0.0
        %4648 = vmatpush1.msra.mxu0 0.0
        %4649 = vmatprep.subr.mxu0 0.0
        %4650 = vmatpush1.msra.mxu0 0.0
        %4651 = vmatprep.subr.mxu0 0.0
        %4652 = vmatpush1.msra.mxu0 0.0
        %4653 = vmatprep.subr.mxu0 0.0
        %4654 = vmatpush1.msra.mxu0 0.0
        %4655 = vmatprep.subr.mxu0 0.0
        %4656 = vmatpush1.msra.mxu0 0.0
        %4657 = vmatprep.subr.mxu0 0.0
        %4658 = vmatpush1.msra.mxu0 0.0
        %4659 = vmatprep.subr.mxu0 0.0
        %4660 = vmatpush1.msra.mxu0 0.0
        %4661 = vmatprep.subr.mxu0 0.0
        %4662 = vmatpush1.msra.mxu0 0.0
        %4663 = vmatprep.subr.mxu0 0.0
        %4664 = vmatpush1.msra.mxu0 0.0
        %4665 = vmatprep.subr.mxu0 0.0
        %4666 = vmatpush1.msra.mxu0 0.0
        %4667 = vmatprep.mubr.f32.mxu0 0.0
        %v4668 = vand.u32 %v293, 4294901760
        %v4669 = vsub.f32 %v293, %v4668
        %v4670 = vand.u32 %v4669, 4294901760
        %4671 = vmatmul.mubr.f32.gmra.mrb[0].mxu0 %v4670
        %v4672 = vpop.f32.mrb[0].mxu0
        %v4673 = vadd.f32 %v4591, %v4672
        %v4674 = vpop.f32.mrb[0].mxu0
        %4675 = vmatprep.mubr.f32.mxu0 0.0
        %v4676 = vand.u32 %v296, 4294901760
        %v4677 = vsub.f32 %v296, %v4676
        %v4678 = vand.u32 %v4677, 4294901760
        %4679 = vmatmul.mubr.f32.gmra.mrb[0].mxu0 %v4678
        %v4680 = vpop.f32.mrb[0].mxu0
        %v4681 = vadd.f32 %v4598, %v4680
        %v4682 = vpop.f32.mrb[0].mxu0
        %4683 = vdwg.mxu0
        %4684 = vmatprep.subr.mxu0 0.0
        %v4685 = vand.u32 %v4342, 4294901760
        %v4686 = vsub.f32 %v4342, %v4685
        %v4687 = vand.u32 %v4686, 4294901760
        %4688 = vmatpush1.msra.mxu0 %v4687
        %4689 = vmatprep.subr.mxu0 0.0
        %v4690 = vand.u32 %v4343, 4294901760
        %v4691 = vsub.f32 %v4343, %v4690
        %v4692 = vand.u32 %v4691, 4294901760
        %4693 = vmatpush1.msra.mxu0 %v4692
        %4694 = vmatprep.subr.mxu0 0.0
        %4695 = vmatpush1.msra.mxu0 0.0
        %4696 = vmatprep.subr.mxu0 0.0
        %4697 = vmatpush1.msra.mxu0 0.0
        %4698 = vmatprep.subr.mxu0 0.0
        %4699 = vmatpush1.msra.mxu0 0.0
        %4700 = vmatprep.subr.mxu0 0.0
        %4701 = vmatpush1.msra.mxu0 0.0
        %4702 = vmatprep.subr.mxu0 0.0
        %4703 = vmatpush1.msra.mxu0 0.0
        %4704 = vmatprep.subr.mxu0 0.0
        %4705 = vmatpush1.msra.mxu0 0.0
        %4706 = vmatprep.subr.mxu0 0.0
        %4707 = vmatpush1.msra.mxu0 0.0
        %4708 = vmatprep.subr.mxu0 0.0
        %4709 = vmatpush1.msra.mxu0 0.0
        %4710 = vmatprep.subr.mxu0 0.0
        %4711 = vmatpush1.msra.mxu0 0.0
        %4712 = vmatprep.subr.mxu0 0.0
        %4713 = vmatpush1.msra.mxu0 0.0
        %4714 = vmatprep.subr.mxu0 0.0
        %4715 = vmatpush1.msra.mxu0 0.0
        %4716 = vmatprep.subr.mxu0 0.0
        %4717 = vmatpush1.msra.mxu0 0.0
        %4718 = vmatprep.subr.mxu0 0.0
        %4719 = vmatpush1.msra.mxu0 0.0
        %4720 = vmatprep.subr.mxu0 0.0
        %4721 = vmatpush1.msra.mxu0 0.0
        %4722 = vmatprep.subr.mxu0 0.0
        %4723 = vmatpush1.msra.mxu0 0.0
        %4724 = vmatprep.subr.mxu0 0.0
        %4725 = vmatpush1.msra.mxu0 0.0
        %4726 = vmatprep.subr.mxu0 0.0
        %4727 = vmatpush1.msra.mxu0 0.0
        %4728 = vmatprep.subr.mxu0 0.0
        %4729 = vmatpush1.msra.mxu0 0.0
        %4730 = vmatprep.subr.mxu0 0.0
        %4731 = vmatpush1.msra.mxu0 0.0
        %4732 = vmatprep.subr.mxu0 0.0
        %4733 = vmatpush1.msra.mxu0 0.0
        %4734 = vmatprep.subr.mxu0 0.0
        %4735 = vmatpush1.msra.mxu0 0.0
        %4736 = vmatprep.subr.mxu0 0.0
        %4737 = vmatpush1.msra.mxu0 0.0
        %4738 = vmatprep.subr.mxu0 0.0
        %4739 = vmatpush1.msra.mxu0 0.0
        %4740 = vmatprep.subr.mxu0 0.0
        %4741 = vmatpush1.msra.mxu0 0.0
        %4742 = vmatprep.subr.mxu0 0.0
        %4743 = vmatpush1.msra.mxu0 0.0
        %4744 = vmatprep.subr.mxu0 0.0
        %4745 = vmatpush1.msra.mxu0 0.0
        %4746 = vmatprep.subr.mxu0 0.0
        %4747 = vmatpush1.msra.mxu0 0.0
        %4748 = vmatprep.subr.mxu0 0.0
        %4749 = vmatpush1.msra.mxu0 0.0
        %4750 = vmatprep.subr.mxu0 0.0
        %4751 = vmatpush1.msra.mxu0 0.0
        %4752 = vmatprep.subr.mxu0 0.0
        %4753 = vmatpush1.msra.mxu0 0.0
        %4754 = vmatprep.mubr.f32.mxu0 0.0
        %v4755 = vand.u32 %v293, 4294901760
        %4756 = vmatmul.mubr.f32.gmra.mrb[0].mxu0 %v4755
        %v4757 = vpop.f32.mrb[0].mxu0
        %v4758 = vadd.f32 %v4673, %v4757
        %v4759 = vpop.f32.mrb[0].mxu0
        %4760 = vmatprep.mubr.f32.mxu0 0.0
        %v4761 = vand.u32 %v296, 4294901760
        %4762 = vmatmul.mubr.f32.gmra.mrb[0].mxu0 %v4761
        %v4763 = vpop.f32.mrb[0].mxu0
        %v4764 = vadd.f32 %v4681, %v4763
        %v4765 = vpop.f32.mrb[0].mxu0
        %4766 = vdwg.mxu0
        %4767 = vmatprep.subr.mxu0 0.0
        %v4768 = vand.u32 %v4342, 4294901760
        %4769 = vmatpush1.msra.mxu0 %v4768
        %4770 = vmatprep.subr.mxu0 0.0
        %v4771 = vand.u32 %v4343, 4294901760
        %4772 = vmatpush1.msra.mxu0 %v4771
        %4773 = vmatprep.subr.mxu0 0.0
        %4774 = vmatpush1.msra.mxu0 0.0
        %4775 = vmatprep.subr.mxu0 0.0
        %4776 = vmatpush1.msra.mxu0 0.0
        %4777 = vmatprep.subr.mxu0 0.0
        %4778 = vmatpush1.msra.mxu0 0.0
        %4779 = vmatprep.subr.mxu0 0.0
        %4780 = vmatpush1.msra.mxu0 0.0
        %4781 = vmatprep.subr.mxu0 0.0
        %4782 = vmatpush1.msra.mxu0 0.0
        %4783 = vmatprep.subr.mxu0 0.0
        %4784 = vmatpush1.msra.mxu0 0.0
        %4785 = vmatprep.subr.mxu0 0.0
        %4786 = vmatpush1.msra.mxu0 0.0
        %4787 = vmatprep.subr.mxu0 0.0
        %4788 = vmatpush1.msra.mxu0 0.0
        %4789 = vmatprep.subr.mxu0 0.0
        %4790 = vmatpush1.msra.mxu0 0.0
        %4791 = vmatprep.subr.mxu0 0.0
        %4792 = vmatpush1.msra.mxu0 0.0
        %4793 = vmatprep.subr.mxu0 0.0
        %4794 = vmatpush1.msra.mxu0 0.0
        %4795 = vmatprep.subr.mxu0 0.0
        %4796 = vmatpush1.msra.mxu0 0.0
        %4797 = vmatprep.subr.mxu0 0.0
        %4798 = vmatpush1.msra.mxu0 0.0
        %4799 = vmatprep.subr.mxu0 0.0
        %4800 = vmatpush1.msra.mxu0 0.0
        %4801 = vmatprep.subr.mxu0 0.0
        %4802 = vmatpush1.msra.mxu0 0.0
        %4803 = vmatprep.subr.mxu0 0.0
        %4804 = vmatpush1.msra.mxu0 0.0
        %4805 = vmatprep.subr.mxu0 0.0
        %4806 = vmatpush1.msra.mxu0 0.0
        %4807 = vmatprep.subr.mxu0 0.0
        %4808 = vmatpush1.msra.mxu0 0.0
        %4809 = vmatprep.subr.mxu0 0.0
        %4810 = vmatpush1.msra.mxu0 0.0
        %4811 = vmatprep.subr.mxu0 0.0
        %4812 = vmatpush1.msra.mxu0 0.0
        %4813 = vmatprep.subr.mxu0 0.0
        %4814 = vmatpush1.msra.mxu0 0.0
        %4815 = vmatprep.subr.mxu0 0.0
        %4816 = vmatpush1.msra.mxu0 0.0
        %4817 = vmatprep.subr.mxu0 0.0
        %4818 = vmatpush1.msra.mxu0 0.0
        %4819 = vmatprep.subr.mxu0 0.0
        %4820 = vmatpush1.msra.mxu0 0.0
        %4821 = vmatprep.subr.mxu0 0.0
        %4822 = vmatpush1.msra.mxu0 0.0
        %4823 = vmatprep.subr.mxu0 0.0
        %4824 = vmatpush1.msra.mxu0 0.0
        %4825 = vmatprep.subr.mxu0 0.0
        %4826 = vmatpush1.msra.mxu0 0.0
        %4827 = vmatprep.subr.mxu0 0.0
        %4828 = vmatpush1.msra.mxu0 0.0
        %4829 = vmatprep.subr.mxu0 0.0
        %4830 = vmatpush1.msra.mxu0 0.0
        %4831 = vmatprep.subr.mxu0 0.0
        %4832 = vmatpush1.msra.mxu0 0.0
        %4833 = vmatprep.mubr.f32.mxu0 0.0
        %v4834 = vand.u32 %v293, 4294901760
        %4835 = vmatmul.mubr.f32.gmra.mrb[0].mxu0 %v4834
        %v4836 = vpop.f32.mrb[0].mxu0
        %v4837 = vadd.f32 %v4758, %v4836
        %v4838 = vpop.f32.mrb[0].mxu0
        %4839 = vmatprep.mubr.f32.mxu0 0.0
        %v4840 = vand.u32 %v296, 4294901760
        %4841 = vmatmul.mubr.f32.gmra.mrb[0].mxu0 %v4840
        %v4842 = vpop.f32.mrb[0].mxu0
        %v4843 = vadd.f32 %v4764, %v4842
        %v4844 = vpop.f32.mrb[0].mxu0
        %4845 = vdwg.mxu0
        %v4847 = vsel %vm291, %v4837, 0
        %v4850 = vsel %vm291, %v4843, 0
        %4852 = vmatprep.subr.mxu0 0.0
        %v4853 = vand.u32 %v289, 4294901760
        %4854 = vmatpush1.msra.mxu0 %v4853
        %4855 = vmatprep.subr.mxu0 0.0
        %v4856 = vand.u32 %v290, 4294901760
        %4857 = vmatpush1.msra.mxu0 %v4856
        %4858 = vmatprep.subr.mxu0 0.0
        %4859 = vmatpush1.msra.mxu0 0.0
        %4860 = vmatprep.subr.mxu0 0.0
        %4861 = vmatpush1.msra.mxu0 0.0
        %4862 = vmatprep.subr.mxu0 0.0
        %4863 = vmatpush1.msra.mxu0 0.0
        %4864 = vmatprep.subr.mxu0 0.0
        %4865 = vmatpush1.msra.mxu0 0.0
        %4866 = vmatprep.subr.mxu0 0.0
        %4867 = vmatpush1.msra.mxu0 0.0
        %4868 = vmatprep.subr.mxu0 0.0
        %4869 = vmatpush1.msra.mxu0 0.0
        %4870 = vmatprep.subr.mxu0 0.0
        %4871 = vmatpush1.msra.mxu0 0.0
        %4872 = vmatprep.subr.mxu0 0.0
        %4873 = vmatpush1.msra.mxu0 0.0
        %4874 = vmatprep.subr.mxu0 0.0
        %4875 = vmatpush1.msra.mxu0 0.0
        %4876 = vmatprep.subr.mxu0 0.0
        %4877 = vmatpush1.msra.mxu0 0.0
        %4878 = vmatprep.subr.mxu0 0.0
        %4879 = vmatpush1.msra.mxu0 0.0
        %4880 = vmatprep.subr.mxu0 0.0
        %4881 = vmatpush1.msra.mxu0 0.0
        %4882 = vmatprep.subr.mxu0 0.0
        %4883 = vmatpush1.msra.mxu0 0.0
        %4884 = vmatprep.subr.mxu0 0.0
        %4885 = vmatpush1.msra.mxu0 0.0
        %4886 = vmatprep.subr.mxu0 0.0
        %4887 = vmatpush1.msra.mxu0 0.0
        %4888 = vmatprep.subr.mxu0 0.0
        %4889 = vmatpush1.msra.mxu0 0.0
        %4890 = vmatprep.subr.mxu0 0.0
        %4891 = vmatpush1.msra.mxu0 0.0
        %4892 = vmatprep.subr.mxu0 0.0
        %4893 = vmatpush1.msra.mxu0 0.0
        %4894 = vmatprep.subr.mxu0 0.0
        %4895 = vmatpush1.msra.mxu0 0.0
        %4896 = vmatprep.subr.mxu0 0.0
        %4897 = vmatpush1.msra.mxu0 0.0
        %4898 = vmatprep.subr.mxu0 0.0
        %4899 = vmatpush1.msra.mxu0 0.0
        %4900 = vmatprep.subr.mxu0 0.0
        %4901 = vmatpush1.msra.mxu0 0.0
        %4902 = vmatprep.subr.mxu0 0.0
        %4903 = vmatpush1.msra.mxu0 0.0
        %4904 = vmatprep.subr.mxu0 0.0
        %4905 = vmatpush1.msra.mxu0 0.0
        %4906 = vmatprep.subr.mxu0 0.0
        %4907 = vmatpush1.msra.mxu0 0.0
        %4908 = vmatprep.subr.mxu0 0.0
        %4909 = vmatpush1.msra.mxu0 0.0
        %4910 = vmatprep.subr.mxu0 0.0
        %4911 = vmatpush1.msra.mxu0 0.0
        %4912 = vmatprep.subr.mxu0 0.0
        %4913 = vmatpush1.msra.mxu0 0.0
        %4914 = vmatprep.subr.mxu0 0.0
        %4915 = vmatpush1.msra.mxu0 0.0
        %4916 = vmatprep.subr.mxu0 0.0
        %4917 = vmatpush1.msra.mxu0 0.0
        %4918 = vmatprep.mubr.f32.mxu0 0.0
        %v4919 = vand.u32 %v4847, 4294901760
        %v4920 = vsub.f32 %v4847, %v4919
        %v4921 = vand.u32 %v4920, 4294901760
        %v4922 = vsub.f32 %v4920, %v4921
        %v4923 = vand.u32 %v4922, 4294901760
        %4924 = vmatmul.mubr.f32.gmra.mrb[0].mxu0 %v4923
        %v4925 = vpop.f32.mrb[0].mxu0
        %v4926 = vadd.f32 0.0, %v4925
        %v4927 = vpop.f32.mrb[0].mxu0
        %4928 = vmatprep.mubr.f32.mxu0 0.0
        %v4929 = vand.u32 %v4850, 4294901760
        %v4930 = vsub.f32 %v4850, %v4929
        %v4931 = vand.u32 %v4930, 4294901760
        %v4932 = vsub.f32 %v4930, %v4931
        %v4933 = vand.u32 %v4932, 4294901760
        %4934 = vmatmul.mubr.f32.gmra.mrb[0].mxu0 %v4933
        %v4935 = vpop.f32.mrb[0].mxu0
        %v4936 = vadd.f32 0.0, %v4935
        %v4937 = vpop.f32.mrb[0].mxu0
        %4938 = vdwg.mxu0
        %4939 = vmatprep.subr.mxu0 0.0
        %v4940 = vand.u32 %v289, 4294901760
        %v4941 = vsub.f32 %v289, %v4940
        %v4942 = vand.u32 %v4941, 4294901760
        %v4943 = vsub.f32 %v4941, %v4942
        %v4944 = vand.u32 %v4943, 4294901760
        %4945 = vmatpush1.msra.mxu0 %v4944
        %4946 = vmatprep.subr.mxu0 0.0
        %v4947 = vand.u32 %v290, 4294901760
        %v4948 = vsub.f32 %v290, %v4947
        %v4949 = vand.u32 %v4948, 4294901760
        %v4950 = vsub.f32 %v4948, %v4949
        %v4951 = vand.u32 %v4950, 4294901760
        %4952 = vmatpush1.msra.mxu0 %v4951
        %4953 = vmatprep.subr.mxu0 0.0
        %4954 = vmatpush1.msra.mxu0 0.0
        %4955 = vmatprep.subr.mxu0 0.0
        %4956 = vmatpush1.msra.mxu0 0.0
        %4957 = vmatprep.subr.mxu0 0.0
        %4958 = vmatpush1.msra.mxu0 0.0
        %4959 = vmatprep.subr.mxu0 0.0
        %4960 = vmatpush1.msra.mxu0 0.0
        %4961 = vmatprep.subr.mxu0 0.0
        %4962 = vmatpush1.msra.mxu0 0.0
        %4963 = vmatprep.subr.mxu0 0.0
        %4964 = vmatpush1.msra.mxu0 0.0
        %4965 = vmatprep.subr.mxu0 0.0
        %4966 = vmatpush1.msra.mxu0 0.0
        %4967 = vmatprep.subr.mxu0 0.0
        %4968 = vmatpush1.msra.mxu0 0.0
        %4969 = vmatprep.subr.mxu0 0.0
        %4970 = vmatpush1.msra.mxu0 0.0
        %4971 = vmatprep.subr.mxu0 0.0
        %4972 = vmatpush1.msra.mxu0 0.0
        %4973 = vmatprep.subr.mxu0 0.0
        %4974 = vmatpush1.msra.mxu0 0.0
        %4975 = vmatprep.subr.mxu0 0.0
        %4976 = vmatpush1.msra.mxu0 0.0
        %4977 = vmatprep.subr.mxu0 0.0
        %4978 = vmatpush1.msra.mxu0 0.0
        %4979 = vmatprep.subr.mxu0 0.0
        %4980 = vmatpush1.msra.mxu0 0.0
        %4981 = vmatprep.subr.mxu0 0.0
        %4982 = vmatpush1.msra.mxu0 0.0
        %4983 = vmatprep.subr.mxu0 0.0
        %4984 = vmatpush1.msra.mxu0 0.0
        %4985 = vmatprep.subr.mxu0 0.0
        %4986 = vmatpush1.msra.mxu0 0.0
        %4987 = vmatprep.subr.mxu0 0.0
        %4988 = vmatpush1.msra.mxu0 0.0
        %4989 = vmatprep.subr.mxu0 0.0
        %4990 = vmatpush1.msra.mxu0 0.0
        %4991 = vmatprep.subr.mxu0 0.0
        %4992 = vmatpush1.msra.mxu0 0.0
        %4993 = vmatprep.subr.mxu0 0.0
        %4994 = vmatpush1.msra.mxu0 0.0
        %4995 = vmatprep.subr.mxu0 0.0
        %4996 = vmatpush1.msra.mxu0 0.0
        %4997 = vmatprep.subr.mxu0 0.0
        %4998 = vmatpush1.msra.mxu0 0.0
        %4999 = vmatprep.subr.mxu0 0.0
        %5000 = vmatpush1.msra.mxu0 0.0
        %5001 = vmatprep.subr.mxu0 0.0
        %5002 = vmatpush1.msra.mxu0 0.0
        %5003 = vmatprep.subr.mxu0 0.0
        %5004 = vmatpush1.msra.mxu0 0.0
        %5005 = vmatprep.subr.mxu0 0.0
        %5006 = vmatpush1.msra.mxu0 0.0
        %5007 = vmatprep.subr.mxu0 0.0
        %5008 = vmatpush1.msra.mxu0 0.0
        %5009 = vmatprep.subr.mxu0 0.0
        %5010 = vmatpush1.msra.mxu0 0.0
        %5011 = vmatprep.subr.mxu0 0.0
        %5012 = vmatpush1.msra.mxu0 0.0
        %5013 = vmatprep.mubr.f32.mxu0 0.0
        %v5014 = vand.u32 %v4847, 4294901760
        %5015 = vmatmul.mubr.f32.gmra.mrb[0].mxu0 %v5014
        %v5016 = vpop.f32.mrb[0].mxu0
        %v5017 = vadd.f32 %v4926, %v5016
        %v5018 = vpop.f32.mrb[0].mxu0
        %5019 = vmatprep.mubr.f32.mxu0 0.0
        %v5020 = vand.u32 %v4850, 4294901760
        %5021 = vmatmul.mubr.f32.gmra.mrb[0].mxu0 %v5020
        %v5022 = vpop.f32.mrb[0].mxu0
        %v5023 = vadd.f32 %v4936, %v5022
        %v5024 = vpop.f32.mrb[0].mxu0
        %5025 = vdwg.mxu0
        %5026 = vmatprep.subr.mxu0 0.0
        %v5027 = vand.u32 %v289, 4294901760
        %v5028 = vsub.f32 %v289, %v5027
        %5029 = vmatpush1.msra.mxu0 %v5028
        %5030 = vmatprep.subr.mxu0 0.0
        %v5031 = vand.u32 %v290, 4294901760
        %v5032 = vsub.f32 %v290, %v5031
        %5033 = vmatpush1.msra.mxu0 %v5032
        %5034 = vmatprep.subr.mxu0 0.0
        %5035 = vmatpush1.msra.mxu0 0.0
        %5036 = vmatprep.subr.mxu0 0.0
        %5037 = vmatpush1.msra.mxu0 0.0
        %5038 = vmatprep.subr.mxu0 0.0
        %5039 = vmatpush1.msra.mxu0 0.0
        %5040 = vmatprep.subr.mxu0 0.0
        %5041 = vmatpush1.msra.mxu0 0.0
        %5042 = vmatprep.subr.mxu0 0.0
        %5043 = vmatpush1.msra.mxu0 0.0
        %5044 = vmatprep.subr.mxu0 0.0
        %5045 = vmatpush1.msra.mxu0 0.0
        %5046 = vmatprep.subr.mxu0 0.0
        %5047 = vmatpush1.msra.mxu0 0.0
        %5048 = vmatprep.subr.mxu0 0.0
        %5049 = vmatpush1.msra.mxu0 0.0
        %5050 = vmatprep.subr.mxu0 0.0
        %5051 = vmatpush1.msra.mxu0 0.0
        %5052 = vmatprep.subr.mxu0 0.0
        %5053 = vmatpush1.msra.mxu0 0.0
        %5054 = vmatprep.subr.mxu0 0.0
        %5055 = vmatpush1.msra.mxu0 0.0
        %5056 = vmatprep.subr.mxu0 0.0
        %5057 = vmatpush1.msra.mxu0 0.0
        %5058 = vmatprep.subr.mxu0 0.0
        %5059 = vmatpush1.msra.mxu0 0.0
        %5060 = vmatprep.subr.mxu0 0.0
        %5061 = vmatpush1.msra.mxu0 0.0
        %5062 = vmatprep.subr.mxu0 0.0
        %5063 = vmatpush1.msra.mxu0 0.0
        %5064 = vmatprep.subr.mxu0 0.0
        %5065 = vmatpush1.msra.mxu0 0.0
        %5066 = vmatprep.subr.mxu0 0.0
        %5067 = vmatpush1.msra.mxu0 0.0
        %5068 = vmatprep.subr.mxu0 0.0
        %5069 = vmatpush1.msra.mxu0 0.0
        %5070 = vmatprep.subr.mxu0 0.0
        %5071 = vmatpush1.msra.mxu0 0.0
        %5072 = vmatprep.subr.mxu0 0.0
        %5073 = vmatpush1.msra.mxu0 0.0
        %5074 = vmatprep.subr.mxu0 0.0
        %5075 = vmatpush1.msra.mxu0 0.0
        %5076 = vmatprep.subr.mxu0 0.0
        %5077 = vmatpush1.msra.mxu0 0.0
        %5078 = vmatprep.subr.mxu0 0.0
        %5079 = vmatpush1.msra.mxu0 0.0
        %5080 = vmatprep.subr.mxu0 0.0
        %5081 = vmatpush1.msra.mxu0 0.0
        %5082 = vmatprep.subr.mxu0 0.0
        %5083 = vmatpush1.msra.mxu0 0.0
        %5084 = vmatprep.subr.mxu0 0.0
        %5085 = vmatpush1.msra.mxu0 0.0
        %5086 = vmatprep.subr.mxu0 0.0
        %5087 = vmatpush1.msra.mxu0 0.0
        %5088 = vmatprep.subr.mxu0 0.0
        %5089 = vmatpush1.msra.mxu0 0.0
        %5090 = vmatprep.subr.mxu0 0.0
        %5091 = vmatpush1.msra.mxu0 0.0
        %5092 = vmatprep.subr.mxu0 0.0
        %5093 = vmatpush1.msra.mxu0 0.0
        %5094 = vmatprep.mubr.f32.mxu0 0.0
        %v5095 = vand.u32 %v4847, 4294901760
        %v5096 = vsub.f32 %v4847, %v5095
        %5097 = vmatmul.mubr.f32.gmra.mrb[0].mxu0 %v5096
        %v5098 = vpop.f32.mrb[0].mxu0
        %v5099 = vadd.f32 %v5017, %v5098
        %v5100 = vpop.f32.mrb[0].mxu0
        %5101 = vmatprep.mubr.f32.mxu0 0.0
        %v5102 = vand.u32 %v4850, 4294901760
        %v5103 = vsub.f32 %v4850, %v5102
        %5104 = vmatmul.mubr.f32.gmra.mrb[0].mxu0 %v5103
        %v5105 = vpop.f32.mrb[0].mxu0
        %v5106 = vadd.f32 %v5023, %v5105
        %v5107 = vpop.f32.mrb[0].mxu0
        %5108 = vdwg.mxu0
        %5109 = vmatprep.subr.mxu0 0.0
        %v5110 = vand.u32 %v289, 4294901760
        %5111 = vmatpush1.msra.mxu0 %v5110
        %5112 = vmatprep.subr.mxu0 0.0
        %v5113 = vand.u32 %v290, 4294901760
        %5114 = vmatpush1.msra.mxu0 %v5113
        %5115 = vmatprep.subr.mxu0 0.0
        %5116 = vmatpush1.msra.mxu0 0.0
        %5117 = vmatprep.subr.mxu0 0.0
        %5118 = vmatpush1.msra.mxu0 0.0
        %5119 = vmatprep.subr.mxu0 0.0
        %5120 = vmatpush1.msra.mxu0 0.0
        %5121 = vmatprep.subr.mxu0 0.0
        %5122 = vmatpush1.msra.mxu0 0.0
        %5123 = vmatprep.subr.mxu0 0.0
        %5124 = vmatpush1.msra.mxu0 0.0
        %5125 = vmatprep.subr.mxu0 0.0
        %5126 = vmatpush1.msra.mxu0 0.0
        %5127 = vmatprep.subr.mxu0 0.0
        %5128 = vmatpush1.msra.mxu0 0.0
        %5129 = vmatprep.subr.mxu0 0.0
        %5130 = vmatpush1.msra.mxu0 0.0
        %5131 = vmatprep.subr.mxu0 0.0
        %5132 = vmatpush1.msra.mxu0 0.0
        %5133 = vmatprep.subr.mxu0 0.0
        %5134 = vmatpush1.msra.mxu0 0.0
        %5135 = vmatprep.subr.mxu0 0.0
        %5136 = vmatpush1.msra.mxu0 0.0
        %5137 = vmatprep.subr.mxu0 0.0
        %5138 = vmatpush1.msra.mxu0 0.0
        %5139 = vmatprep.subr.mxu0 0.0
        %5140 = vmatpush1.msra.mxu0 0.0
        %5141 = vmatprep.subr.mxu0 0.0
        %5142 = vmatpush1.msra.mxu0 0.0
        %5143 = vmatprep.subr.mxu0 0.0
        %5144 = vmatpush1.msra.mxu0 0.0
        %5145 = vmatprep.subr.mxu0 0.0
        %5146 = vmatpush1.msra.mxu0 0.0
        %5147 = vmatprep.subr.mxu0 0.0
        %5148 = vmatpush1.msra.mxu0 0.0
        %5149 = vmatprep.subr.mxu0 0.0
        %5150 = vmatpush1.msra.mxu0 0.0
        %5151 = vmatprep.subr.mxu0 0.0
        %5152 = vmatpush1.msra.mxu0 0.0
        %5153 = vmatprep.subr.mxu0 0.0
        %5154 = vmatpush1.msra.mxu0 0.0
        %5155 = vmatprep.subr.mxu0 0.0
        %5156 = vmatpush1.msra.mxu0 0.0
        %5157 = vmatprep.subr.mxu0 0.0
        %5158 = vmatpush1.msra.mxu0 0.0
        %5159 = vmatprep.subr.mxu0 0.0
        %5160 = vmatpush1.msra.mxu0 0.0
        %5161 = vmatprep.subr.mxu0 0.0
        %5162 = vmatpush1.msra.mxu0 0.0
        %5163 = vmatprep.subr.mxu0 0.0
        %5164 = vmatpush1.msra.mxu0 0.0
        %5165 = vmatprep.subr.mxu0 0.0
        %5166 = vmatpush1.msra.mxu0 0.0
        %5167 = vmatprep.subr.mxu0 0.0
        %5168 = vmatpush1.msra.mxu0 0.0
        %5169 = vmatprep.subr.mxu0 0.0
        %5170 = vmatpush1.msra.mxu0 0.0
        %5171 = vmatprep.subr.mxu0 0.0
        %5172 = vmatpush1.msra.mxu0 0.0
        %5173 = vmatprep.subr.mxu0 0.0
        %5174 = vmatpush1.msra.mxu0 0.0
        %5175 = vmatprep.mubr.f32.mxu0 0.0
        %v5176 = vand.u32 %v4847, 4294901760
        %v5177 = vsub.f32 %v4847, %v5176
        %v5178 = vand.u32 %v5177, 4294901760
        %5179 = vmatmul.mubr.f32.gmra.mrb[0].mxu0 %v5178
        %v5180 = vpop.f32.mrb[0].mxu0
        %v5181 = vadd.f32 %v5099, %v5180
        %v5182 = vpop.f32.mrb[0].mxu0
        %5183 = vmatprep.mubr.f32.mxu0 0.0
        %v5184 = vand.u32 %v4850, 4294901760
        %v5185 = vsub.f32 %v4850, %v5184
        %v5186 = vand.u32 %v5185, 4294901760
        %5187 = vmatmul.mubr.f32.gmra.mrb[0].mxu0 %v5186
        %v5188 = vpop.f32.mrb[0].mxu0
        %v5189 = vadd.f32 %v5106, %v5188
        %v5190 = vpop.f32.mrb[0].mxu0
        %5191 = vdwg.mxu0
        %5192 = vmatprep.subr.mxu0 0.0
        %v5193 = vand.u32 %v289, 4294901760
        %v5194 = vsub.f32 %v289, %v5193
        %v5195 = vand.u32 %v5194, 4294901760
        %5196 = vmatpush1.msra.mxu0 %v5195
        %5197 = vmatprep.subr.mxu0 0.0
        %v5198 = vand.u32 %v290, 4294901760
        %v5199 = vsub.f32 %v290, %v5198
        %v5200 = vand.u32 %v5199, 4294901760
        %5201 = vmatpush1.msra.mxu0 %v5200
        %5202 = vmatprep.subr.mxu0 0.0
        %5203 = vmatpush1.msra.mxu0 0.0
        %5204 = vmatprep.subr.mxu0 0.0
        %5205 = vmatpush1.msra.mxu0 0.0
        %5206 = vmatprep.subr.mxu0 0.0
        %5207 = vmatpush1.msra.mxu0 0.0
        %5208 = vmatprep.subr.mxu0 0.0
        %5209 = vmatpush1.msra.mxu0 0.0
        %5210 = vmatprep.subr.mxu0 0.0
        %5211 = vmatpush1.msra.mxu0 0.0
        %5212 = vmatprep.subr.mxu0 0.0
        %5213 = vmatpush1.msra.mxu0 0.0
        %5214 = vmatprep.subr.mxu0 0.0
        %5215 = vmatpush1.msra.mxu0 0.0
        %5216 = vmatprep.subr.mxu0 0.0
        %5217 = vmatpush1.msra.mxu0 0.0
        %5218 = vmatprep.subr.mxu0 0.0
        %5219 = vmatpush1.msra.mxu0 0.0
        %5220 = vmatprep.subr.mxu0 0.0
        %5221 = vmatpush1.msra.mxu0 0.0
        %5222 = vmatprep.subr.mxu0 0.0
        %5223 = vmatpush1.msra.mxu0 0.0
        %5224 = vmatprep.subr.mxu0 0.0
        %5225 = vmatpush1.msra.mxu0 0.0
        %5226 = vmatprep.subr.mxu0 0.0
        %5227 = vmatpush1.msra.mxu0 0.0
        %5228 = vmatprep.subr.mxu0 0.0
        %5229 = vmatpush1.msra.mxu0 0.0
        %5230 = vmatprep.subr.mxu0 0.0
        %5231 = vmatpush1.msra.mxu0 0.0
        %5232 = vmatprep.subr.mxu0 0.0
        %5233 = vmatpush1.msra.mxu0 0.0
        %5234 = vmatprep.subr.mxu0 0.0
        %5235 = vmatpush1.msra.mxu0 0.0
        %5236 = vmatprep.subr.mxu0 0.0
        %5237 = vmatpush1.msra.mxu0 0.0
        %5238 = vmatprep.subr.mxu0 0.0
        %5239 = vmatpush1.msra.mxu0 0.0
        %5240 = vmatprep.subr.mxu0 0.0
        %5241 = vmatpush1.msra.mxu0 0.0
        %5242 = vmatprep.subr.mxu0 0.0
        %5243 = vmatpush1.msra.mxu0 0.0
        %5244 = vmatprep.subr.mxu0 0.0
        %5245 = vmatpush1.msra.mxu0 0.0
        %5246 = vmatprep.subr.mxu0 0.0
        %5247 = vmatpush1.msra.mxu0 0.0
        %5248 = vmatprep.subr.mxu0 0.0
        %5249 = vmatpush1.msra.mxu0 0.0
        %5250 = vmatprep.subr.mxu0 0.0
        %5251 = vmatpush1.msra.mxu0 0.0
        %5252 = vmatprep.subr.mxu0 0.0
        %5253 = vmatpush1.msra.mxu0 0.0
        %5254 = vmatprep.subr.mxu0 0.0
        %5255 = vmatpush1.msra.mxu0 0.0
        %5256 = vmatprep.subr.mxu0 0.0
        %5257 = vmatpush1.msra.mxu0 0.0
        %5258 = vmatprep.subr.mxu0 0.0
        %5259 = vmatpush1.msra.mxu0 0.0
        %5260 = vmatprep.subr.mxu0 0.0
        %5261 = vmatpush1.msra.mxu0 0.0
        %5262 = vmatprep.mubr.f32.mxu0 0.0
        %v5263 = vand.u32 %v4847, 4294901760
        %5264 = vmatmul.mubr.f32.gmra.mrb[0].mxu0 %v5263
        %v5265 = vpop.f32.mrb[0].mxu0
        %v5266 = vadd.f32 %v5181, %v5265
        %v5267 = vpop.f32.mrb[0].mxu0
        %5268 = vmatprep.mubr.f32.mxu0 0.0
        %v5269 = vand.u32 %v4850, 4294901760
        %5270 = vmatmul.mubr.f32.gmra.mrb[0].mxu0 %v5269
        %v5271 = vpop.f32.mrb[0].mxu0
        %v5272 = vadd.f32 %v5189, %v5271
        %v5273 = vpop.f32.mrb[0].mxu0
        %5274 = vdwg.mxu0
        %5275 = vmatprep.subr.mxu0 0.0
        %v5276 = vand.u32 %v289, 4294901760
        %5277 = vmatpush1.msra.mxu0 %v5276
        %5278 = vmatprep.subr.mxu0 0.0
        %v5279 = vand.u32 %v290, 4294901760
        %5280 = vmatpush1.msra.mxu0 %v5279
        %5281 = vmatprep.subr.mxu0 0.0
        %5282 = vmatpush1.msra.mxu0 0.0
        %5283 = vmatprep.subr.mxu0 0.0
        %5284 = vmatpush1.msra.mxu0 0.0
        %5285 = vmatprep.subr.mxu0 0.0
        %5286 = vmatpush1.msra.mxu0 0.0
        %5287 = vmatprep.subr.mxu0 0.0
        %5288 = vmatpush1.msra.mxu0 0.0
        %5289 = vmatprep.subr.mxu0 0.0
        %5290 = vmatpush1.msra.mxu0 0.0
        %5291 = vmatprep.subr.mxu0 0.0
        %5292 = vmatpush1.msra.mxu0 0.0
        %5293 = vmatprep.subr.mxu0 0.0
        %5294 = vmatpush1.msra.mxu0 0.0
        %5295 = vmatprep.subr.mxu0 0.0
        %5296 = vmatpush1.msra.mxu0 0.0
        %5297 = vmatprep.subr.mxu0 0.0
        %5298 = vmatpush1.msra.mxu0 0.0
        %5299 = vmatprep.subr.mxu0 0.0
        %5300 = vmatpush1.msra.mxu0 0.0
        %5301 = vmatprep.subr.mxu0 0.0
        %5302 = vmatpush1.msra.mxu0 0.0
        %5303 = vmatprep.subr.mxu0 0.0
        %5304 = vmatpush1.msra.mxu0 0.0
        %5305 = vmatprep.subr.mxu0 0.0
        %5306 = vmatpush1.msra.mxu0 0.0
        %5307 = vmatprep.subr.mxu0 0.0
        %5308 = vmatpush1.msra.mxu0 0.0
        %5309 = vmatprep.subr.mxu0 0.0
        %5310 = vmatpush1.msra.mxu0 0.0
        %5311 = vmatprep.subr.mxu0 0.0
        %5312 = vmatpush1.msra.mxu0 0.0
        %5313 = vmatprep.subr.mxu0 0.0
        %5314 = vmatpush1.msra.mxu0 0.0
        %5315 = vmatprep.subr.mxu0 0.0
        %5316 = vmatpush1.msra.mxu0 0.0
        %5317 = vmatprep.subr.mxu0 0.0
        %5318 = vmatpush1.msra.mxu0 0.0
        %5319 = vmatprep.subr.mxu0 0.0
        %5320 = vmatpush1.msra.mxu0 0.0
        %5321 = vmatprep.subr.mxu0 0.0
        %5322 = vmatpush1.msra.mxu0 0.0
        %5323 = vmatprep.subr.mxu0 0.0
        %5324 = vmatpush1.msra.mxu0 0.0
        %5325 = vmatprep.subr.mxu0 0.0
        %5326 = vmatpush1.msra.mxu0 0.0
        %5327 = vmatprep.subr.mxu0 0.0
        %5328 = vmatpush1.msra.mxu0 0.0
        %5329 = vmatprep.subr.mxu0 0.0
        %5330 = vmatpush1.msra.mxu0 0.0
        %5331 = vmatprep.subr.mxu0 0.0
        %5332 = vmatpush1.msra.mxu0 0.0
        %5333 = vmatprep.subr.mxu0 0.0
        %5334 = vmatpush1.msra.mxu0 0.0
        %5335 = vmatprep.subr.mxu0 0.0
        %5336 = vmatpush1.msra.mxu0 0.0
        %5337 = vmatprep.subr.mxu0 0.0
        %5338 = vmatpush1.msra.mxu0 0.0
        %5339 = vmatprep.subr.mxu0 0.0
        %5340 = vmatpush1.msra.mxu0 0.0
        %5341 = vmatprep.mubr.f32.mxu0 0.0
        %v5342 = vand.u32 %v4847, 4294901760
        %5343 = vmatmul.mubr.f32.gmra.mrb[0].mxu0 %v5342
        %v5344 = vpop.f32.mrb[0].mxu0
        %v5345 = vadd.f32 %v5266, %v5344
        %v5346 = vpop.f32.mrb[0].mxu0
        %5347 = vmatprep.mubr.f32.mxu0 0.0
        %v5348 = vand.u32 %v4850, 4294901760
        %5349 = vmatmul.mubr.f32.gmra.mrb[0].mxu0 %v5348
        %v5350 = vpop.f32.mrb[0].mxu0
        %v5351 = vadd.f32 %v5272, %v5350
        %v5352 = vpop.f32.mrb[0].mxu0
        %5353 = vdwg.mxu0
        %v5354 = vmul.f32 %v1299, %v1299
        %v5355 = vmul.f32 %v1305, %v1305
        %v5356 = vmul.f32 %v2309, %v2309
        %v5357 = vmul.f32 %v2315, %v2315
        %v5358 = vmul.f32 %v1299, %v2309
        %v5359 = vmul.f32 %v1305, %v2315
        %v5360 = vsub.f32 %v3321, %v5354
        %v5361 = vsub.f32 %v3327, %v5355
        %v5362 = vsub.f32 %v4333, %v5356
        %v5363 = vsub.f32 %v4339, %v5357
        %v5364 = vsub.f32 %v5345, %v5358
        %v5365 = vsub.f32 %v5351, %v5359
        %v5366 = vmul.f32 %v5358, 2.0
        %v5367 = vmul.f32 %v5359, 2.0
        %v5368 = vadd.f32 %v5366, 0.0001
        %v5369 = vadd.f32 %v5367, 0.0001
        %v5370 = vmul.f32 %v5364, 2.0
        %v5371 = vmul.f32 %v5365, 2.0
        %v5372 = vadd.f32 %v5370, 0.0009
        %v5373 = vadd.f32 %v5371, 0.0009
        %v5374 = vmul.f32 %v5368, %v5372
        %v5375 = vmul.f32 %v5369, %v5373
        %v5376 = vadd.f32 %v5354, %v5356
        %v5377 = vadd.f32 %v5355, %v5357
        %v5378 = vadd.f32 %v5376, 0.0001
        %v5379 = vadd.f32 %v5377, 0.0001
        %v5380 = vadd.f32 %v5360, %v5362
        %v5381 = vadd.f32 %v5361, %v5363
        %v5382 = vadd.f32 %v5380, 0.0009
        %v5383 = vadd.f32 %v5381, 0.0009
        %v5384 = vmul.f32 %v5378, %v5382
        %v5385 = vmul.f32 %v5379, %v5383
        %v5386 = vrcp.pop %v5384
        %v5387 = vrcp.pop %v5385
        %v5388 = vmul.f32 %v5384, %v5386
        %v5389 = vmul.f32 %v5385, %v5387
        %v5390 = vsub.f32 2.0, %v5388
        %v5391 = vsub.f32 2.0, %v5389
        %v5392 = vmul.f32 %v5386, %v5390
        %v5393 = vmul.f32 %v5387, %v5391
        %v5394 = vmul.f32 %v5384, %v5392
        %v5395 = vmul.f32 %v5385, %v5393
        %v5396 = vsub.f32 2.0, %v5394
        %v5397 = vsub.f32 2.0, %v5395
        %v5398 = vmul.f32 %v5392, %v5396
        %v5399 = vmul.f32 %v5393, %v5397
        %v5400 = vmul.f32 %v5374, %v5398
        %v5401 = vmul.f32 %v5375, %v5399
        %v5402 = vsel %vm291, %v5400, 0.0
        %v5403 = vsel %vm291, %v5401, 0.0
        %v5404 = vadd.f32 %v5402, %v5403
        %5405 = vadd.xlane.f32.xlu0 %v5404
        %v5406 = vpop.xlane.xlu0 %5405
        %v5407 = vrot.slane %v5406, 4
        %v5408 = vadd.f32 %v5406, %v5407
        %v5409 = vrot.slane %v5408, 2
        %v5410 = vadd.f32 %v5408, %v5409
        %v5411 = vrot.slane %v5410, 1
        %v5412 = vadd.f32 %v5410, %v5411
        %s5413 = vtos %v5412
        %v5414 = vstv %s5413
        %vm5415 = vcmask 0
        %5416 = vst.msk [vmem:[%s282] sm:$0x1] %vm5415, %v5414
        %p5417 = scmp.lt.s32.totalorder %s22, 7
        %s5418 = scalar_select %p5417, %s22, 7
        %s5419 = scalar_lea.vmem %s4, %s5418
        // Predicated region
        $region53: #{tpu_custom_call.1} parent=35 // pred_check
          %p5420 = pneg %p134
        $region54: #{tpu_custom_call.1} parent=35 // pred_check_branch
          %5422 = sbr.rel (%p5420) target = $region56
        $region55: #{tpu_custom_call.1} parent=35 // pred_region
          _
        $region56: #{tpu_custom_call.1} parent=35 // pred_fallthru
          _
      $region36: #{tpu_custom_call.1} parent=5 // pred_fallthru
        _
      %p5423 = scmp.le.s32.totalorder 2, %s17
      // Predicated region
      $region57: #{tpu_custom_call.1} parent=5 // pred_check
        %p5424 = pneg %p5423
      $region58: #{tpu_custom_call.1} parent=5 // pred_check_branch
        %5426 = sbr.rel (%p5424) target = $region60
      $region59: #{tpu_custom_call.1} parent=5 // pred_region
        %s5427 = ssub.s32 %s17, 2
        // Predicated region
        $region61: #{tpu_custom_call.1} parent=59 // pred_check
          %p5428 = pneg %p140
        $region62: #{tpu_custom_call.1} parent=59 // pred_check_branch
          %5430 = sbr.rel (%p5428) target = $region64
        $region63: #{tpu_custom_call.1} parent=59 // pred_region
          %p5431 = scmp.lt.s32.totalorder %s23, 7
          %s5432 = scalar_select %p5431, %s23, 7
          %s5433 = scalar_lea.vmem %s4, %s5432
        $region64: #{tpu_custom_call.1} parent=59 // pred_fallthru
          _
      $region60: #{tpu_custom_call.1} parent=5 // pred_fallthru
        _
    $region6: #{tpu_custom_call.1} parent=1 // loop_footer
      %s21 = sadd.s32 1, %s17
    $region7: #{tpu_custom_call.1} parent=1 // loop_footer_branch
      %16 = sbr.rel target = $region3
    $region8: #{tpu_custom_call.1} parent=1 // loop_exit
      _
    %5434 = vsyncpa [#allocation3], 1
    %s5435 = scalar_lea.sflag [#allocation3], 1
    %5436 = vsyncpa %s5435, 1
    %5437 = vsyncpa [#allocation5], 1
    %s5438 = scalar_lea.sflag [#allocation5], 1
    %5439 = vsyncpa %s5438, 1
    %5440 = vsyncpa [#allocation8], 1

</llo_original>
